<compile_context>
chip_gen: v7x
topology: tpu7x:2x2x1
jax: 0.10.0
libtpu: 0.0.40
codegen_flags: <defaults>
</compile_context>

<pallas_src>
import functools

import jax
import jax.numpy as jnp
from jax import lax
from jax.experimental import pallas as pl
from jax.experimental.pallas import tpu as pltpu


def _round_up(x, m):
    return (x + m - 1) // m * m


def _conv_block_kernel(x_ref, w1_ref, s1_ref, b1_ref, w2_ref, s2_ref, b2_ref,
                       o_ref, *, valid_w):
    """One batch image per grid step; flat-spatial shifted-matmul formulation.

    x_ref  : (1, H+5, Wp, Ci)  zero-padded input (2 rows/cols top/left, 3 rows bottom,
                               Wp-W-2 cols right, channels lane-padded to Ci)
    w1_ref : (3, 3*Ci, Co)     conv1 weights laid out as [kh, kw*Ci + ci, co]
    w2_ref : (3, 3*Co, Co)     conv2 weights laid out as [kh, kw*Co + ci, co]
    s*_ref : (1, Co)           folded BN scale
    b*_ref : (1, Co)           folded BN bias (conv bias folded in)
    o_ref  : (1, H, Wp, Co)    output; columns >= valid_w are don't-care padding
    """
    H, Wp, Co = o_ref.shape[1], o_ref.shape[2], o_ref.shape[3]
    Hx, Ci = x_ref.shape[1], x_ref.shape[3]
    n_x = Hx * Wp                 # flat rows of the padded input grid
    n_mid = (H + 2) * Wp          # flat rows of the zero-bordered intermediate grid
    n_out = H * Wp                # flat rows of the output grid

    def kw_pack(flat, rows):
        # Row i of the result holds [flat[i] | flat[i+1] | flat[i+2]] on the lane axis,
        # i.e. the kw = 0/1/2 taps packed into the contraction dim -> one matmul per kh.
        return jnp.concatenate(
            [flat[0:rows], flat[1:rows + 1], flat[2:rows + 2]], axis=1)

    # ---------------- conv1 + BN + ReLU ----------------
    x_flat = x_ref[0].reshape(n_x, Ci)
    x_cat = kw_pack(x_flat, n_mid + 2 * Wp)            # ((H+4)*Wp, 3*Ci)

    acc1 = jnp.zeros((n_mid, Co), jnp.float32)
    for kh in range(3):                                 # kh shift = 8-aligned row slice
        acc1 = acc1 + jnp.dot(x_cat[kh * Wp:kh * Wp + n_mid, :], w1_ref[kh],
                              preferred_element_type=jnp.float32)
    h1 = jnp.maximum(acc1 * s1_ref[0] + b1_ref[0], 0.0)   # fused BN + ReLU

    # Zero the 1-pixel border of the (H+2, Wp) grid: this *is* conv2's padded input
    # (replaces the scratch buffer, its re-zeroing and the offset interior store).
    h1 = h1.reshape(H + 2, Wp, Co)
    row = lax.broadcasted_iota(jnp.int32, (H + 2, Wp, Co), 0)
    col = lax.broadcasted_iota(jnp.int32, (H + 2, Wp, Co), 1)
    interior = (row >= 1) & (row <= H) & (col >= 1) & (col <= valid_w)
    mid = jnp.where(interior, h1, 0.0).reshape(n_mid, Co)
    # one extra zero grid-row keeps the kw = 1/2 shifted slices in bounds
    mid = jnp.concatenate([mid, jnp.zeros((Wp, Co), jnp.float32)], axis=0)

    # ---------------- conv2 + BN + ReLU ----------------
    m_cat = kw_pack(mid, n_out + 2 * Wp)                # ((H+2)*Wp, 3*Co)

    acc2 = jnp.zeros((n_out, Co), jnp.float32)
    for kh in range(3):
        acc2 = acc2 + jnp.dot(m_cat[kh * Wp:kh * Wp + n_out, :], w2_ref[kh],
                              preferred_element_type=jnp.float32)
    h2 = jnp.maximum(acc2 * s2_ref[0] + b2_ref[0], 0.0)   # fused BN + ReLU

    o_ref[0] = h2.reshape(H, Wp, Co).astype(o_ref.dtype)  # dense, lane-aligned store


def conv_block_pallas(x_nchw, params):
    """x_nchw: (N, C_in, H, W) float32.  Returns (N, C_out, H, W) float32."""
    w1, b1, g1, be1, m1, v1, w2, b2, g2, be2, m2, v2 = params
    eps = 1e-5

    N, C_in, H, W = x_nchw.shape
    C_out = w1.shape[0]

    Ci = _round_up(C_in, 128)          # lane-dense channel padding
    Co = _round_up(C_out, 128)
    Wp = _round_up(W + 4, 8)           # flat-grid row width (>= W+4, 8-aligned)
    Hx = H + 5                         # 2 zero rows on top, 3 on the bottom

    # fold BN (inference mode) + conv bias into per-channel scale / bias
    s1 = g1 / jnp.sqrt(v1 + eps)
    f1 = be1 + s1 * (b1 - m1)
    s2 = g2 / jnp.sqrt(v2 + eps)
    f2 = be2 + s2 * (b2 - m2)

    def pad_vec(v):
        return jnp.pad(v, (0, Co - v.shape[0])).reshape(1, Co)

    def pack_weights(w, ci):
        # OIHW -> HWIO -> channel pad -> (kh, kw*ci + c_in, c_out)
        w = jnp.transpose(w, (2, 3, 1, 0))
        w = jnp.pad(w, ((0, 0), (0, 0), (0, ci - w.shape[2]), (0, Co - w.shape[3])))
        return w.reshape(3, 3 * ci, Co)

    w1_k = pack_weights(w1, Ci)
    w2_k = pack_weights(w2, Co)

    # NCHW -> NHWC; 2 zero rows/cols top-left (so every tap shift is non-negative on
    # the flat grid), 3 zero rows bottom, right-pad width to Wp, lane-pad channels.
    x_nhwc = jnp.transpose(x_nchw, (0, 2, 3, 1))
    x_pad = jnp.pad(x_nhwc, ((0, 0), (2, 3), (2, Wp - W - 2), (0, Ci - C_in)))

    kernel = functools.partial(_conv_block_kernel, valid_w=W)

    out = pl.pallas_call(
        kernel,
        out_shape=jax.ShapeDtypeStruct((N, H, Wp, Co), jnp.float32),
        grid_spec=pltpu.PrefetchScalarGridSpec(
            num_scalar_prefetch=0,
            grid=(N,),
            in_specs=[
                pl.BlockSpec((1, Hx, Wp, Ci), lambda n: (n, 0, 0, 0)),
                pl.BlockSpec((3, 3 * Ci, Co), lambda n: (0, 0, 0)),
                pl.BlockSpec((1, Co), lambda n: (0, 0)),
                pl.BlockSpec((1, Co), lambda n: (0, 0)),
                pl.BlockSpec((3, 3 * Co, Co), lambda n: (0, 0, 0)),
                pl.BlockSpec((1, Co), lambda n: (0, 0)),
                pl.BlockSpec((1, Co), lambda n: (0, 0)),
            ],
            out_specs=pl.BlockSpec((1, H, Wp, Co), lambda n: (n, 0, 0, 0)),
        ),
        compiler_params=pltpu.CompilerParams(
            dimension_semantics=("parallel",)),
    )(x_pad, w1_k, pad_vec(s1), pad_vec(f1), w2_k, pad_vec(s2), pad_vec(f2))

    # drop the padded columns / channels, back to NCHW to match PyTorch
    return jnp.transpose(out[:, :, :W, :C_out], (0, 3, 1, 2))


def _reference(x_nchw, params):
    """Pure-JAX reference matching PyTorch semantics (BN in eval mode)."""
    w1, b1, g1, be1, m1, v1, w2, b2, g2, be2, m2, v2 = params
    eps = 1e-5

    def conv_bn_relu(x, w, b, g, be, m, v):
        y = lax.conv_general_dilated(
            x, w, window_strides=(1, 1), padding=((1, 1), (1, 1)),
            dimension_numbers=("NCHW", "OIHW", "NCHW"))
        y = y + b[None, :, None, None]
        y = g[None, :, None, None] * (y - m[None, :, None, None]) / \
            jnp.sqrt(v[None, :, None, None] + eps) + be[None, :, None, None]
        return jnp.maximum(y, 0.0)

    h = conv_bn_relu(x_nchw, w1, b1, g1, be1, m1, v1)
    return conv_bn_relu(h, w2, b2, g2, be2, m2, v2)


if __name__ == "__main__":
    key = jax.random.PRNGKey(0)
    N, C_in, C_out, H, W = 2, 4, 8, 16, 16

    ks = jax.random.split(key, 9)
    x = jax.random.normal(ks[0], (N, C_in, H, W), jnp.float32)

    # Deterministic synthetic parameters (conv OIHW weights + bias, BN affine + running stats).
    w1 = jax.random.normal(ks[1], (C_out, C_in, 3, 3), jnp.float32) * 0.1
    b1 = jax.random.normal(ks[2], (C_out,), jnp.float32) * 0.1
    g1 = 1.0 + 0.1 * jax.random.normal(ks[3], (C_out,), jnp.float32)
    be1 = 0.1 * jax.random.normal(ks[4], (C_out,), jnp.float32)
    m1 = 0.05 * jax.random.normal(ks[5], (C_out,), jnp.float32)
    v1 = 1.0 + 0.1 * jax.nn.softplus(jax.random.normal(ks[6], (C_out,), jnp.float32))

    w2 = jax.random.normal(ks[7], (C_out, C_out, 3, 3), jnp.float32) * 0.1
    b2 = jax.random.normal(ks[8], (C_out,), jnp.float32) * 0.1
    g2 = jnp.linspace(0.9, 1.1, C_out, dtype=jnp.float32)
    be2 = jnp.linspace(-0.1, 0.1, C_out, dtype=jnp.float32)
    m2 = jnp.linspace(-0.05, 0.05, C_out, dtype=jnp.float32)
    v2 = jnp.linspace(0.9, 1.2, C_out, dtype=jnp.float32)

    params = (w1, b1, g1, be1, m1, v1, w2, b2, g2, be2, m2, v2)

    out = jax.block_until_ready(conv_block_pallas(x, params))
    ref = jax.block_until_ready(_reference(x, params))

    assert out.shape == (N, C_out, H, W), out.shape
    assert jnp.allclose(out, ref, atol=1e-4, rtol=1e-4), \
        float(jnp.max(jnp.abs(out - ref)))

    print("KERNEL_OK")
</pallas_src>

<mosaic_0001>
module attributes {stable_mosaic.version = 11 : i64} {
  func.func @_conv_block_kernel(%arg0: i32, %arg1: memref<1x21x24x128xf32, #tpu.memory_space<vmem>>, %arg2: memref<3x384x128xf32, #tpu.memory_space<vmem>>, %arg3: memref<1x128xf32, #tpu.memory_space<vmem>>, %arg4: memref<1x128xf32, #tpu.memory_space<vmem>>, %arg5: memref<3x384x128xf32, #tpu.memory_space<vmem>>, %arg6: memref<1x128xf32, #tpu.memory_space<vmem>>, %arg7: memref<1x128xf32, #tpu.memory_space<vmem>>, %arg8: memref<1x16x24x128xf32, #tpu.memory_space<vmem>>) attributes {dimension_semantics = [#tpu.dimension_semantics<parallel>], iteration_bounds = array<i64: 2>, scalar_prefetch = 0 : i64, scratch_operands = 0 : i64, tpu.core_type = #tpu.core_type<tc>, window_params = [{transform_indices = @transform_0, window_bounds = array<i64: 1, 21, 24, 128>}, {pipeline_mode = #tpu.pipeline_mode<synchronous>, transform_indices = @transform_1, window_bounds = array<i64: 3, 384, 128>}, {pipeline_mode = #tpu.pipeline_mode<synchronous>, transform_indices = @transform_2, window_bounds = array<i64: 1, 128>}, {pipeline_mode = #tpu.pipeline_mode<synchronous>, transform_indices = @transform_3, window_bounds = array<i64: 1, 128>}, {pipeline_mode = #tpu.pipeline_mode<synchronous>, transform_indices = @transform_4, window_bounds = array<i64: 3, 384, 128>}, {pipeline_mode = #tpu.pipeline_mode<synchronous>, transform_indices = @transform_5, window_bounds = array<i64: 1, 128>}, {pipeline_mode = #tpu.pipeline_mode<synchronous>, transform_indices = @transform_6, window_bounds = array<i64: 1, 128>}, {transform_indices = @transform_7, window_bounds = array<i64: 1, 16, 24, 128>}]} {
    %c0 = arith.constant 0 : index
    %c0_0 = arith.constant 0 : index
    %c0_1 = arith.constant 0 : index
    %c0_2 = arith.constant 0 : index
    %0 = vector.load %arg1[%c0, %c0_0, %c0_1, %c0_2] : memref<1x21x24x128xf32, #tpu.memory_space<vmem>>, vector<1x21x24x128xf32>
    %1 = vector.shape_cast %0 : vector<1x21x24x128xf32> to vector<21x24x128xf32>
    %2 = vector.shape_cast %1 : vector<21x24x128xf32> to vector<504x128xf32>
    %3 = vector.extract_strided_slice %2 {offsets = [0, 0], sizes = [480, 128], strides = [1, 1]} : vector<504x128xf32> to vector<480x128xf32>
    %4 = vector.extract_strided_slice %2 {offsets = [1, 0], sizes = [480, 128], strides = [1, 1]} : vector<504x128xf32> to vector<480x128xf32>
    %5 = vector.extract_strided_slice %2 {offsets = [2, 0], sizes = [480, 128], strides = [1, 1]} : vector<504x128xf32> to vector<480x128xf32>
    %6 = tpu.concatenate %3, %4, %5 in 1 : vector<480x128xf32>, vector<480x128xf32>, vector<480x128xf32> -> vector<480x384xf32>
    %cst = arith.constant 0.000000e+00 : f32
    %7 = vector.broadcast %cst : f32 to vector<432x128xf32>
    %8 = vector.extract_strided_slice %6 {offsets = [0, 0], sizes = [432, 384], strides = [1, 1]} : vector<480x384xf32> to vector<432x384xf32>
    %c0_3 = arith.constant 0 : index
    %c0_4 = arith.constant 0 : index
    %c0_5 = arith.constant 0 : index
    %9 = vector.load %arg2[%c0_3, %c0_4, %c0_5] : memref<3x384x128xf32, #tpu.memory_space<vmem>>, vector<1x384x128xf32>
    %10 = vector.shape_cast %9 : vector<1x384x128xf32> to vector<384x128xf32>
    %cst_6 = arith.constant dense<0.000000e+00> : vector<432x128xf32>
    %11 = tpu.matmul %8, %10, %cst_6 {dimension_numbers = #tpu.dot_dimension_numbers<[1], [0], [0], [1], [0, 0, 1, 1], [], []>} : vector<432x384xf32>, vector<384x128xf32>, vector<432x128xf32> -> vector<432x128xf32>
    %12 = arith.addf %7, %11 : vector<432x128xf32>
    %13 = vector.extract_strided_slice %6 {offsets = [24, 0], sizes = [432, 384], strides = [1, 1]} : vector<480x384xf32> to vector<432x384xf32>
    %c1 = arith.constant 1 : index
    %c0_7 = arith.constant 0 : index
    %c0_8 = arith.constant 0 : index
    %14 = vector.load %arg2[%c1, %c0_7, %c0_8] : memref<3x384x128xf32, #tpu.memory_space<vmem>>, vector<1x384x128xf32>
    %15 = vector.shape_cast %14 : vector<1x384x128xf32> to vector<384x128xf32>
    %cst_9 = arith.constant dense<0.000000e+00> : vector<432x128xf32>
    %16 = tpu.matmul %13, %15, %cst_9 {dimension_numbers = #tpu.dot_dimension_numbers<[1], [0], [0], [1], [0, 0, 1, 1], [], []>} : vector<432x384xf32>, vector<384x128xf32>, vector<432x128xf32> -> vector<432x128xf32>
    %17 = arith.addf %12, %16 : vector<432x128xf32>
    %18 = vector.extract_strided_slice %6 {offsets = [48, 0], sizes = [432, 384], strides = [1, 1]} : vector<480x384xf32> to vector<432x384xf32>
    %c2 = arith.constant 2 : index
    %c0_10 = arith.constant 0 : index
    %c0_11 = arith.constant 0 : index
    %19 = vector.load %arg2[%c2, %c0_10, %c0_11] : memref<3x384x128xf32, #tpu.memory_space<vmem>>, vector<1x384x128xf32>
    %20 = vector.shape_cast %19 : vector<1x384x128xf32> to vector<384x128xf32>
    %cst_12 = arith.constant dense<0.000000e+00> : vector<432x128xf32>
    %21 = tpu.matmul %18, %20, %cst_12 {dimension_numbers = #tpu.dot_dimension_numbers<[1], [0], [0], [1], [0, 0, 1, 1], [], []>} : vector<432x384xf32>, vector<384x128xf32>, vector<432x128xf32> -> vector<432x128xf32>
    %22 = arith.addf %17, %21 : vector<432x128xf32>
    %c0_13 = arith.constant 0 : index
    %c0_14 = arith.constant 0 : index
    %23 = vector.load %arg3[%c0_13, %c0_14] : memref<1x128xf32, #tpu.memory_space<vmem>>, vector<1x128xf32>
    %24 = vector.shape_cast %23 : vector<1x128xf32> to vector<128xf32>
    %25 = vector.shape_cast %24 : vector<128xf32> to vector<1x128xf32>
    %26 = vector.broadcast %25 : vector<1x128xf32> to vector<432x128xf32>
    %27 = arith.mulf %22, %26 : vector<432x128xf32>
    %c0_15 = arith.constant 0 : index
    %c0_16 = arith.constant 0 : index
    %28 = vector.load %arg4[%c0_15, %c0_16] : memref<1x128xf32, #tpu.memory_space<vmem>>, vector<1x128xf32>
    %29 = vector.shape_cast %28 : vector<1x128xf32> to vector<128xf32>
    %30 = vector.shape_cast %29 : vector<128xf32> to vector<1x128xf32>
    %31 = vector.broadcast %30 : vector<1x128xf32> to vector<432x128xf32>
    %32 = arith.addf %27, %31 : vector<432x128xf32>
    %cst_17 = arith.constant 0.000000e+00 : f32
    %33 = vector.broadcast %cst_17 : f32 to vector<432x128xf32>
    %34 = arith.maximumf %32, %33 : vector<432x128xf32>
    %35 = vector.shape_cast %34 : vector<432x128xf32> to vector<18x24x128xf32>
    %36 = tpu.iota {dimensions = array<i32: 0>} : vector<18x24x128xi32>
    %37 = tpu.iota {dimensions = array<i32: 1>} : vector<18x24x128xi32>
    %c1_i32 = arith.constant 1 : i32
    %38 = vector.broadcast %c1_i32 : i32 to vector<18x24x128xi32>
    %39 = arith.cmpi sge, %36, %38 : vector<18x24x128xi32>
    %c16_i32 = arith.constant 16 : i32
    %40 = vector.broadcast %c16_i32 : i32 to vector<18x24x128xi32>
    %41 = arith.cmpi sle, %36, %40 : vector<18x24x128xi32>
    %42 = arith.andi %39, %41 : vector<18x24x128xi1>
    %c1_i32_18 = arith.constant 1 : i32
    %43 = vector.broadcast %c1_i32_18 : i32 to vector<18x24x128xi32>
    %44 = arith.cmpi sge, %37, %43 : vector<18x24x128xi32>
    %45 = arith.andi %42, %44 : vector<18x24x128xi1>
    %c16_i32_19 = arith.constant 16 : i32
    %46 = vector.broadcast %c16_i32_19 : i32 to vector<18x24x128xi32>
    %47 = arith.cmpi sle, %37, %46 : vector<18x24x128xi32>
    %48 = arith.andi %45, %47 : vector<18x24x128xi1>
    %cst_20 = arith.constant 0.000000e+00 : f32
    %49 = vector.broadcast %cst_20 : f32 to vector<18x24x128xf32>
    %50 = arith.select %48, %35, %49 : vector<18x24x128xi1>, vector<18x24x128xf32>
    %51 = vector.shape_cast %50 : vector<18x24x128xf32> to vector<432x128xf32>
    %cst_21 = arith.constant 0.000000e+00 : f32
    %52 = vector.broadcast %cst_21 : f32 to vector<24x128xf32>
    %53 = tpu.concatenate %51, %52 in 0 : vector<432x128xf32>, vector<24x128xf32> -> vector<456x128xf32>
    %54 = vector.extract_strided_slice %53 {offsets = [0, 0], sizes = [432, 128], strides = [1, 1]} : vector<456x128xf32> to vector<432x128xf32>
    %55 = vector.extract_strided_slice %53 {offsets = [1, 0], sizes = [432, 128], strides = [1, 1]} : vector<456x128xf32> to vector<432x128xf32>
    %56 = vector.extract_strided_slice %53 {offsets = [2, 0], sizes = [432, 128], strides = [1, 1]} : vector<456x128xf32> to vector<432x128xf32>
    %57 = tpu.concatenate %54, %55, %56 in 1 : vector<432x128xf32>, vector<432x128xf32>, vector<432x128xf32> -> vector<432x384xf32>
    %cst_22 = arith.constant 0.000000e+00 : f32
    %58 = vector.broadcast %cst_22 : f32 to vector<384x128xf32>
    %59 = vector.extract_strided_slice %57 {offsets = [0, 0], sizes = [384, 384], strides = [1, 1]} : vector<432x384xf32> to vector<384x384xf32>
    %c0_23 = arith.constant 0 : index
    %c0_24 = arith.constant 0 : index
    %c0_25 = arith.constant 0 : index
    %60 = vector.load %arg5[%c0_23, %c0_24, %c0_25] : memref<3x384x128xf32, #tpu.memory_space<vmem>>, vector<1x384x128xf32>
    %61 = vector.shape_cast %60 : vector<1x384x128xf32> to vector<384x128xf32>
    %cst_26 = arith.constant dense<0.000000e+00> : vector<384x128xf32>
    %62 = tpu.matmul %59, %61, %cst_26 {dimension_numbers = #tpu.dot_dimension_numbers<[1], [0], [0], [1], [0, 0, 1, 1], [], []>} : vector<384x384xf32>, vector<384x128xf32>, vector<384x128xf32> -> vector<384x128xf32>
    %63 = arith.addf %58, %62 : vector<384x128xf32>
    %64 = vector.extract_strided_slice %57 {offsets = [24, 0], sizes = [384, 384], strides = [1, 1]} : vector<432x384xf32> to vector<384x384xf32>
    %c1_27 = arith.constant 1 : index
    %c0_28 = arith.constant 0 : index
    %c0_29 = arith.constant 0 : index
    %65 = vector.load %arg5[%c1_27, %c0_28, %c0_29] : memref<3x384x128xf32, #tpu.memory_space<vmem>>, vector<1x384x128xf32>
    %66 = vector.shape_cast %65 : vector<1x384x128xf32> to vector<384x128xf32>
    %cst_30 = arith.constant dense<0.000000e+00> : vector<384x128xf32>
    %67 = tpu.matmul %64, %66, %cst_30 {dimension_numbers = #tpu.dot_dimension_numbers<[1], [0], [0], [1], [0, 0, 1, 1], [], []>} : vector<384x384xf32>, vector<384x128xf32>, vector<384x128xf32> -> vector<384x128xf32>
    %68 = arith.addf %63, %67 : vector<384x128xf32>
    %69 = vector.extract_strided_slice %57 {offsets = [48, 0], sizes = [384, 384], strides = [1, 1]} : vector<432x384xf32> to vector<384x384xf32>
    %c2_31 = arith.constant 2 : index
    %c0_32 = arith.constant 0 : index
    %c0_33 = arith.constant 0 : index
    %70 = vector.load %arg5[%c2_31, %c0_32, %c0_33] : memref<3x384x128xf32, #tpu.memory_space<vmem>>, vector<1x384x128xf32>
    %71 = vector.shape_cast %70 : vector<1x384x128xf32> to vector<384x128xf32>
    %cst_34 = arith.constant dense<0.000000e+00> : vector<384x128xf32>
    %72 = tpu.matmul %69, %71, %cst_34 {dimension_numbers = #tpu.dot_dimension_numbers<[1], [0], [0], [1], [0, 0, 1, 1], [], []>} : vector<384x384xf32>, vector<384x128xf32>, vector<384x128xf32> -> vector<384x128xf32>
    %73 = arith.addf %68, %72 : vector<384x128xf32>
    %c0_35 = arith.constant 0 : index
    %c0_36 = arith.constant 0 : index
    %74 = vector.load %arg6[%c0_35, %c0_36] : memref<1x128xf32, #tpu.memory_space<vmem>>, vector<1x128xf32>
    %75 = vector.shape_cast %74 : vector<1x128xf32> to vector<128xf32>
    %76 = vector.shape_cast %75 : vector<128xf32> to vector<1x128xf32>
    %77 = vector.broadcast %76 : vector<1x128xf32> to vector<384x128xf32>
    %78 = arith.mulf %73, %77 : vector<384x128xf32>
    %c0_37 = arith.constant 0 : index
    %c0_38 = arith.constant 0 : index
    %79 = vector.load %arg7[%c0_37, %c0_38] : memref<1x128xf32, #tpu.memory_space<vmem>>, vector<1x128xf32>
    %80 = vector.shape_cast %79 : vector<1x128xf32> to vector<128xf32>
    %81 = vector.shape_cast %80 : vector<128xf32> to vector<1x128xf32>
    %82 = vector.broadcast %81 : vector<1x128xf32> to vector<384x128xf32>
    %83 = arith.addf %78, %82 : vector<384x128xf32>
    %cst_39 = arith.constant 0.000000e+00 : f32
    %84 = vector.broadcast %cst_39 : f32 to vector<384x128xf32>
    %85 = arith.maximumf %83, %84 : vector<384x128xf32>
    %86 = vector.shape_cast %85 : vector<384x128xf32> to vector<16x24x128xf32>
    %c0_40 = arith.constant 0 : index
    %c0_41 = arith.constant 0 : index
    %c0_42 = arith.constant 0 : index
    %c0_43 = arith.constant 0 : index
    %87 = vector.load %arg8[%c0_40, %c0_41, %c0_42, %c0_43] : memref<1x16x24x128xf32, #tpu.memory_space<vmem>>, vector<1x16x24x128xf32>
    %88 = vector.shape_cast %87 : vector<1x16x24x128xf32> to vector<16x24x128xf32>
    %89 = vector.shape_cast %86 : vector<16x24x128xf32> to vector<1x16x24x128xf32>
    tpu.vector_store %arg8[%c0_40, %c0_41, %c0_42, %c0_43], %89 {strides = array<i32>} : memref<1x16x24x128xf32, #tpu.memory_space<vmem>>, vector<1x16x24x128xf32>,
    return
  }
  func.func @transform_0(%arg0: i32) -> (i32, i32, i32, i32) {
    %c0_i32 = arith.constant 0 : i32
    %c0_i32_0 = arith.constant 0 : i32
    %c0_i32_1 = arith.constant 0 : i32
    %c0_i32_2 = arith.constant 0 : i32
    return %arg0, %c0_i32, %c0_i32_0, %c0_i32_1 : i32, i32, i32, i32
  }
  func.func @transform_1(%arg0: i32) -> (i32, i32, i32) {
    %c0_i32 = arith.constant 0 : i32
    %c0_i32_0 = arith.constant 0 : i32
    %c0_i32_1 = arith.constant 0 : i32
    %c0_i32_2 = arith.constant 0 : i32
    return %c0_i32, %c0_i32_0, %c0_i32_1 : i32, i32, i32
  }
  func.func @transform_2(%arg0: i32) -> (i32, i32) {
    %c0_i32 = arith.constant 0 : i32
    %c0_i32_0 = arith.constant 0 : i32
    %c0_i32_1 = arith.constant 0 : i32
    return %c0_i32, %c0_i32_0 : i32, i32
  }
  func.func @transform_3(%arg0: i32) -> (i32, i32) {
    %c0_i32 = arith.constant 0 : i32
    %c0_i32_0 = arith.constant 0 : i32
    %c0_i32_1 = arith.constant 0 : i32
    return %c0_i32, %c0_i32_0 : i32, i32
  }
  func.func @transform_4(%arg0: i32) -> (i32, i32, i32) {
    %c0_i32 = arith.constant 0 : i32
    %c0_i32_0 = arith.constant 0 : i32
    %c0_i32_1 = arith.constant 0 : i32
    %c0_i32_2 = arith.constant 0 : i32
    return %c0_i32, %c0_i32_0, %c0_i32_1 : i32, i32, i32
  }
  func.func @transform_5(%arg0: i32) -> (i32, i32) {
    %c0_i32 = arith.constant 0 : i32
    %c0_i32_0 = arith.constant 0 : i32
    %c0_i32_1 = arith.constant 0 : i32
    return %c0_i32, %c0_i32_0 : i32, i32
  }
  func.func @transform_6(%arg0: i32) -> (i32, i32) {
    %c0_i32 = arith.constant 0 : i32
    %c0_i32_0 = arith.constant 0 : i32
    %c0_i32_1 = arith.constant 0 : i32
    return %c0_i32, %c0_i32_0 : i32, i32
  }
  func.func @transform_7(%arg0: i32) -> (i32, i32, i32, i32) {
    %c0_i32 = arith.constant 0 : i32
    %c0_i32_0 = arith.constant 0 : i32
    %c0_i32_1 = arith.constant 0 : i32
    %c0_i32_2 = arith.constant 0 : i32
    return %arg0, %c0_i32, %c0_i32_0, %c0_i32_1 : i32, i32, i32, i32
  }
}

</mosaic_0001>

<llo_original>
// kernel: tpu_custom_call.1
$region0: #{tpu_custom_call.1}
  #allocation0 [shape = 'u32[]', space=smem, size = 0x4, offset = 0x4, fixed_abs, tag = 'smem constant byte address 0x4 - core index']
  #allocation1 [shape = 'u32[144,128]{1,0:T(1,128)}', space=vmem, size = 0x12000, scoped, tag = 'internal scratch']
  %s0 = inlined_call_operand.hbm [shape: f32[2,21,24,128], index: 0, kind: input, shape index: {}]
  %s1 = inlined_call_operand.hbm [shape: f32[3,384,128], index: 1, kind: input, shape index: {}]
  %s2 = inlined_call_operand.vmem [shape: f32[1,128], index: 2, kind: input, shape index: {}]
  %s3 = inlined_call_operand.vmem [shape: f32[1,128], index: 3, kind: input, shape index: {}]
  %s4 = inlined_call_operand.hbm [shape: f32[3,384,128], index: 4, kind: input, shape index: {}]
  %s5 = inlined_call_operand.vmem [shape: f32[1,128], index: 5, kind: input, shape index: {}]
  %s6 = inlined_call_operand.vmem [shape: f32[1,128], index: 6, kind: input, shape index: {}]
  %s7 = inlined_call_operand.hbm [shape: f32[2,16,24,128], index: 7, kind: output, shape index: {}]
  %s8 = sld [smem:[#allocation0]]
  $region73: #{tpu_custom_call.1} parent=0
    _
  %s10 = ssub.s32 1, %s8
  %s11 = scalar_select 0, %s10, %s8
  $region1: #{tpu_custom_call.1} parent=0
    #allocation2 [shape = 'u8[516096]{0}', space=vmem, size = 0x7e000, scoped, tag = 'input window, operand 0']
    #allocation3 [shape = 's32[2]{0}', space=sflag, size = 0x8, scoped, tag = 'scoped memory for tpu_custom_call.1']
    #allocation4 [shape = 's32[2]{0}', space=sflag, size = 0x8, scoped, tag = 'scoped memory for tpu_custom_call.1']
    #allocation5 [shape = 'u8[589824]{0}', space=vmem, size = 0x90000, scoped, tag = 'input window, operand 1, single buffered']
    #allocation6 [shape = 's32[1]{0}', space=sflag, size = 0x4, scoped, tag = 'scoped memory for tpu_custom_call.1']
    #allocation7 [shape = 'u8[589824]{0}', space=vmem, size = 0x90000, scoped, tag = 'input window, operand 4, single buffered']
    #allocation8 [shape = 'u8[393216]{0}', space=vmem, size = 0x60000, scoped, tag = 'output window, operand 0']
    %12 = vsyncpa [#allocation3], 0
    %s13 = scalar_lea.sflag [#allocation3], 1
    %14 = vsyncpa %s13, 0
    %15 = vsyncpa [#allocation6], 0
    %16 = vsyncpa [#allocation4], 0
    %s17 = scalar_lea.sflag [#allocation4], 1
    %18 = vsyncpa %s17, 0
    loop: start=0, step=1, limit=4
    $region2: #{tpu_custom_call.1} parent=1 // loop_pre_header
      _
    $region3: #{tpu_custom_call.1} parent=1 // loop_header
      %s20 = sphi 0, %s24
      %p21 = scmp.ge.s32.totalorder %s20, 4
      %s30 = sphi 0, %s32
      %s33 = sphi 0, %s30
      %s34 = sphi 0, %s33
      %s50 = sphi 0, %s34
      %s54 = sphi 0, %s54
      %s56 = sphi 0, %s54
      %s57 = sphi 0, %s56
      %s71 = sphi 0, %s57
      %s75 = sphi 0, %s75
      %s77 = sphi 0, %s75
      %s78 = sphi 0, %s77
      %s92 = sphi 0, %s78
      %s96 = sphi 0, %s96
      %s98 = sphi 0, %s96
      %s99 = sphi 0, %s98
      %s113 = sphi 0, %s99
      %s117 = sphi 0, %s117
      %s119 = sphi 0, %s117
      %s120 = sphi 0, %s119
      %s134 = sphi 0, %s120
      %s138 = sphi 0, %s138
      %s140 = sphi 0, %s138
      %s141 = sphi 0, %s140
      %s155 = sphi 0, %s141
      %s159 = sphi 0, %s159
      %s161 = sphi 0, %s159
      %s162 = sphi 0, %s161
      %s176 = sphi 0, %s162
      %s182 = sphi 0, %s184
      %s185 = sphi 0, %s182
      %s186 = sphi 0, %s185
      %s202 = sphi 0, %s186
    $region4: #{tpu_custom_call.1} parent=1 // loop_header_branch
      %23 = sbr.rel (%p21) target = $region8
    $region5: #{tpu_custom_call.1} parent=1 // loop_body
      %s25 = ssub.s32 %s20, 1
      %s26 = ssub.s32 %s20, 2
      %s27 = sadd.s32 %s20, 1
      %s28 = ssub.s32 %s20, %s27
      %p29 = scmp.eq.s32.totalorder %s28, 0
      %s31 = sadd.s32 %s30, 1
      %s32 = scalar_select %p29, %s30, %s31
      %p35 = pneg %p29
      %p36 = scmp.eq.s32.totalorder %s20, 1
      %p37 = por %p35, %p36
      %p38 = scmp.ne.s32.totalorder %s30, %s33
      %p39 = scmp.eq.s32.totalorder %s20, 0
      %p40 = por %p38, %p39
      %p41 = scmp.ne.s32.totalorder %s30, %s33
      %p42 = scmp.eq.s32.totalorder %s25, 1
      %p43 = por %p41, %p42
      %p44 = scmp.ne.s32.totalorder %s33, %s34
      %p45 = scmp.eq.s32.totalorder %s25, 0
      %p46 = por %p44, %p45
      %p47 = scmp.ne.s32.totalorder %s33, %s34
      %p48 = scmp.eq.s32.totalorder %s26, 1
      %p49 = por %p47, %p48
      %p51 = scmp.ne.s32.totalorder %s34, %s50
      %p52 = scmp.eq.s32.totalorder %s26, 0
      %p53 = por %p51, %p52
      %s55 = sadd.s32 %s54, 1
      %p58 = scmp.eq.s32.totalorder %s20, 1
      %p59 = scmp.ne.s32.totalorder %s54, %s56
      %p60 = scmp.eq.s32.totalorder %s20, 0
      %p61 = por %p59, %p60
      %p62 = scmp.ne.s32.totalorder %s54, %s56
      %p63 = scmp.eq.s32.totalorder %s25, 1
      %p64 = por %p62, %p63
      %p65 = scmp.ne.s32.totalorder %s56, %s57
      %p66 = scmp.eq.s32.totalorder %s25, 0
      %p67 = por %p65, %p66
      %p68 = scmp.ne.s32.totalorder %s56, %s57
      %p69 = scmp.eq.s32.totalorder %s26, 1
      %p70 = por %p68, %p69
      %p72 = scmp.ne.s32.totalorder %s57, %s71
      %p73 = scmp.eq.s32.totalorder %s26, 0
      %p74 = por %p72, %p73
      %s76 = sadd.s32 %s75, 1
      %p79 = scmp.eq.s32.totalorder %s20, 1
      %p80 = scmp.ne.s32.totalorder %s75, %s77
      %p81 = scmp.eq.s32.totalorder %s20, 0
      %p82 = por %p80, %p81
      %p83 = scmp.ne.s32.totalorder %s75, %s77
      %p84 = scmp.eq.s32.totalorder %s25, 1
      %p85 = por %p83, %p84
      %p86 = scmp.ne.s32.totalorder %s77, %s78
      %p87 = scmp.eq.s32.totalorder %s25, 0
      %p88 = por %p86, %p87
      %p89 = scmp.ne.s32.totalorder %s77, %s78
      %p90 = scmp.eq.s32.totalorder %s26, 1
      %p91 = por %p89, %p90
      %p93 = scmp.ne.s32.totalorder %s78, %s92
      %p94 = scmp.eq.s32.totalorder %s26, 0
      %p95 = por %p93, %p94
      %s97 = sadd.s32 %s96, 1
      %p100 = scmp.eq.s32.totalorder %s20, 1
      %p101 = scmp.ne.s32.totalorder %s96, %s98
      %p102 = scmp.eq.s32.totalorder %s20, 0
      %p103 = por %p101, %p102
      %p104 = scmp.ne.s32.totalorder %s96, %s98
      %p105 = scmp.eq.s32.totalorder %s25, 1
      %p106 = por %p104, %p105
      %p107 = scmp.ne.s32.totalorder %s98, %s99
      %p108 = scmp.eq.s32.totalorder %s25, 0
      %p109 = por %p107, %p108
      %p110 = scmp.ne.s32.totalorder %s98, %s99
      %p111 = scmp.eq.s32.totalorder %s26, 1
      %p112 = por %p110, %p111
      %p114 = scmp.ne.s32.totalorder %s99, %s113
      %p115 = scmp.eq.s32.totalorder %s26, 0
      %p116 = por %p114, %p115
      %s118 = sadd.s32 %s117, 1
      %p121 = scmp.eq.s32.totalorder %s20, 1
      %p122 = scmp.ne.s32.totalorder %s117, %s119
      %p123 = scmp.eq.s32.totalorder %s20, 0
      %p124 = por %p122, %p123
      %p125 = scmp.ne.s32.totalorder %s117, %s119
      %p126 = scmp.eq.s32.totalorder %s25, 1
      %p127 = por %p125, %p126
      %p128 = scmp.ne.s32.totalorder %s119, %s120
      %p129 = scmp.eq.s32.totalorder %s25, 0
      %p130 = por %p128, %p129
      %p131 = scmp.ne.s32.totalorder %s119, %s120
      %p132 = scmp.eq.s32.totalorder %s26, 1
      %p133 = por %p131, %p132
      %p135 = scmp.ne.s32.totalorder %s120, %s134
      %p136 = scmp.eq.s32.totalorder %s26, 0
      %p137 = por %p135, %p136
      %s139 = sadd.s32 %s138, 1
      %p142 = scmp.eq.s32.totalorder %s20, 1
      %p143 = scmp.ne.s32.totalorder %s138, %s140
      %p144 = scmp.eq.s32.totalorder %s20, 0
      %p145 = por %p143, %p144
      %p146 = scmp.ne.s32.totalorder %s138, %s140
      %p147 = scmp.eq.s32.totalorder %s25, 1
      %p148 = por %p146, %p147
      %p149 = scmp.ne.s32.totalorder %s140, %s141
      %p150 = scmp.eq.s32.totalorder %s25, 0
      %p151 = por %p149, %p150
      %p152 = scmp.ne.s32.totalorder %s140, %s141
      %p153 = scmp.eq.s32.totalorder %s26, 1
      %p154 = por %p152, %p153
      %p156 = scmp.ne.s32.totalorder %s141, %s155
      %p157 = scmp.eq.s32.totalorder %s26, 0
      %p158 = por %p156, %p157
      %s160 = sadd.s32 %s159, 1
      %p163 = scmp.eq.s32.totalorder %s20, 1
      %p164 = scmp.ne.s32.totalorder %s159, %s161
      %p165 = scmp.eq.s32.totalorder %s20, 0
      %p166 = por %p164, %p165
      %p167 = scmp.ne.s32.totalorder %s159, %s161
      %p168 = scmp.eq.s32.totalorder %s25, 1
      %p169 = por %p167, %p168
      %p170 = scmp.ne.s32.totalorder %s161, %s162
      %p171 = scmp.eq.s32.totalorder %s25, 0
      %p172 = por %p170, %p171
      %p173 = scmp.ne.s32.totalorder %s161, %s162
      %p174 = scmp.eq.s32.totalorder %s26, 1
      %p175 = por %p173, %p174
      %p177 = scmp.ne.s32.totalorder %s162, %s176
      %p178 = scmp.eq.s32.totalorder %s26, 0
      %p179 = por %p177, %p178
      %s180 = ssub.s32 %s20, %s27
      %p181 = scmp.eq.s32.totalorder %s180, 0
      %s183 = sadd.s32 %s182, 1
      %s184 = scalar_select %p181, %s182, %s183
      %p187 = pneg %p181
      %p188 = scmp.eq.s32.totalorder %s20, 1
      %p189 = por %p187, %p188
      %p190 = scmp.ne.s32.totalorder %s182, %s185
      %p191 = scmp.eq.s32.totalorder %s20, 0
      %p192 = por %p190, %p191
      %p193 = scmp.ne.s32.totalorder %s182, %s185
      %p194 = scmp.eq.s32.totalorder %s25, 1
      %p195 = por %p193, %p194
      %p196 = scmp.ne.s32.totalorder %s185, %s186
      %p197 = scmp.eq.s32.totalorder %s25, 0
      %p198 = por %p196, %p197
      %p199 = scmp.ne.s32.totalorder %s185, %s186
      %p200 = scmp.eq.s32.totalorder %s26, 1
      %p201 = por %p199, %p200
      %p203 = scmp.ne.s32.totalorder %s186, %s202
      %p204 = scmp.eq.s32.totalorder %s26, 0
      %p205 = por %p203, %p204
      %p206 = scmp.le.s32.totalorder 1, %s20
      %p207 = scmp.lt.s32.totalorder %s20, 3
      %p208 = pnand %p206, %p207
      %p209 = pneg %p208
      // Predicated region
      $region9: #{tpu_custom_call.1} parent=5 // pred_check
        _
      $region10: #{tpu_custom_call.1} parent=5 // pred_check_branch
        %211 = sbr.rel (%p208) target = $region12
      $region11: #{tpu_custom_call.1} parent=5 // pred_region
        %s212 = ssub.s32 %s20, 1
        // Predicated region
        $region13: #{tpu_custom_call.1} parent=11 // pred_check
          %p213 = pneg %p67
        $region14: #{tpu_custom_call.1} parent=11 // pred_check_branch
          %215 = sbr.rel (%p213) target = $region16
        $region15: #{tpu_custom_call.1} parent=11 // pred_region
          %s217 = ssub.s32 18432, 18432
          %218 = vsyncadd [#allocation6], %s217
          %s219 = sshll.u32 [#allocation5], 4
          %s220 = int_to_ptr.vmem [resolvable:$true] %s219
          %225 = dma.hbm_to_vmem [thread:$0]  %s1, 18432, %s220, [#allocation6], 128, 128, 8
        $region16: #{tpu_custom_call.1} parent=11 // pred_fallthru
          _
        // Predicated region
        $region17: #{tpu_custom_call.1} parent=11 // pred_check
          %p226 = pneg %p88
        $region18: #{tpu_custom_call.1} parent=11 // pred_check_branch
          %228 = sbr.rel (%p226) target = $region20
        $region19: #{tpu_custom_call.1} parent=11 // pred_region
          _
        $region20: #{tpu_custom_call.1} parent=11 // pred_fallthru
          _
        // Predicated region
        $region21: #{tpu_custom_call.1} parent=11 // pred_check
          %p229 = pneg %p109
        $region22: #{tpu_custom_call.1} parent=11 // pred_check_branch
          %231 = sbr.rel (%p229) target = $region24
        $region23: #{tpu_custom_call.1} parent=11 // pred_region
          _
        $region24: #{tpu_custom_call.1} parent=11 // pred_fallthru
          _
        // Predicated region
        $region25: #{tpu_custom_call.1} parent=11 // pred_check
          %p232 = pneg %p130
        $region26: #{tpu_custom_call.1} parent=11 // pred_check_branch
          %234 = sbr.rel (%p232) target = $region28
        $region27: #{tpu_custom_call.1} parent=11 // pred_region
          %s236 = ssub.s32 18432, 18432
          %237 = vsyncadd [#allocation6], %s236
          %s238 = sshll.u32 [#allocation7], 4
          %s239 = int_to_ptr.vmem [resolvable:$true] %s238
          %244 = dma.hbm_to_vmem [thread:$0]  %s4, 18432, %s239, [#allocation6], 128, 128, 8
        $region28: #{tpu_custom_call.1} parent=11 // pred_fallthru
          _
        // Predicated region
        $region29: #{tpu_custom_call.1} parent=11 // pred_check
          %p245 = pneg %p151
        $region30: #{tpu_custom_call.1} parent=11 // pred_check_branch
          %247 = sbr.rel (%p245) target = $region32
        $region31: #{tpu_custom_call.1} parent=11 // pred_region
          _
        $region32: #{tpu_custom_call.1} parent=11 // pred_fallthru
          _
        // Predicated region
        $region33: #{tpu_custom_call.1} parent=11 // pred_check
          %p248 = pneg %p172
        $region34: #{tpu_custom_call.1} parent=11 // pred_check_branch
          %250 = sbr.rel (%p248) target = $region36
        $region35: #{tpu_custom_call.1} parent=11 // pred_region
          _
        $region36: #{tpu_custom_call.1} parent=11 // pred_fallthru
          _
      $region12: #{tpu_custom_call.1} parent=5 // pred_fallthru
        _
      %p251 = scmp.lt.s32.totalorder %s20, 2
      // Predicated region
      $region37: #{tpu_custom_call.1} parent=5 // pred_check
        %p252 = pneg %p251
      $region38: #{tpu_custom_call.1} parent=5 // pred_check_branch
        %254 = sbr.rel (%p252) target = $region40
      $region39: #{tpu_custom_call.1} parent=5 // pred_region
        // Predicated region
        $region41: #{tpu_custom_call.1} parent=39 // pred_check
          %p255 = pneg %p40
        $region42: #{tpu_custom_call.1} parent=39 // pred_check_branch
          %257 = sbr.rel (%p255) target = $region44
        $region43: #{tpu_custom_call.1} parent=39 // pred_region
          %s258 = sand.u32 %s30, 1
          %s259 = scalar_lea.sflag [#allocation3], %s258
          %s260 = sand.u32 %s30, 1
          %s261 = smul.addr %s260, 504
          %s262 = scalar_lea.vmem [#allocation2], %s261
          %s264 = ssub.s32 8064, 8064
          %265 = vsyncadd %s259, %s264
          %s266 = smul.addr %s20, 63
          %s267 = smul.addr %s266, 128
          %s268 = scalar_lea.hbm %s0, %s267
          %s269 = sshll.u32 %s262, 4
          %s270 = int_to_ptr.vmem [resolvable:$true] %s269
          %275 = dma.hbm_to_vmem [thread:$0]  %s268, 8064, %s270, %s259, 128, 128, 8
        $region44: #{tpu_custom_call.1} parent=39 // pred_fallthru
          _
      $region40: #{tpu_custom_call.1} parent=5 // pred_fallthru
        _
      %p276 = scmp.le.s32.totalorder 1, %s20
      %p277 = scmp.lt.s32.totalorder %s20, 3
      %p278 = pnand %p276, %p277
      %p279 = pneg %p278
      // Predicated region
      $region45: #{tpu_custom_call.1} parent=5 // pred_check
        _
      $region46: #{tpu_custom_call.1} parent=5 // pred_check_branch
        %281 = sbr.rel (%p278) target = $region48
      $region47: #{tpu_custom_call.1} parent=5 // pred_region
        %s282 = ssub.s32 %s20, 1
        %s283 = sand.u32 %s33, 1
        %s284 = scalar_lea.sflag [#allocation3], %s283
        %s285 = sand.u32 %s33, 1
        %s286 = smul.addr %s285, 504
        %s287 = scalar_lea.vmem [#allocation2], %s286
        // Predicated region
        $region49: #{tpu_custom_call.1} parent=47 // pred_check
          %p288 = pneg %p46
        $region50: #{tpu_custom_call.1} parent=47 // pred_check_branch
          %290 = sbr.rel (%p288) target = $region52
        $region51: #{tpu_custom_call.1} parent=47 // pred_region
          %291 = dma.done %s284, 8064
        $region52: #{tpu_custom_call.1} parent=47 // pred_fallthru
          _
        // Predicated region
        $region53: #{tpu_custom_call.1} parent=47 // pred_check
          %p292 = pneg %p67
        $region54: #{tpu_custom_call.1} parent=47 // pred_check_branch
          %294 = sbr.rel (%p292) target = $region56
        $region55: #{tpu_custom_call.1} parent=47 // pred_region
          %295 = dma.done [#allocation6], 18432
        $region56: #{tpu_custom_call.1} parent=47 // pred_fallthru
          _
        // Predicated region
        $region57: #{tpu_custom_call.1} parent=47 // pred_check
          %p296 = pneg %p130
        $region58: #{tpu_custom_call.1} parent=47 // pred_check_branch
          %298 = sbr.rel (%p296) target = $region60
        $region59: #{tpu_custom_call.1} parent=47 // pred_region
          %299 = dma.done [#allocation6], 18432
        $region60: #{tpu_custom_call.1} parent=47 // pred_fallthru
          _
        %s300 = sand.u32 %s33, 1
        %s301 = scalar_lea.sflag [#allocation3], %s300
        %s302 = sand.u32 %s33, 1
        %s303 = smul.addr %s302, 504
        %s304 = scalar_lea.vmem [#allocation2], %s303
        %p305 = pneg %p46
        %p306 = pneg %p43
        %p307 = pneg %p67
        %p308 = pneg %p64
        %p309 = pneg %p88
        %p310 = pneg %p85
        %p311 = pneg %p109
        %p312 = pneg %p106
        %p313 = pneg %p130
        %p314 = pneg %p127
        %p315 = pneg %p151
        %p316 = pneg %p148
        %p317 = pneg %p172
        %p318 = pneg %p169
        %p319 = pneg %p198
        %p320 = pneg %p195
        %s321 = sand.u32 %s185, 1
        %s322 = scalar_lea.sflag [#allocation4], %s321
        %s323 = sand.u32 %s185, 1
        %s324 = smul.addr %s323, 384
        %s325 = scalar_lea.vmem [#allocation8], %s324
        %v326 = vld [vmem:[%s287] sm:$0xff]
        %v327 = vld [vmem:[%s287 + $0x8] sm:$0xff]
        %v328 = vld [vmem:[%s287 + $0x10] sm:$0xff]
        %v329 = vld [vmem:[%s287 + $0x18] sm:$0xff]
        %v330 = vld [vmem:[%s287 + $0x20] sm:$0xff]
        %v331 = vld [vmem:[%s287 + $0x28] sm:$0xff]
        %v332 = vld [vmem:[%s287 + $0x30] sm:$0xff]
        %v333 = vld [vmem:[%s287 + $0x38] sm:$0xff]
        %v334 = vld [vmem:[%s287 + $0x40] sm:$0xff]
        %v335 = vld [vmem:[%s287 + $0x48] sm:$0xff]
        %v336 = vld [vmem:[%s287 + $0x50] sm:$0xff]
        %v337 = vld [vmem:[%s287 + $0x58] sm:$0xff]
        %v338 = vld [vmem:[%s287 + $0x60] sm:$0xff]
        %v339 = vld [vmem:[%s287 + $0x68] sm:$0xff]
        %v340 = vld [vmem:[%s287 + $0x70] sm:$0xff]
        %v341 = vld [vmem:[%s287 + $0x78] sm:$0xff]
        %v342 = vld [vmem:[%s287 + $0x80] sm:$0xff]
        %v343 = vld [vmem:[%s287 + $0x88] sm:$0xff]
        %v344 = vld [vmem:[%s287 + $0x90] sm:$0xff]
        %v345 = vld [vmem:[%s287 + $0x98] sm:$0xff]
        %v346 = vld [vmem:[%s287 + $0xa0] sm:$0xff]
        %v347 = vld [vmem:[%s287 + $0xa8] sm:$0xff]
        %v348 = vld [vmem:[%s287 + $0xb0] sm:$0xff]
        %v349 = vld [vmem:[%s287 + $0xb8] sm:$0xff]
        %v350 = vld [vmem:[%s287 + $0xc0] sm:$0xff]
        %v351 = vld [vmem:[%s287 + $0xc8] sm:$0xff]
        %v352 = vld [vmem:[%s287 + $0xd0] sm:$0xff]
        %v353 = vld [vmem:[%s287 + $0xd8] sm:$0xff]
        %v354 = vld [vmem:[%s287 + $0xe0] sm:$0xff]
        %v355 = vld [vmem:[%s287 + $0xe8] sm:$0xff]
        %v356 = vld [vmem:[%s287 + $0xf0] sm:$0xff]
        %v357 = vld [vmem:[%s287 + $0xf8] sm:$0xff]
        %v358 = vld [vmem:[%s287 + $0x100] sm:$0xff]
        %v359 = vld [vmem:[%s287 + $0x108] sm:$0xff]
        %v360 = vld [vmem:[%s287 + $0x110] sm:$0xff]
        %v361 = vld [vmem:[%s287 + $0x118] sm:$0xff]
        %v362 = vld [vmem:[%s287 + $0x120] sm:$0xff]
        %v363 = vld [vmem:[%s287 + $0x128] sm:$0xff]
        %v364 = vld [vmem:[%s287 + $0x130] sm:$0xff]
        %v365 = vld [vmem:[%s287 + $0x138] sm:$0xff]
        %v366 = vld [vmem:[%s287 + $0x140] sm:$0xff]
        %v367 = vld [vmem:[%s287 + $0x148] sm:$0xff]
        %v368 = vld [vmem:[%s287 + $0x150] sm:$0xff]
        %v369 = vld [vmem:[%s287 + $0x158] sm:$0xff]
        %v370 = vld [vmem:[%s287 + $0x160] sm:$0xff]
        %v371 = vld [vmem:[%s287 + $0x168] sm:$0xff]
        %v372 = vld [vmem:[%s287 + $0x170] sm:$0xff]
        %v373 = vld [vmem:[%s287 + $0x178] sm:$0xff]
        %v374 = vld [vmem:[%s287 + $0x180] sm:$0xff]
        %v375 = vld [vmem:[%s287 + $0x188] sm:$0xff]
        %v376 = vld [vmem:[%s287 + $0x190] sm:$0xff]
        %v377 = vld [vmem:[%s287 + $0x198] sm:$0xff]
        %v378 = vld [vmem:[%s287 + $0x1a0] sm:$0xff]
        %v379 = vld [vmem:[%s287 + $0x1a8] sm:$0xff]
        %v380 = vld [vmem:[%s287 + $0x1b0] sm:$0xff]
        %v381 = vld [vmem:[%s287 + $0x1b8] sm:$0xff]
        %v382 = vld [vmem:[%s287 + $0x1c0] sm:$0xff]
        %v383 = vld [vmem:[%s287 + $0x1c8] sm:$0xff]
        %v384 = vld [vmem:[%s287 + $0x1d0] sm:$0xff]
        %v385 = vld [vmem:[%s287 + $0x1d8] sm:$0xff]
        %v386 = vld [vmem:[%s287 + $0x1e0] sm:$0xff]
        %vm448 = vcmask 1046528
        %v449 = vrot.slane %v326, 1
        %v450 = vrot.slane %v327, 1
        %v451 = vsel %vm448, %v449, %v450
        %v452 = vrot.slane %v328, 1
        %v453 = vsel %vm448, %v450, %v452
        %v454 = vrot.slane %v329, 1
        %v455 = vsel %vm448, %v452, %v454
        %v456 = vrot.slane %v330, 1
        %v457 = vsel %vm448, %v454, %v456
        %v458 = vrot.slane %v331, 1
        %v459 = vsel %vm448, %v456, %v458
        %v460 = vrot.slane %v332, 1
        %v461 = vsel %vm448, %v458, %v460
        %v462 = vrot.slane %v333, 1
        %v463 = vsel %vm448, %v460, %v462
        %v464 = vrot.slane %v334, 1
        %v465 = vsel %vm448, %v462, %v464
        %v466 = vrot.slane %v335, 1
        %v467 = vsel %vm448, %v464, %v466
        %v468 = vrot.slane %v336, 1
        %v469 = vsel %vm448, %v466, %v468
        %v470 = vrot.slane %v337, 1
        %v471 = vsel %vm448, %v468, %v470
        %v472 = vrot.slane %v338, 1
        %v473 = vsel %vm448, %v470, %v472
        %v474 = vrot.slane %v339, 1
        %v475 = vsel %vm448, %v472, %v474
        %v476 = vrot.slane %v340, 1
        %v477 = vsel %vm448, %v474, %v476
        %v478 = vrot.slane %v341, 1
        %v479 = vsel %vm448, %v476, %v478
        %v480 = vrot.slane %v342, 1
        %v481 = vsel %vm448, %v478, %v480
        %v482 = vrot.slane %v343, 1
        %v483 = vsel %vm448, %v480, %v482
        %v484 = vrot.slane %v344, 1
        %v485 = vsel %vm448, %v482, %v484
        %v486 = vrot.slane %v345, 1
        %v487 = vsel %vm448, %v484, %v486
        %v488 = vrot.slane %v346, 1
        %v489 = vsel %vm448, %v486, %v488
        %v490 = vrot.slane %v347, 1
        %v491 = vsel %vm448, %v488, %v490
        %v492 = vrot.slane %v348, 1
        %v493 = vsel %vm448, %v490, %v492
        %v494 = vrot.slane %v349, 1
        %v495 = vsel %vm448, %v492, %v494
        %v496 = vrot.slane %v350, 1
        %v497 = vsel %vm448, %v494, %v496
        %v498 = vrot.slane %v351, 1
        %v499 = vsel %vm448, %v496, %v498
        %v500 = vrot.slane %v352, 1
        %v501 = vsel %vm448, %v498, %v500
        %v502 = vrot.slane %v353, 1
        %v503 = vsel %vm448, %v500, %v502
        %v504 = vrot.slane %v354, 1
        %v505 = vsel %vm448, %v502, %v504
        %v506 = vrot.slane %v355, 1
        %v507 = vsel %vm448, %v504, %v506
        %v508 = vrot.slane %v356, 1
        %v509 = vsel %vm448, %v506, %v508
        %v510 = vrot.slane %v357, 1
        %v511 = vsel %vm448, %v508, %v510
        %v512 = vrot.slane %v358, 1
        %v513 = vsel %vm448, %v510, %v512
        %v514 = vrot.slane %v359, 1
        %v515 = vsel %vm448, %v512, %v514
        %v516 = vrot.slane %v360, 1
        %v517 = vsel %vm448, %v514, %v516
        %v518 = vrot.slane %v361, 1
        %v519 = vsel %vm448, %v516, %v518
        %v520 = vrot.slane %v362, 1
        %v521 = vsel %vm448, %v518, %v520
        %v522 = vrot.slane %v363, 1
        %v523 = vsel %vm448, %v520, %v522
        %v524 = vrot.slane %v364, 1
        %v525 = vsel %vm448, %v522, %v524
        %v526 = vrot.slane %v365, 1
        %v527 = vsel %vm448, %v524, %v526
        %v528 = vrot.slane %v366, 1
        %v529 = vsel %vm448, %v526, %v528
        %v530 = vrot.slane %v367, 1
        %v531 = vsel %vm448, %v528, %v530
        %v532 = vrot.slane %v368, 1
        %v533 = vsel %vm448, %v530, %v532
        %v534 = vrot.slane %v369, 1
        %v535 = vsel %vm448, %v532, %v534
        %v536 = vrot.slane %v370, 1
        %v537 = vsel %vm448, %v534, %v536
        %v538 = vrot.slane %v371, 1
        %v539 = vsel %vm448, %v536, %v538
        %v540 = vrot.slane %v372, 1
        %v541 = vsel %vm448, %v538, %v540
        %v542 = vrot.slane %v373, 1
        %v543 = vsel %vm448, %v540, %v542
        %v544 = vrot.slane %v374, 1
        %v545 = vsel %vm448, %v542, %v544
        %v546 = vrot.slane %v375, 1
        %v547 = vsel %vm448, %v544, %v546
        %v548 = vrot.slane %v376, 1
        %v549 = vsel %vm448, %v546, %v548
        %v550 = vrot.slane %v377, 1
        %v551 = vsel %vm448, %v548, %v550
        %v552 = vrot.slane %v378, 1
        %v553 = vsel %vm448, %v550, %v552
        %v554 = vrot.slane %v379, 1
        %v555 = vsel %vm448, %v552, %v554
        %v556 = vrot.slane %v380, 1
        %v557 = vsel %vm448, %v554, %v556
        %v558 = vrot.slane %v381, 1
        %v559 = vsel %vm448, %v556, %v558
        %v560 = vrot.slane %v382, 1
        %v561 = vsel %vm448, %v558, %v560
        %v562 = vrot.slane %v383, 1
        %v563 = vsel %vm448, %v560, %v562
        %v564 = vrot.slane %v384, 1
        %v565 = vsel %vm448, %v562, %v564
        %v566 = vrot.slane %v385, 1
        %v567 = vsel %vm448, %v564, %v566
        %v568 = vrot.slane %v386, 1
        %v569 = vsel %vm448, %v566, %v568
        %vm630 = vcmask 1045504
        %v631 = vrot.slane %v326, 2
        %v632 = vrot.slane %v327, 2
        %v633 = vsel %vm630, %v631, %v632
        %v634 = vrot.slane %v328, 2
        %v635 = vsel %vm630, %v632, %v634
        %v636 = vrot.slane %v329, 2
        %v637 = vsel %vm630, %v634, %v636
        %v638 = vrot.slane %v330, 2
        %v639 = vsel %vm630, %v636, %v638
        %v640 = vrot.slane %v331, 2
        %v641 = vsel %vm630, %v638, %v640
        %v642 = vrot.slane %v332, 2
        %v643 = vsel %vm630, %v640, %v642
        %v644 = vrot.slane %v333, 2
        %v645 = vsel %vm630, %v642, %v644
        %v646 = vrot.slane %v334, 2
        %v647 = vsel %vm630, %v644, %v646
        %v648 = vrot.slane %v335, 2
        %v649 = vsel %vm630, %v646, %v648
        %v650 = vrot.slane %v336, 2
        %v651 = vsel %vm630, %v648, %v650
        %v652 = vrot.slane %v337, 2
        %v653 = vsel %vm630, %v650, %v652
        %v654 = vrot.slane %v338, 2
        %v655 = vsel %vm630, %v652, %v654
        %v656 = vrot.slane %v339, 2
        %v657 = vsel %vm630, %v654, %v656
        %v658 = vrot.slane %v340, 2
        %v659 = vsel %vm630, %v656, %v658
        %v660 = vrot.slane %v341, 2
        %v661 = vsel %vm630, %v658, %v660
        %v662 = vrot.slane %v342, 2
        %v663 = vsel %vm630, %v660, %v662
        %v664 = vrot.slane %v343, 2
        %v665 = vsel %vm630, %v662, %v664
        %v666 = vrot.slane %v344, 2
        %v667 = vsel %vm630, %v664, %v666
        %v668 = vrot.slane %v345, 2
        %v669 = vsel %vm630, %v666, %v668
        %v670 = vrot.slane %v346, 2
        %v671 = vsel %vm630, %v668, %v670
        %v672 = vrot.slane %v347, 2
        %v673 = vsel %vm630, %v670, %v672
        %v674 = vrot.slane %v348, 2
        %v675 = vsel %vm630, %v672, %v674
        %v676 = vrot.slane %v349, 2
        %v677 = vsel %vm630, %v674, %v676
        %v678 = vrot.slane %v350, 2
        %v679 = vsel %vm630, %v676, %v678
        %v680 = vrot.slane %v351, 2
        %v681 = vsel %vm630, %v678, %v680
        %v682 = vrot.slane %v352, 2
        %v683 = vsel %vm630, %v680, %v682
        %v684 = vrot.slane %v353, 2
        %v685 = vsel %vm630, %v682, %v684
        %v686 = vrot.slane %v354, 2
        %v687 = vsel %vm630, %v684, %v686
        %v688 = vrot.slane %v355, 2
        %v689 = vsel %vm630, %v686, %v688
        %v690 = vrot.slane %v356, 2
        %v691 = vsel %vm630, %v688, %v690
        %v692 = vrot.slane %v357, 2
        %v693 = vsel %vm630, %v690, %v692
        %v694 = vrot.slane %v358, 2
        %v695 = vsel %vm630, %v692, %v694
        %v696 = vrot.slane %v359, 2
        %v697 = vsel %vm630, %v694, %v696
        %v698 = vrot.slane %v360, 2
        %v699 = vsel %vm630, %v696, %v698
        %v700 = vrot.slane %v361, 2
        %v701 = vsel %vm630, %v698, %v700
        %v702 = vrot.slane %v362, 2
        %v703 = vsel %vm630, %v700, %v702
        %v704 = vrot.slane %v363, 2
        %v705 = vsel %vm630, %v702, %v704
        %v706 = vrot.slane %v364, 2
        %v707 = vsel %vm630, %v704, %v706
        %v708 = vrot.slane %v365, 2
        %v709 = vsel %vm630, %v706, %v708
        %v710 = vrot.slane %v366, 2
        %v711 = vsel %vm630, %v708, %v710
        %v712 = vrot.slane %v367, 2
        %v713 = vsel %vm630, %v710, %v712
        %v714 = vrot.slane %v368, 2
        %v715 = vsel %vm630, %v712, %v714
        %v716 = vrot.slane %v369, 2
        %v717 = vsel %vm630, %v714, %v716
        %v718 = vrot.slane %v370, 2
        %v719 = vsel %vm630, %v716, %v718
        %v720 = vrot.slane %v371, 2
        %v721 = vsel %vm630, %v718, %v720
        %v722 = vrot.slane %v372, 2
        %v723 = vsel %vm630, %v720, %v722
        %v724 = vrot.slane %v373, 2
        %v725 = vsel %vm630, %v722, %v724
        %v726 = vrot.slane %v374, 2
        %v727 = vsel %vm630, %v724, %v726
        %v728 = vrot.slane %v375, 2
        %v729 = vsel %vm630, %v726, %v728
        %v730 = vrot.slane %v376, 2
        %v731 = vsel %vm630, %v728, %v730
        %v732 = vrot.slane %v377, 2
        %v733 = vsel %vm630, %v730, %v732
        %v734 = vrot.slane %v378, 2
        %v735 = vsel %vm630, %v732, %v734
        %v736 = vrot.slane %v379, 2
        %v737 = vsel %vm630, %v734, %v736
        %v738 = vrot.slane %v380, 2
        %v739 = vsel %vm630, %v736, %v738
        %v740 = vrot.slane %v381, 2
        %v741 = vsel %vm630, %v738, %v740
        %v742 = vrot.slane %v382, 2
        %v743 = vsel %vm630, %v740, %v742
        %v744 = vrot.slane %v383, 2
        %v745 = vsel %vm630, %v742, %v744
        %v746 = vrot.slane %v384, 2
        %v747 = vsel %vm630, %v744, %v746
        %v748 = vrot.slane %v385, 2
        %v749 = vsel %vm630, %v746, %v748
        %v750 = vrot.slane %v386, 2
        %v751 = vsel %vm630, %v748, %v750
        %v812 = vld [vmem:[#allocation5] sm:$0xff]
        %v813 = vld [vmem:[#allocation5 + $0x8] sm:$0xff]
        %v814 = vld [vmem:[#allocation5 + $0x10] sm:$0xff]
        %v815 = vld [vmem:[#allocation5 + $0x18] sm:$0xff]
        %v816 = vld [vmem:[#allocation5 + $0x20] sm:$0xff]
        %v817 = vld [vmem:[#allocation5 + $0x28] sm:$0xff]
        %v818 = vld [vmem:[#allocation5 + $0x30] sm:$0xff]
        %v819 = vld [vmem:[#allocation5 + $0x38] sm:$0xff]
        %v820 = vld [vmem:[#allocation5 + $0x40] sm:$0xff]
        %v821 = vld [vmem:[#allocation5 + $0x48] sm:$0xff]
        %v822 = vld [vmem:[#allocation5 + $0x50] sm:$0xff]
        %v823 = vld [vmem:[#allocation5 + $0x58] sm:$0xff]
        %v824 = vld [vmem:[#allocation5 + $0x60] sm:$0xff]
        %v825 = vld [vmem:[#allocation5 + $0x68] sm:$0xff]
        %v826 = vld [vmem:[#allocation5 + $0x70] sm:$0xff]
        %v827 = vld [vmem:[#allocation5 + $0x78] sm:$0xff]
        %v828 = vld [vmem:[#allocation5 + $0x80] sm:$0xff]
        %v829 = vld [vmem:[#allocation5 + $0x88] sm:$0xff]
        %v830 = vld [vmem:[#allocation5 + $0x90] sm:$0xff]
        %v831 = vld [vmem:[#allocation5 + $0x98] sm:$0xff]
        %v832 = vld [vmem:[#allocation5 + $0xa0] sm:$0xff]
        %v833 = vld [vmem:[#allocation5 + $0xa8] sm:$0xff]
        %v834 = vld [vmem:[#allocation5 + $0xb0] sm:$0xff]
        %v835 = vld [vmem:[#allocation5 + $0xb8] sm:$0xff]
        %v836 = vld [vmem:[#allocation5 + $0xc0] sm:$0xff]
        %v837 = vld [vmem:[#allocation5 + $0xc8] sm:$0xff]
        %v838 = vld [vmem:[#allocation5 + $0xd0] sm:$0xff]
        %v839 = vld [vmem:[#allocation5 + $0xd8] sm:$0xff]
        %v840 = vld [vmem:[#allocation5 + $0xe0] sm:$0xff]
        %v841 = vld [vmem:[#allocation5 + $0xe8] sm:$0xff]
        %v842 = vld [vmem:[#allocation5 + $0xf0] sm:$0xff]
        %v843 = vld [vmem:[#allocation5 + $0xf8] sm:$0xff]
        %v844 = vld [vmem:[#allocation5 + $0x100] sm:$0xff]
        %v845 = vld [vmem:[#allocation5 + $0x108] sm:$0xff]
        %v846 = vld [vmem:[#allocation5 + $0x110] sm:$0xff]
        %v847 = vld [vmem:[#allocation5 + $0x118] sm:$0xff]
        %v848 = vld [vmem:[#allocation5 + $0x120] sm:$0xff]
        %v849 = vld [vmem:[#allocation5 + $0x128] sm:$0xff]
        %v850 = vld [vmem:[#allocation5 + $0x130] sm:$0xff]
        %v851 = vld [vmem:[#allocation5 + $0x138] sm:$0xff]
        %v852 = vld [vmem:[#allocation5 + $0x140] sm:$0xff]
        %v853 = vld [vmem:[#allocation5 + $0x148] sm:$0xff]
        %v854 = vld [vmem:[#allocation5 + $0x150] sm:$0xff]
        %v855 = vld [vmem:[#allocation5 + $0x158] sm:$0xff]
        %v856 = vld [vmem:[#allocation5 + $0x160] sm:$0xff]
        %v857 = vld [vmem:[#allocation5 + $0x168] sm:$0xff]
        %v858 = vld [vmem:[#allocation5 + $0x170] sm:$0xff]
        %v859 = vld [vmem:[#allocation5 + $0x178] sm:$0xff]
        %s860 = scalar_lea.vmem [#allocation5], 384
        %v861 = vld [vmem:[%s860] sm:$0xff]
        %v862 = vld [vmem:[%s860 + $0x8] sm:$0xff]
        %v863 = vld [vmem:[%s860 + $0x10] sm:$0xff]
        %v864 = vld [vmem:[%s860 + $0x18] sm:$0xff]
        %v865 = vld [vmem:[%s860 + $0x20] sm:$0xff]
        %v866 = vld [vmem:[%s860 + $0x28] sm:$0xff]
        %v867 = vld [vmem:[%s860 + $0x30] sm:$0xff]
        %v868 = vld [vmem:[%s860 + $0x38] sm:$0xff]
        %v869 = vld [vmem:[%s860 + $0x40] sm:$0xff]
        %v870 = vld [vmem:[%s860 + $0x48] sm:$0xff]
        %v871 = vld [vmem:[%s860 + $0x50] sm:$0xff]
        %v872 = vld [vmem:[%s860 + $0x58] sm:$0xff]
        %v873 = vld [vmem:[%s860 + $0x60] sm:$0xff]
        %v874 = vld [vmem:[%s860 + $0x68] sm:$0xff]
        %v875 = vld [vmem:[%s860 + $0x70] sm:$0xff]
        %v876 = vld [vmem:[%s860 + $0x78] sm:$0xff]
        %v877 = vld [vmem:[%s860 + $0x80] sm:$0xff]
        %v878 = vld [vmem:[%s860 + $0x88] sm:$0xff]
        %v879 = vld [vmem:[%s860 + $0x90] sm:$0xff]
        %v880 = vld [vmem:[%s860 + $0x98] sm:$0xff]
        %v881 = vld [vmem:[%s860 + $0xa0] sm:$0xff]
        %v882 = vld [vmem:[%s860 + $0xa8] sm:$0xff]
        %v883 = vld [vmem:[%s860 + $0xb0] sm:$0xff]
        %v884 = vld [vmem:[%s860 + $0xb8] sm:$0xff]
        %v885 = vld [vmem:[%s860 + $0xc0] sm:$0xff]
        %v886 = vld [vmem:[%s860 + $0xc8] sm:$0xff]
        %v887 = vld [vmem:[%s860 + $0xd0] sm:$0xff]
        %v888 = vld [vmem:[%s860 + $0xd8] sm:$0xff]
        %v889 = vld [vmem:[%s860 + $0xe0] sm:$0xff]
        %v890 = vld [vmem:[%s860 + $0xe8] sm:$0xff]
        %v891 = vld [vmem:[%s860 + $0xf0] sm:$0xff]
        %v892 = vld [vmem:[%s860 + $0xf8] sm:$0xff]
        %v893 = vld [vmem:[%s860 + $0x100] sm:$0xff]
        %v894 = vld [vmem:[%s860 + $0x108] sm:$0xff]
        %v895 = vld [vmem:[%s860 + $0x110] sm:$0xff]
        %v896 = vld [vmem:[%s860 + $0x118] sm:$0xff]
        %v897 = vld [vmem:[%s860 + $0x120] sm:$0xff]
        %v898 = vld [vmem:[%s860 + $0x128] sm:$0xff]
        %v899 = vld [vmem:[%s860 + $0x130] sm:$0xff]
        %v900 = vld [vmem:[%s860 + $0x138] sm:$0xff]
        %v901 = vld [vmem:[%s860 + $0x140] sm:$0xff]
        %v902 = vld [vmem:[%s860 + $0x148] sm:$0xff]
        %v903 = vld [vmem:[%s860 + $0x150] sm:$0xff]
        %v904 = vld [vmem:[%s860 + $0x158] sm:$0xff]
        %v905 = vld [vmem:[%s860 + $0x160] sm:$0xff]
        %v906 = vld [vmem:[%s860 + $0x168] sm:$0xff]
        %v907 = vld [vmem:[%s860 + $0x170] sm:$0xff]
        %v908 = vld [vmem:[%s860 + $0x178] sm:$0xff]
        %909 = vmatprep.subr.mxu0 0.0
        %910 = vmatpush1.msra.mxu0 %v861
        %911 = vmatprep.subr.mxu0 0.0
        %912 = vmatpush1.msra.mxu0 %v862
        %913 = vmatprep.subr.mxu0 0.0
        %914 = vmatpush1.msra.mxu0 %v863
        %915 = vmatprep.subr.mxu0 0.0
        %916 = vmatpush1.msra.mxu0 %v864
        %917 = vmatprep.subr.mxu0 0.0
        %918 = vmatpush1.msra.mxu0 %v865
        %919 = vmatprep.subr.mxu0 0.0
        %920 = vmatpush1.msra.mxu0 %v866
        %921 = vmatprep.subr.mxu0 0.0
        %922 = vmatpush1.msra.mxu0 %v867
        %923 = vmatprep.subr.mxu0 0.0
        %924 = vmatpush1.msra.mxu0 %v868
        %925 = vmatprep.subr.mxu0 0.0
        %926 = vmatpush1.msra.mxu0 %v869
        %927 = vmatprep.subr.mxu0 0.0
        %928 = vmatpush1.msra.mxu0 %v870
        %929 = vmatprep.subr.mxu0 0.0
        %930 = vmatpush1.msra.mxu0 %v871
        %931 = vmatprep.subr.mxu0 0.0
        %932 = vmatpush1.msra.mxu0 %v872
        %933 = vmatprep.subr.mxu0 0.0
        %934 = vmatpush1.msra.mxu0 %v873
        %935 = vmatprep.subr.mxu0 0.0
        %936 = vmatpush1.msra.mxu0 %v874
        %937 = vmatprep.subr.mxu0 0.0
        %938 = vmatpush1.msra.mxu0 %v875
        %939 = vmatprep.subr.mxu0 0.0
        %940 = vmatpush1.msra.mxu0 %v876
        %941 = vmatprep.subr.mxu0 0.0
        %942 = vmatpush1.msra.mxu0 %v877
        %943 = vmatprep.subr.mxu0 0.0
        %944 = vmatpush1.msra.mxu0 %v878
        %945 = vmatprep.subr.mxu0 0.0
        %946 = vmatpush1.msra.mxu0 %v879
        %947 = vmatprep.subr.mxu0 0.0
        %948 = vmatpush1.msra.mxu0 %v880
        %949 = vmatprep.subr.mxu0 0.0
        %950 = vmatpush1.msra.mxu0 %v881
        %951 = vmatprep.subr.mxu0 0.0
        %952 = vmatpush1.msra.mxu0 %v882
        %953 = vmatprep.subr.mxu0 0.0
        %954 = vmatpush1.msra.mxu0 %v883
        %955 = vmatprep.subr.mxu0 0.0
        %956 = vmatpush1.msra.mxu0 %v884
        %957 = vmatprep.subr.mxu0 0.0
        %958 = vmatpush1.msra.mxu0 %v885
        %959 = vmatprep.subr.mxu0 0.0
        %960 = vmatpush1.msra.mxu0 %v886
        %961 = vmatprep.subr.mxu0 0.0
        %962 = vmatpush1.msra.mxu0 %v887
        %963 = vmatprep.subr.mxu0 0.0
        %964 = vmatpush1.msra.mxu0 %v888
        %965 = vmatprep.subr.mxu0 0.0
        %966 = vmatpush1.msra.mxu0 %v889
        %967 = vmatprep.subr.mxu0 0.0
        %968 = vmatpush1.msra.mxu0 %v890
        %969 = vmatprep.subr.mxu0 0.0
        %970 = vmatpush1.msra.mxu0 %v891
        %971 = vmatprep.subr.mxu0 0.0
        %972 = vmatpush1.msra.mxu0 %v892
        %973 = vmatprep.mubr.f32.mxu0 %v457
        %974 = vmatmul.mubr.f32.gmra.mrb[0].mxu0 %v329
        %v975 = vpop.f32.mrb[0].mxu0
        %v976 = vadd.f32 0.0, %v975
        %v977 = vpop.f32.mrb[0].mxu0
        %978 = vmatprep.mubr.f32.mxu0 %v459
        %979 = vmatmul.mubr.f32.gmra.mrb[0].mxu0 %v330
        %v980 = vpop.f32.mrb[0].mxu0
        %v981 = vadd.f32 0.0, %v980
        %v982 = vpop.f32.mrb[0].mxu0
        %983 = vmatprep.mubr.f32.mxu0 %v461
        %984 = vmatmul.mubr.f32.gmra.mrb[0].mxu0 %v331
        %v985 = vpop.f32.mrb[0].mxu0
        %v986 = vadd.f32 0.0, %v985
        %v987 = vpop.f32.mrb[0].mxu0
        %988 = vmatprep.mubr.f32.mxu0 %v463
        %989 = vmatmul.mubr.f32.gmra.mrb[0].mxu0 %v332
        %v990 = vpop.f32.mrb[0].mxu0
        %v991 = vadd.f32 0.0, %v990
        %v992 = vpop.f32.mrb[0].mxu0
        %993 = vmatprep.mubr.f32.mxu0 %v465
        %994 = vmatmul.mubr.f32.gmra.mrb[0].mxu0 %v333
        %v995 = vpop.f32.mrb[0].mxu0
        %v996 = vadd.f32 0.0, %v995
        %v997 = vpop.f32.mrb[0].mxu0
        %998 = vmatprep.mubr.f32.mxu0 %v467
        %999 = vmatmul.mubr.f32.gmra.mrb[0].mxu0 %v334
        %v1000 = vpop.f32.mrb[0].mxu0
        %v1001 = vadd.f32 0.0, %v1000
        %v1002 = vpop.f32.mrb[0].mxu0
        %1003 = vmatprep.mubr.f32.mxu0 %v469
        %1004 = vmatmul.mubr.f32.gmra.mrb[0].mxu0 %v335
        %v1005 = vpop.f32.mrb[0].mxu0
        %v1006 = vadd.f32 0.0, %v1005
        %v1007 = vpop.f32.mrb[0].mxu0
        %1008 = vmatprep.mubr.f32.mxu0 %v471
        %1009 = vmatmul.mubr.f32.gmra.mrb[0].mxu0 %v336
        %v1010 = vpop.f32.mrb[0].mxu0
        %v1011 = vadd.f32 0.0, %v1010
        %v1012 = vpop.f32.mrb[0].mxu0
        %1013 = vmatprep.mubr.f32.mxu0 %v473
        %1014 = vmatmul.mubr.f32.gmra.mrb[0].mxu0 %v337
        %v1015 = vpop.f32.mrb[0].mxu0
        %v1016 = vadd.f32 0.0, %v1015
        %v1017 = vpop.f32.mrb[0].mxu0
        %1018 = vmatprep.mubr.f32.mxu0 %v475
        %1019 = vmatmul.mubr.f32.gmra.mrb[0].mxu0 %v338
        %v1020 = vpop.f32.mrb[0].mxu0
        %v1021 = vadd.f32 0.0, %v1020
        %v1022 = vpop.f32.mrb[0].mxu0
        %1023 = vmatprep.mubr.f32.mxu0 %v477
        %1024 = vmatmul.mubr.f32.gmra.mrb[0].mxu0 %v339
        %v1025 = vpop.f32.mrb[0].mxu0
        %v1026 = vadd.f32 0.0, %v1025
        %v1027 = vpop.f32.mrb[0].mxu0
        %1028 = vmatprep.mubr.f32.mxu0 %v479
        %1029 = vmatmul.mubr.f32.gmra.mrb[0].mxu0 %v340
        %v1030 = vpop.f32.mrb[0].mxu0
        %v1031 = vadd.f32 0.0, %v1030
        %v1032 = vpop.f32.mrb[0].mxu0
        %1033 = vmatprep.mubr.f32.mxu0 %v481
        %1034 = vmatmul.mubr.f32.gmra.mrb[0].mxu0 %v341
        %v1035 = vpop.f32.mrb[0].mxu0
        %v1036 = vadd.f32 0.0, %v1035
        %v1037 = vpop.f32.mrb[0].mxu0
        %1038 = vmatprep.mubr.f32.mxu0 %v483
        %1039 = vmatmul.mubr.f32.gmra.mrb[0].mxu0 %v342
        %v1040 = vpop.f32.mrb[0].mxu0
        %v1041 = vadd.f32 0.0, %v1040
        %v1042 = vpop.f32.mrb[0].mxu0
        %1043 = vmatprep.mubr.f32.mxu0 %v485
        %1044 = vmatmul.mubr.f32.gmra.mrb[0].mxu0 %v343
        %v1045 = vpop.f32.mrb[0].mxu0
        %v1046 = vadd.f32 0.0, %v1045
        %v1047 = vpop.f32.mrb[0].mxu0
        %1048 = vmatprep.mubr.f32.mxu0 %v487
        %1049 = vmatmul.mubr.f32.gmra.mrb[0].mxu0 %v344
        %v1050 = vpop.f32.mrb[0].mxu0
        %v1051 = vadd.f32 0.0, %v1050
        %v1052 = vpop.f32.mrb[0].mxu0
        %1053 = vmatprep.mubr.f32.mxu0 %v489
        %1054 = vmatmul.mubr.f32.gmra.mrb[0].mxu0 %v345
        %v1055 = vpop.f32.mrb[0].mxu0
        %v1056 = vadd.f32 0.0, %v1055
        %v1057 = vpop.f32.mrb[0].mxu0
        %1058 = vmatprep.mubr.f32.mxu0 %v491
        %1059 = vmatmul.mubr.f32.gmra.mrb[0].mxu0 %v346
        %v1060 = vpop.f32.mrb[0].mxu0
        %v1061 = vadd.f32 0.0, %v1060
        %v1062 = vpop.f32.mrb[0].mxu0
        %1063 = vmatprep.mubr.f32.mxu0 %v493
        %1064 = vmatmul.mubr.f32.gmra.mrb[0].mxu0 %v347
        %v1065 = vpop.f32.mrb[0].mxu0
        %v1066 = vadd.f32 0.0, %v1065
        %v1067 = vpop.f32.mrb[0].mxu0
        %1068 = vmatprep.mubr.f32.mxu0 %v495
        %1069 = vmatmul.mubr.f32.gmra.mrb[0].mxu0 %v348
        %v1070 = vpop.f32.mrb[0].mxu0
        %v1071 = vadd.f32 0.0, %v1070
        %v1072 = vpop.f32.mrb[0].mxu0
        %1073 = vmatprep.mubr.f32.mxu0 %v497
        %1074 = vmatmul.mubr.f32.gmra.mrb[0].mxu0 %v349
        %v1075 = vpop.f32.mrb[0].mxu0
        %v1076 = vadd.f32 0.0, %v1075
        %v1077 = vpop.f32.mrb[0].mxu0
        %1078 = vmatprep.mubr.f32.mxu0 %v499
        %1079 = vmatmul.mubr.f32.gmra.mrb[0].mxu0 %v350
        %v1080 = vpop.f32.mrb[0].mxu0
        %v1081 = vadd.f32 0.0, %v1080
        %v1082 = vpop.f32.mrb[0].mxu0
        %1083 = vmatprep.mubr.f32.mxu0 %v501
        %1084 = vmatmul.mubr.f32.gmra.mrb[0].mxu0 %v351
        %v1085 = vpop.f32.mrb[0].mxu0
        %v1086 = vadd.f32 0.0, %v1085
        %v1087 = vpop.f32.mrb[0].mxu0
        %1088 = vmatprep.mubr.f32.mxu0 %v503
        %1089 = vmatmul.mubr.f32.gmra.mrb[0].mxu0 %v352
        %v1090 = vpop.f32.mrb[0].mxu0
        %v1091 = vadd.f32 0.0, %v1090
        %v1092 = vpop.f32.mrb[0].mxu0
        %1093 = vmatprep.mubr.f32.mxu0 %v505
        %1094 = vmatmul.mubr.f32.gmra.mrb[0].mxu0 %v353
        %v1095 = vpop.f32.mrb[0].mxu0
        %v1096 = vadd.f32 0.0, %v1095
        %v1097 = vpop.f32.mrb[0].mxu0
        %1098 = vmatprep.mubr.f32.mxu0 %v507
        %1099 = vmatmul.mubr.f32.gmra.mrb[0].mxu0 %v354
        %v1100 = vpop.f32.mrb[0].mxu0
        %v1101 = vadd.f32 0.0, %v1100
        %v1102 = vpop.f32.mrb[0].mxu0
        %1103 = vmatprep.mubr.f32.mxu0 %v509
        %1104 = vmatmul.mubr.f32.gmra.mrb[0].mxu0 %v355
        %v1105 = vpop.f32.mrb[0].mxu0
        %v1106 = vadd.f32 0.0, %v1105
        %v1107 = vpop.f32.mrb[0].mxu0
        %1108 = vmatprep.mubr.f32.mxu0 %v511
        %1109 = vmatmul.mubr.f32.gmra.mrb[0].mxu0 %v356
        %v1110 = vpop.f32.mrb[0].mxu0
        %v1111 = vadd.f32 0.0, %v1110
        %v1112 = vpop.f32.mrb[0].mxu0
        %1113 = vmatprep.mubr.f32.mxu0 %v513
        %1114 = vmatmul.mubr.f32.gmra.mrb[0].mxu0 %v357
        %v1115 = vpop.f32.mrb[0].mxu0
        %v1116 = vadd.f32 0.0, %v1115
        %v1117 = vpop.f32.mrb[0].mxu0
        %1118 = vmatprep.mubr.f32.mxu0 %v515
        %1119 = vmatmul.mubr.f32.gmra.mrb[0].mxu0 %v358
        %v1120 = vpop.f32.mrb[0].mxu0
        %v1121 = vadd.f32 0.0, %v1120
        %v1122 = vpop.f32.mrb[0].mxu0
        %1123 = vmatprep.mubr.f32.mxu0 %v517
        %1124 = vmatmul.mubr.f32.gmra.mrb[0].mxu0 %v359
        %v1125 = vpop.f32.mrb[0].mxu0
        %v1126 = vadd.f32 0.0, %v1125
        %v1127 = vpop.f32.mrb[0].mxu0
        %1128 = vmatprep.mubr.f32.mxu0 %v519
        %1129 = vmatmul.mubr.f32.gmra.mrb[0].mxu0 %v360
        %v1130 = vpop.f32.mrb[0].mxu0
        %v1131 = vadd.f32 0.0, %v1130
        %v1132 = vpop.f32.mrb[0].mxu0
        %1133 = vmatprep.mubr.f32.mxu0 %v521
        %1134 = vmatmul.mubr.f32.gmra.mrb[0].mxu0 %v361
        %v1135 = vpop.f32.mrb[0].mxu0
        %v1136 = vadd.f32 0.0, %v1135
        %v1137 = vpop.f32.mrb[0].mxu0
        %1138 = vmatprep.mubr.f32.mxu0 %v523
        %1139 = vmatmul.mubr.f32.gmra.mrb[0].mxu0 %v362
        %v1140 = vpop.f32.mrb[0].mxu0
        %v1141 = vadd.f32 0.0, %v1140
        %v1142 = vpop.f32.mrb[0].mxu0
        %1143 = vmatprep.mubr.f32.mxu0 %v525
        %1144 = vmatmul.mubr.f32.gmra.mrb[0].mxu0 %v363
        %v1145 = vpop.f32.mrb[0].mxu0
        %v1146 = vadd.f32 0.0, %v1145
        %v1147 = vpop.f32.mrb[0].mxu0
        %1148 = vmatprep.mubr.f32.mxu0 %v527
        %1149 = vmatmul.mubr.f32.gmra.mrb[0].mxu0 %v364
        %v1150 = vpop.f32.mrb[0].mxu0
        %v1151 = vadd.f32 0.0, %v1150
        %v1152 = vpop.f32.mrb[0].mxu0
        %1153 = vmatprep.mubr.f32.mxu0 %v529
        %1154 = vmatmul.mubr.f32.gmra.mrb[0].mxu0 %v365
        %v1155 = vpop.f32.mrb[0].mxu0
        %v1156 = vadd.f32 0.0, %v1155
        %v1157 = vpop.f32.mrb[0].mxu0
        %1158 = vmatprep.mubr.f32.mxu0 %v531
        %1159 = vmatmul.mubr.f32.gmra.mrb[0].mxu0 %v366
        %v1160 = vpop.f32.mrb[0].mxu0
        %v1161 = vadd.f32 0.0, %v1160
        %v1162 = vpop.f32.mrb[0].mxu0
        %1163 = vmatprep.mubr.f32.mxu0 %v533
        %1164 = vmatmul.mubr.f32.gmra.mrb[0].mxu0 %v367
        %v1165 = vpop.f32.mrb[0].mxu0
        %v1166 = vadd.f32 0.0, %v1165
        %v1167 = vpop.f32.mrb[0].mxu0
        %1168 = vmatprep.mubr.f32.mxu0 %v535
        %1169 = vmatmul.mubr.f32.gmra.mrb[0].mxu0 %v368
        %v1170 = vpop.f32.mrb[0].mxu0
        %v1171 = vadd.f32 0.0, %v1170
        %v1172 = vpop.f32.mrb[0].mxu0
        %1173 = vmatprep.mubr.f32.mxu0 %v537
        %1174 = vmatmul.mubr.f32.gmra.mrb[0].mxu0 %v369
        %v1175 = vpop.f32.mrb[0].mxu0
        %v1176 = vadd.f32 0.0, %v1175
        %v1177 = vpop.f32.mrb[0].mxu0
        %1178 = vmatprep.mubr.f32.mxu0 %v539
        %1179 = vmatmul.mubr.f32.gmra.mrb[0].mxu0 %v370
        %v1180 = vpop.f32.mrb[0].mxu0
        %v1181 = vadd.f32 0.0, %v1180
        %v1182 = vpop.f32.mrb[0].mxu0
        %1183 = vmatprep.mubr.f32.mxu0 %v541
        %1184 = vmatmul.mubr.f32.gmra.mrb[0].mxu0 %v371
        %v1185 = vpop.f32.mrb[0].mxu0
        %v1186 = vadd.f32 0.0, %v1185
        %v1187 = vpop.f32.mrb[0].mxu0
        %1188 = vmatprep.mubr.f32.mxu0 %v543
        %1189 = vmatmul.mubr.f32.gmra.mrb[0].mxu0 %v372
        %v1190 = vpop.f32.mrb[0].mxu0
        %v1191 = vadd.f32 0.0, %v1190
        %v1192 = vpop.f32.mrb[0].mxu0
        %1193 = vmatprep.mubr.f32.mxu0 %v545
        %1194 = vmatmul.mubr.f32.gmra.mrb[0].mxu0 %v373
        %v1195 = vpop.f32.mrb[0].mxu0
        %v1196 = vadd.f32 0.0, %v1195
        %v1197 = vpop.f32.mrb[0].mxu0
        %1198 = vmatprep.mubr.f32.mxu0 %v547
        %1199 = vmatmul.mubr.f32.gmra.mrb[0].mxu0 %v374
        %v1200 = vpop.f32.mrb[0].mxu0
        %v1201 = vadd.f32 0.0, %v1200
        %v1202 = vpop.f32.mrb[0].mxu0
        %1203 = vmatprep.mubr.f32.mxu0 %v549
        %1204 = vmatmul.mubr.f32.gmra.mrb[0].mxu0 %v375
        %v1205 = vpop.f32.mrb[0].mxu0
        %v1206 = vadd.f32 0.0, %v1205
        %v1207 = vpop.f32.mrb[0].mxu0
        %1208 = vmatprep.mubr.f32.mxu0 %v551
        %1209 = vmatmul.mubr.f32.gmra.mrb[0].mxu0 %v376
        %v1210 = vpop.f32.mrb[0].mxu0
        %v1211 = vadd.f32 0.0, %v1210
        %v1212 = vpop.f32.mrb[0].mxu0
        %1213 = vmatprep.mubr.f32.mxu0 %v553
        %1214 = vmatmul.mubr.f32.gmra.mrb[0].mxu0 %v377
        %v1215 = vpop.f32.mrb[0].mxu0
        %v1216 = vadd.f32 0.0, %v1215
        %v1217 = vpop.f32.mrb[0].mxu0
        %1218 = vmatprep.mubr.f32.mxu0 %v555
        %1219 = vmatmul.mubr.f32.gmra.mrb[0].mxu0 %v378
        %v1220 = vpop.f32.mrb[0].mxu0
        %v1221 = vadd.f32 0.0, %v1220
        %v1222 = vpop.f32.mrb[0].mxu0
        %1223 = vmatprep.mubr.f32.mxu0 %v557
        %1224 = vmatmul.mubr.f32.gmra.mrb[0].mxu0 %v379
        %v1225 = vpop.f32.mrb[0].mxu0
        %v1226 = vadd.f32 0.0, %v1225
        %v1227 = vpop.f32.mrb[0].mxu0
        %1228 = vmatprep.mubr.f32.mxu0 %v559
        %1229 = vmatmul.mubr.f32.gmra.mrb[0].mxu0 %v380
        %v1230 = vpop.f32.mrb[0].mxu0
        %v1231 = vadd.f32 0.0, %v1230
        %v1232 = vpop.f32.mrb[0].mxu0
        %1233 = vmatprep.mubr.f32.mxu0 %v561
        %1234 = vmatmul.mubr.f32.gmra.mrb[0].mxu0 %v381
        %v1235 = vpop.f32.mrb[0].mxu0
        %v1236 = vadd.f32 0.0, %v1235
        %v1237 = vpop.f32.mrb[0].mxu0
        %1238 = vmatprep.mubr.f32.mxu0 %v563
        %1239 = vmatmul.mubr.f32.gmra.mrb[0].mxu0 %v382
        %v1240 = vpop.f32.mrb[0].mxu0
        %v1241 = vadd.f32 0.0, %v1240
        %v1242 = vpop.f32.mrb[0].mxu0
        %1243 = vdwg.mxu0
        %1244 = vmatprep.subr.mxu0 0.0
        %1245 = vmatpush1.msra.mxu0 %v893
        %1246 = vmatprep.subr.mxu0 0.0
        %1247 = vmatpush1.msra.mxu0 %v894
        %1248 = vmatprep.subr.mxu0 0.0
        %1249 = vmatpush1.msra.mxu0 %v895
        %1250 = vmatprep.subr.mxu0 0.0
        %1251 = vmatpush1.msra.mxu0 %v896
        %1252 = vmatprep.subr.mxu0 0.0
        %1253 = vmatpush1.msra.mxu0 %v897
        %1254 = vmatprep.subr.mxu0 0.0
        %1255 = vmatpush1.msra.mxu0 %v898
        %1256 = vmatprep.subr.mxu0 0.0
        %1257 = vmatpush1.msra.mxu0 %v899
        %1258 = vmatprep.subr.mxu0 0.0
        %1259 = vmatpush1.msra.mxu0 %v900
        %1260 = vmatprep.subr.mxu0 0.0
        %1261 = vmatpush1.msra.mxu0 %v901
        %1262 = vmatprep.subr.mxu0 0.0
        %1263 = vmatpush1.msra.mxu0 %v902
        %1264 = vmatprep.subr.mxu0 0.0
        %1265 = vmatpush1.msra.mxu0 %v903
        %1266 = vmatprep.subr.mxu0 0.0
        %1267 = vmatpush1.msra.mxu0 %v904
        %1268 = vmatprep.subr.mxu0 0.0
        %1269 = vmatpush1.msra.mxu0 %v905
        %1270 = vmatprep.subr.mxu0 0.0
        %1271 = vmatpush1.msra.mxu0 %v906
        %1272 = vmatprep.subr.mxu0 0.0
        %1273 = vmatpush1.msra.mxu0 %v907
        %1274 = vmatprep.subr.mxu0 0.0
        %1275 = vmatpush1.msra.mxu0 %v908
        %1276 = vmatprep.subr.mxu0 0.0
        %1277 = vmatpush1.msra.mxu0 0.0
        %1278 = vmatprep.subr.mxu0 0.0
        %1279 = vmatpush1.msra.mxu0 0.0
        %1280 = vmatprep.subr.mxu0 0.0
        %1281 = vmatpush1.msra.mxu0 0.0
        %1282 = vmatprep.subr.mxu0 0.0
        %1283 = vmatpush1.msra.mxu0 0.0
        %1284 = vmatprep.subr.mxu0 0.0
        %1285 = vmatpush1.msra.mxu0 0.0
        %1286 = vmatprep.subr.mxu0 0.0
        %1287 = vmatpush1.msra.mxu0 0.0
        %1288 = vmatprep.subr.mxu0 0.0
        %1289 = vmatpush1.msra.mxu0 0.0
        %1290 = vmatprep.subr.mxu0 0.0
        %1291 = vmatpush1.msra.mxu0 0.0
        %1292 = vmatprep.subr.mxu0 0.0
        %1293 = vmatpush1.msra.mxu0 0.0
        %1294 = vmatprep.subr.mxu0 0.0
        %1295 = vmatpush1.msra.mxu0 0.0
        %1296 = vmatprep.subr.mxu0 0.0
        %1297 = vmatpush1.msra.mxu0 0.0
        %1298 = vmatprep.subr.mxu0 0.0
        %1299 = vmatpush1.msra.mxu0 0.0
        %1300 = vmatprep.subr.mxu0 0.0
        %1301 = vmatpush1.msra.mxu0 0.0
        %1302 = vmatprep.subr.mxu0 0.0
        %1303 = vmatpush1.msra.mxu0 0.0
        %1304 = vmatprep.subr.mxu0 0.0
        %1305 = vmatpush1.msra.mxu0 0.0
        %1306 = vmatprep.subr.mxu0 0.0
        %1307 = vmatpush1.msra.mxu0 0.0
        %1308 = vmatprep.mubr.f32.mxu0 0.0
        %1309 = vmatmul.mubr.f32.gmra.mrb[0].mxu0 %v639
        %v1310 = vpop.f32.mrb[0].mxu0
        %v1311 = vadd.f32 %v976, %v1310
        %v1312 = vpop.f32.mrb[0].mxu0
        %1313 = vmatprep.mubr.f32.mxu0 0.0
        %1314 = vmatmul.mubr.f32.gmra.mrb[0].mxu0 %v641
        %v1315 = vpop.f32.mrb[0].mxu0
        %v1316 = vadd.f32 %v981, %v1315
        %v1317 = vpop.f32.mrb[0].mxu0
        %1318 = vmatprep.mubr.f32.mxu0 0.0
        %1319 = vmatmul.mubr.f32.gmra.mrb[0].mxu0 %v643
        %v1320 = vpop.f32.mrb[0].mxu0
        %v1321 = vadd.f32 %v986, %v1320
        %v1322 = vpop.f32.mrb[0].mxu0
        %1323 = vmatprep.mubr.f32.mxu0 0.0
        %1324 = vmatmul.mubr.f32.gmra.mrb[0].mxu0 %v645
        %v1325 = vpop.f32.mrb[0].mxu0
        %v1326 = vadd.f32 %v991, %v1325
        %v1327 = vpop.f32.mrb[0].mxu0
        %1328 = vmatprep.mubr.f32.mxu0 0.0
        %1329 = vmatmul.mubr.f32.gmra.mrb[0].mxu0 %v647
        %v1330 = vpop.f32.mrb[0].mxu0
        %v1331 = vadd.f32 %v996, %v1330
        %v1332 = vpop.f32.mrb[0].mxu0
        %1333 = vmatprep.mubr.f32.mxu0 0.0
        %1334 = vmatmul.mubr.f32.gmra.mrb[0].mxu0 %v649
        %v1335 = vpop.f32.mrb[0].mxu0
        %v1336 = vadd.f32 %v1001, %v1335
        %v1337 = vpop.f32.mrb[0].mxu0
        %1338 = vmatprep.mubr.f32.mxu0 0.0
        %1339 = vmatmul.mubr.f32.gmra.mrb[0].mxu0 %v651
        %v1340 = vpop.f32.mrb[0].mxu0
        %v1341 = vadd.f32 %v1006, %v1340
        %v1342 = vpop.f32.mrb[0].mxu0
        %1343 = vmatprep.mubr.f32.mxu0 0.0
        %1344 = vmatmul.mubr.f32.gmra.mrb[0].mxu0 %v653
        %v1345 = vpop.f32.mrb[0].mxu0
        %v1346 = vadd.f32 %v1011, %v1345
        %v1347 = vpop.f32.mrb[0].mxu0
        %1348 = vmatprep.mubr.f32.mxu0 0.0
        %1349 = vmatmul.mubr.f32.gmra.mrb[0].mxu0 %v655
        %v1350 = vpop.f32.mrb[0].mxu0
        %v1351 = vadd.f32 %v1016, %v1350
        %v1352 = vpop.f32.mrb[0].mxu0
        %1353 = vmatprep.mubr.f32.mxu0 0.0
        %1354 = vmatmul.mubr.f32.gmra.mrb[0].mxu0 %v657
        %v1355 = vpop.f32.mrb[0].mxu0
        %v1356 = vadd.f32 %v1021, %v1355
        %v1357 = vpop.f32.mrb[0].mxu0
        %1358 = vmatprep.mubr.f32.mxu0 0.0
        %1359 = vmatmul.mubr.f32.gmra.mrb[0].mxu0 %v659
        %v1360 = vpop.f32.mrb[0].mxu0
        %v1361 = vadd.f32 %v1026, %v1360
        %v1362 = vpop.f32.mrb[0].mxu0
        %1363 = vmatprep.mubr.f32.mxu0 0.0
        %1364 = vmatmul.mubr.f32.gmra.mrb[0].mxu0 %v661
        %v1365 = vpop.f32.mrb[0].mxu0
        %v1366 = vadd.f32 %v1031, %v1365
        %v1367 = vpop.f32.mrb[0].mxu0
        %1368 = vmatprep.mubr.f32.mxu0 0.0
        %1369 = vmatmul.mubr.f32.gmra.mrb[0].mxu0 %v663
        %v1370 = vpop.f32.mrb[0].mxu0
        %v1371 = vadd.f32 %v1036, %v1370
        %v1372 = vpop.f32.mrb[0].mxu0
        %1373 = vmatprep.mubr.f32.mxu0 0.0
        %1374 = vmatmul.mubr.f32.gmra.mrb[0].mxu0 %v665
        %v1375 = vpop.f32.mrb[0].mxu0
        %v1376 = vadd.f32 %v1041, %v1375
        %v1377 = vpop.f32.mrb[0].mxu0
        %1378 = vmatprep.mubr.f32.mxu0 0.0
        %1379 = vmatmul.mubr.f32.gmra.mrb[0].mxu0 %v667
        %v1380 = vpop.f32.mrb[0].mxu0
        %v1381 = vadd.f32 %v1046, %v1380
        %v1382 = vpop.f32.mrb[0].mxu0
        %1383 = vmatprep.mubr.f32.mxu0 0.0
        %1384 = vmatmul.mubr.f32.gmra.mrb[0].mxu0 %v669
        %v1385 = vpop.f32.mrb[0].mxu0
        %v1386 = vadd.f32 %v1051, %v1385
        %v1387 = vpop.f32.mrb[0].mxu0
        %1388 = vmatprep.mubr.f32.mxu0 0.0
        %1389 = vmatmul.mubr.f32.gmra.mrb[0].mxu0 %v671
        %v1390 = vpop.f32.mrb[0].mxu0
        %v1391 = vadd.f32 %v1056, %v1390
        %v1392 = vpop.f32.mrb[0].mxu0
        %1393 = vmatprep.mubr.f32.mxu0 0.0
        %1394 = vmatmul.mubr.f32.gmra.mrb[0].mxu0 %v673
        %v1395 = vpop.f32.mrb[0].mxu0
        %v1396 = vadd.f32 %v1061, %v1395
        %v1397 = vpop.f32.mrb[0].mxu0
        %1398 = vmatprep.mubr.f32.mxu0 0.0
        %1399 = vmatmul.mubr.f32.gmra.mrb[0].mxu0 %v675
        %v1400 = vpop.f32.mrb[0].mxu0
        %v1401 = vadd.f32 %v1066, %v1400
        %v1402 = vpop.f32.mrb[0].mxu0
        %1403 = vmatprep.mubr.f32.mxu0 0.0
        %1404 = vmatmul.mubr.f32.gmra.mrb[0].mxu0 %v677
        %v1405 = vpop.f32.mrb[0].mxu0
        %v1406 = vadd.f32 %v1071, %v1405
        %v1407 = vpop.f32.mrb[0].mxu0
        %1408 = vmatprep.mubr.f32.mxu0 0.0
        %1409 = vmatmul.mubr.f32.gmra.mrb[0].mxu0 %v679
        %v1410 = vpop.f32.mrb[0].mxu0
        %v1411 = vadd.f32 %v1076, %v1410
        %v1412 = vpop.f32.mrb[0].mxu0
        %1413 = vmatprep.mubr.f32.mxu0 0.0
        %1414 = vmatmul.mubr.f32.gmra.mrb[0].mxu0 %v681
        %v1415 = vpop.f32.mrb[0].mxu0
        %v1416 = vadd.f32 %v1081, %v1415
        %v1417 = vpop.f32.mrb[0].mxu0
        %1418 = vmatprep.mubr.f32.mxu0 0.0
        %1419 = vmatmul.mubr.f32.gmra.mrb[0].mxu0 %v683
        %v1420 = vpop.f32.mrb[0].mxu0
        %v1421 = vadd.f32 %v1086, %v1420
        %v1422 = vpop.f32.mrb[0].mxu0
        %1423 = vmatprep.mubr.f32.mxu0 0.0
        %1424 = vmatmul.mubr.f32.gmra.mrb[0].mxu0 %v685
        %v1425 = vpop.f32.mrb[0].mxu0
        %v1426 = vadd.f32 %v1091, %v1425
        %v1427 = vpop.f32.mrb[0].mxu0
        %1428 = vmatprep.mubr.f32.mxu0 0.0
        %1429 = vmatmul.mubr.f32.gmra.mrb[0].mxu0 %v687
        %v1430 = vpop.f32.mrb[0].mxu0
        %v1431 = vadd.f32 %v1096, %v1430
        %v1432 = vpop.f32.mrb[0].mxu0
        %1433 = vmatprep.mubr.f32.mxu0 0.0
        %1434 = vmatmul.mubr.f32.gmra.mrb[0].mxu0 %v689
        %v1435 = vpop.f32.mrb[0].mxu0
        %v1436 = vadd.f32 %v1101, %v1435
        %v1437 = vpop.f32.mrb[0].mxu0
        %1438 = vmatprep.mubr.f32.mxu0 0.0
        %1439 = vmatmul.mubr.f32.gmra.mrb[0].mxu0 %v691
        %v1440 = vpop.f32.mrb[0].mxu0
        %v1441 = vadd.f32 %v1106, %v1440
        %v1442 = vpop.f32.mrb[0].mxu0
        %1443 = vmatprep.mubr.f32.mxu0 0.0
        %1444 = vmatmul.mubr.f32.gmra.mrb[0].mxu0 %v693
        %v1445 = vpop.f32.mrb[0].mxu0
        %v1446 = vadd.f32 %v1111, %v1445
        %v1447 = vpop.f32.mrb[0].mxu0
        %1448 = vmatprep.mubr.f32.mxu0 0.0
        %1449 = vmatmul.mubr.f32.gmra.mrb[0].mxu0 %v695
        %v1450 = vpop.f32.mrb[0].mxu0
        %v1451 = vadd.f32 %v1116, %v1450
        %v1452 = vpop.f32.mrb[0].mxu0
        %1453 = vmatprep.mubr.f32.mxu0 0.0
        %1454 = vmatmul.mubr.f32.gmra.mrb[0].mxu0 %v697
        %v1455 = vpop.f32.mrb[0].mxu0
        %v1456 = vadd.f32 %v1121, %v1455
        %v1457 = vpop.f32.mrb[0].mxu0
        %1458 = vmatprep.mubr.f32.mxu0 0.0
        %1459 = vmatmul.mubr.f32.gmra.mrb[0].mxu0 %v699
        %v1460 = vpop.f32.mrb[0].mxu0
        %v1461 = vadd.f32 %v1126, %v1460
        %v1462 = vpop.f32.mrb[0].mxu0
        %1463 = vmatprep.mubr.f32.mxu0 0.0
        %1464 = vmatmul.mubr.f32.gmra.mrb[0].mxu0 %v701
        %v1465 = vpop.f32.mrb[0].mxu0
        %v1466 = vadd.f32 %v1131, %v1465
        %v1467 = vpop.f32.mrb[0].mxu0
        %1468 = vmatprep.mubr.f32.mxu0 0.0
        %1469 = vmatmul.mubr.f32.gmra.mrb[0].mxu0 %v703
        %v1470 = vpop.f32.mrb[0].mxu0
        %v1471 = vadd.f32 %v1136, %v1470
        %v1472 = vpop.f32.mrb[0].mxu0
        %1473 = vmatprep.mubr.f32.mxu0 0.0
        %1474 = vmatmul.mubr.f32.gmra.mrb[0].mxu0 %v705
        %v1475 = vpop.f32.mrb[0].mxu0
        %v1476 = vadd.f32 %v1141, %v1475
        %v1477 = vpop.f32.mrb[0].mxu0
        %1478 = vmatprep.mubr.f32.mxu0 0.0
        %1479 = vmatmul.mubr.f32.gmra.mrb[0].mxu0 %v707
        %v1480 = vpop.f32.mrb[0].mxu0
        %v1481 = vadd.f32 %v1146, %v1480
        %v1482 = vpop.f32.mrb[0].mxu0
        %1483 = vmatprep.mubr.f32.mxu0 0.0
        %1484 = vmatmul.mubr.f32.gmra.mrb[0].mxu0 %v709
        %v1485 = vpop.f32.mrb[0].mxu0
        %v1486 = vadd.f32 %v1151, %v1485
        %v1487 = vpop.f32.mrb[0].mxu0
        %1488 = vmatprep.mubr.f32.mxu0 0.0
        %1489 = vmatmul.mubr.f32.gmra.mrb[0].mxu0 %v711
        %v1490 = vpop.f32.mrb[0].mxu0
        %v1491 = vadd.f32 %v1156, %v1490
        %v1492 = vpop.f32.mrb[0].mxu0
        %1493 = vmatprep.mubr.f32.mxu0 0.0
        %1494 = vmatmul.mubr.f32.gmra.mrb[0].mxu0 %v713
        %v1495 = vpop.f32.mrb[0].mxu0
        %v1496 = vadd.f32 %v1161, %v1495
        %v1497 = vpop.f32.mrb[0].mxu0
        %1498 = vmatprep.mubr.f32.mxu0 0.0
        %1499 = vmatmul.mubr.f32.gmra.mrb[0].mxu0 %v715
        %v1500 = vpop.f32.mrb[0].mxu0
        %v1501 = vadd.f32 %v1166, %v1500
        %v1502 = vpop.f32.mrb[0].mxu0
        %1503 = vmatprep.mubr.f32.mxu0 0.0
        %1504 = vmatmul.mubr.f32.gmra.mrb[0].mxu0 %v717
        %v1505 = vpop.f32.mrb[0].mxu0
        %v1506 = vadd.f32 %v1171, %v1505
        %v1507 = vpop.f32.mrb[0].mxu0
        %1508 = vmatprep.mubr.f32.mxu0 0.0
        %1509 = vmatmul.mubr.f32.gmra.mrb[0].mxu0 %v719
        %v1510 = vpop.f32.mrb[0].mxu0
        %v1511 = vadd.f32 %v1176, %v1510
        %v1512 = vpop.f32.mrb[0].mxu0
        %1513 = vmatprep.mubr.f32.mxu0 0.0
        %1514 = vmatmul.mubr.f32.gmra.mrb[0].mxu0 %v721
        %v1515 = vpop.f32.mrb[0].mxu0
        %v1516 = vadd.f32 %v1181, %v1515
        %v1517 = vpop.f32.mrb[0].mxu0
        %1518 = vmatprep.mubr.f32.mxu0 0.0
        %1519 = vmatmul.mubr.f32.gmra.mrb[0].mxu0 %v723
        %v1520 = vpop.f32.mrb[0].mxu0
        %v1521 = vadd.f32 %v1186, %v1520
        %v1522 = vpop.f32.mrb[0].mxu0
        %1523 = vmatprep.mubr.f32.mxu0 0.0
        %1524 = vmatmul.mubr.f32.gmra.mrb[0].mxu0 %v725
        %v1525 = vpop.f32.mrb[0].mxu0
        %v1526 = vadd.f32 %v1191, %v1525
        %v1527 = vpop.f32.mrb[0].mxu0
        %1528 = vmatprep.mubr.f32.mxu0 0.0
        %1529 = vmatmul.mubr.f32.gmra.mrb[0].mxu0 %v727
        %v1530 = vpop.f32.mrb[0].mxu0
        %v1531 = vadd.f32 %v1196, %v1530
        %v1532 = vpop.f32.mrb[0].mxu0
        %1533 = vmatprep.mubr.f32.mxu0 0.0
        %1534 = vmatmul.mubr.f32.gmra.mrb[0].mxu0 %v729
        %v1535 = vpop.f32.mrb[0].mxu0
        %v1536 = vadd.f32 %v1201, %v1535
        %v1537 = vpop.f32.mrb[0].mxu0
        %1538 = vmatprep.mubr.f32.mxu0 0.0
        %1539 = vmatmul.mubr.f32.gmra.mrb[0].mxu0 %v731
        %v1540 = vpop.f32.mrb[0].mxu0
        %v1541 = vadd.f32 %v1206, %v1540
        %v1542 = vpop.f32.mrb[0].mxu0
        %1543 = vmatprep.mubr.f32.mxu0 0.0
        %1544 = vmatmul.mubr.f32.gmra.mrb[0].mxu0 %v733
        %v1545 = vpop.f32.mrb[0].mxu0
        %v1546 = vadd.f32 %v1211, %v1545
        %v1547 = vpop.f32.mrb[0].mxu0
        %1548 = vmatprep.mubr.f32.mxu0 0.0
        %1549 = vmatmul.mubr.f32.gmra.mrb[0].mxu0 %v735
        %v1550 = vpop.f32.mrb[0].mxu0
        %v1551 = vadd.f32 %v1216, %v1550
        %v1552 = vpop.f32.mrb[0].mxu0
        %1553 = vmatprep.mubr.f32.mxu0 0.0
        %1554 = vmatmul.mubr.f32.gmra.mrb[0].mxu0 %v737
        %v1555 = vpop.f32.mrb[0].mxu0
        %v1556 = vadd.f32 %v1221, %v1555
        %v1557 = vpop.f32.mrb[0].mxu0
        %1558 = vmatprep.mubr.f32.mxu0 0.0
        %1559 = vmatmul.mubr.f32.gmra.mrb[0].mxu0 %v739
        %v1560 = vpop.f32.mrb[0].mxu0
        %v1561 = vadd.f32 %v1226, %v1560
        %v1562 = vpop.f32.mrb[0].mxu0
        %1563 = vmatprep.mubr.f32.mxu0 0.0
        %1564 = vmatmul.mubr.f32.gmra.mrb[0].mxu0 %v741
        %v1565 = vpop.f32.mrb[0].mxu0
        %v1566 = vadd.f32 %v1231, %v1565
        %v1567 = vpop.f32.mrb[0].mxu0
        %1568 = vmatprep.mubr.f32.mxu0 0.0
        %1569 = vmatmul.mubr.f32.gmra.mrb[0].mxu0 %v743
        %v1570 = vpop.f32.mrb[0].mxu0
        %v1571 = vadd.f32 %v1236, %v1570
        %v1572 = vpop.f32.mrb[0].mxu0
        %1573 = vmatprep.mubr.f32.mxu0 0.0
        %1574 = vmatmul.mubr.f32.gmra.mrb[0].mxu0 %v745
        %v1575 = vpop.f32.mrb[0].mxu0
        %v1576 = vadd.f32 %v1241, %v1575
        %v1577 = vpop.f32.mrb[0].mxu0
        %1578 = vdwg.mxu0
        %1579 = vmatprep.subr.mxu0 0.0
        %1580 = vmatpush1.msra.mxu0 %v812
        %1581 = vmatprep.subr.mxu0 0.0
        %1582 = vmatpush1.msra.mxu0 %v813
        %1583 = vmatprep.subr.mxu0 0.0
        %1584 = vmatpush1.msra.mxu0 %v814
        %1585 = vmatprep.subr.mxu0 0.0
        %1586 = vmatpush1.msra.mxu0 %v815
        %1587 = vmatprep.subr.mxu0 0.0
        %1588 = vmatpush1.msra.mxu0 %v816
        %1589 = vmatprep.subr.mxu0 0.0
        %1590 = vmatpush1.msra.mxu0 %v817
        %1591 = vmatprep.subr.mxu0 0.0
        %1592 = vmatpush1.msra.mxu0 %v818
        %1593 = vmatprep.subr.mxu0 0.0
        %1594 = vmatpush1.msra.mxu0 %v819
        %1595 = vmatprep.subr.mxu0 0.0
        %1596 = vmatpush1.msra.mxu0 %v820
        %1597 = vmatprep.subr.mxu0 0.0
        %1598 = vmatpush1.msra.mxu0 %v821
        %1599 = vmatprep.subr.mxu0 0.0
        %1600 = vmatpush1.msra.mxu0 %v822
        %1601 = vmatprep.subr.mxu0 0.0
        %1602 = vmatpush1.msra.mxu0 %v823
        %1603 = vmatprep.subr.mxu0 0.0
        %1604 = vmatpush1.msra.mxu0 %v824
        %1605 = vmatprep.subr.mxu0 0.0
        %1606 = vmatpush1.msra.mxu0 %v825
        %1607 = vmatprep.subr.mxu0 0.0
        %1608 = vmatpush1.msra.mxu0 %v826
        %1609 = vmatprep.subr.mxu0 0.0
        %1610 = vmatpush1.msra.mxu0 %v827
        %1611 = vmatprep.subr.mxu0 0.0
        %1612 = vmatpush1.msra.mxu0 %v828
        %1613 = vmatprep.subr.mxu0 0.0
        %1614 = vmatpush1.msra.mxu0 %v829
        %1615 = vmatprep.subr.mxu0 0.0
        %1616 = vmatpush1.msra.mxu0 %v830
        %1617 = vmatprep.subr.mxu0 0.0
        %1618 = vmatpush1.msra.mxu0 %v831
        %1619 = vmatprep.subr.mxu0 0.0
        %1620 = vmatpush1.msra.mxu0 %v832
        %1621 = vmatprep.subr.mxu0 0.0
        %1622 = vmatpush1.msra.mxu0 %v833
        %1623 = vmatprep.subr.mxu0 0.0
        %1624 = vmatpush1.msra.mxu0 %v834
        %1625 = vmatprep.subr.mxu0 0.0
        %1626 = vmatpush1.msra.mxu0 %v835
        %1627 = vmatprep.subr.mxu0 0.0
        %1628 = vmatpush1.msra.mxu0 %v836
        %1629 = vmatprep.subr.mxu0 0.0
        %1630 = vmatpush1.msra.mxu0 %v837
        %1631 = vmatprep.subr.mxu0 0.0
        %1632 = vmatpush1.msra.mxu0 %v838
        %1633 = vmatprep.subr.mxu0 0.0
        %1634 = vmatpush1.msra.mxu0 %v839
        %1635 = vmatprep.subr.mxu0 0.0
        %1636 = vmatpush1.msra.mxu0 %v840
        %1637 = vmatprep.subr.mxu0 0.0
        %1638 = vmatpush1.msra.mxu0 %v841
        %1639 = vmatprep.subr.mxu0 0.0
        %1640 = vmatpush1.msra.mxu0 %v842
        %1641 = vmatprep.subr.mxu0 0.0
        %1642 = vmatpush1.msra.mxu0 %v843
        %1643 = vmatprep.mubr.f32.mxu0 %v451
        %1644 = vmatmul.mubr.f32.gmra.mrb[0].mxu0 %v326
        %v1645 = vpop.f32.mrb[0].mxu0
        %v1646 = vadd.f32 %v1311, %v1645
        %v1647 = vpop.f32.mrb[0].mxu0
        %1648 = vmatprep.mubr.f32.mxu0 %v453
        %1649 = vmatmul.mubr.f32.gmra.mrb[0].mxu0 %v327
        %v1650 = vpop.f32.mrb[0].mxu0
        %v1651 = vadd.f32 %v1316, %v1650
        %v1652 = vpop.f32.mrb[0].mxu0
        %1653 = vmatprep.mubr.f32.mxu0 %v455
        %1654 = vmatmul.mubr.f32.gmra.mrb[0].mxu0 %v328
        %v1655 = vpop.f32.mrb[0].mxu0
        %v1656 = vadd.f32 %v1321, %v1655
        %v1657 = vpop.f32.mrb[0].mxu0
        %1658 = vmatprep.mubr.f32.mxu0 %v457
        %1659 = vmatmul.mubr.f32.gmra.mrb[0].mxu0 %v329
        %v1660 = vpop.f32.mrb[0].mxu0
        %v1661 = vadd.f32 %v1326, %v1660
        %v1662 = vpop.f32.mrb[0].mxu0
        %1663 = vmatprep.mubr.f32.mxu0 %v459
        %1664 = vmatmul.mubr.f32.gmra.mrb[0].mxu0 %v330
        %v1665 = vpop.f32.mrb[0].mxu0
        %v1666 = vadd.f32 %v1331, %v1665
        %v1667 = vpop.f32.mrb[0].mxu0
        %1668 = vmatprep.mubr.f32.mxu0 %v461
        %1669 = vmatmul.mubr.f32.gmra.mrb[0].mxu0 %v331
        %v1670 = vpop.f32.mrb[0].mxu0
        %v1671 = vadd.f32 %v1336, %v1670
        %v1672 = vpop.f32.mrb[0].mxu0
        %1673 = vmatprep.mubr.f32.mxu0 %v463
        %1674 = vmatmul.mubr.f32.gmra.mrb[0].mxu0 %v332
        %v1675 = vpop.f32.mrb[0].mxu0
        %v1676 = vadd.f32 %v1341, %v1675
        %v1677 = vpop.f32.mrb[0].mxu0
        %1678 = vmatprep.mubr.f32.mxu0 %v465
        %1679 = vmatmul.mubr.f32.gmra.mrb[0].mxu0 %v333
        %v1680 = vpop.f32.mrb[0].mxu0
        %v1681 = vadd.f32 %v1346, %v1680
        %v1682 = vpop.f32.mrb[0].mxu0
        %1683 = vmatprep.mubr.f32.mxu0 %v467
        %1684 = vmatmul.mubr.f32.gmra.mrb[0].mxu0 %v334
        %v1685 = vpop.f32.mrb[0].mxu0
        %v1686 = vadd.f32 %v1351, %v1685
        %v1687 = vpop.f32.mrb[0].mxu0
        %1688 = vmatprep.mubr.f32.mxu0 %v469
        %1689 = vmatmul.mubr.f32.gmra.mrb[0].mxu0 %v335
        %v1690 = vpop.f32.mrb[0].mxu0
        %v1691 = vadd.f32 %v1356, %v1690
        %v1692 = vpop.f32.mrb[0].mxu0
        %1693 = vmatprep.mubr.f32.mxu0 %v471
        %1694 = vmatmul.mubr.f32.gmra.mrb[0].mxu0 %v336
        %v1695 = vpop.f32.mrb[0].mxu0
        %v1696 = vadd.f32 %v1361, %v1695
        %v1697 = vpop.f32.mrb[0].mxu0
        %1698 = vmatprep.mubr.f32.mxu0 %v473
        %1699 = vmatmul.mubr.f32.gmra.mrb[0].mxu0 %v337
        %v1700 = vpop.f32.mrb[0].mxu0
        %v1701 = vadd.f32 %v1366, %v1700
        %v1702 = vpop.f32.mrb[0].mxu0
        %1703 = vmatprep.mubr.f32.mxu0 %v475
        %1704 = vmatmul.mubr.f32.gmra.mrb[0].mxu0 %v338
        %v1705 = vpop.f32.mrb[0].mxu0
        %v1706 = vadd.f32 %v1371, %v1705
        %v1707 = vpop.f32.mrb[0].mxu0
        %1708 = vmatprep.mubr.f32.mxu0 %v477
        %1709 = vmatmul.mubr.f32.gmra.mrb[0].mxu0 %v339
        %v1710 = vpop.f32.mrb[0].mxu0
        %v1711 = vadd.f32 %v1376, %v1710
        %v1712 = vpop.f32.mrb[0].mxu0
        %1713 = vmatprep.mubr.f32.mxu0 %v479
        %1714 = vmatmul.mubr.f32.gmra.mrb[0].mxu0 %v340
        %v1715 = vpop.f32.mrb[0].mxu0
        %v1716 = vadd.f32 %v1381, %v1715
        %v1717 = vpop.f32.mrb[0].mxu0
        %1718 = vmatprep.mubr.f32.mxu0 %v481
        %1719 = vmatmul.mubr.f32.gmra.mrb[0].mxu0 %v341
        %v1720 = vpop.f32.mrb[0].mxu0
        %v1721 = vadd.f32 %v1386, %v1720
        %v1722 = vpop.f32.mrb[0].mxu0
        %1723 = vmatprep.mubr.f32.mxu0 %v483
        %1724 = vmatmul.mubr.f32.gmra.mrb[0].mxu0 %v342
        %v1725 = vpop.f32.mrb[0].mxu0
        %v1726 = vadd.f32 %v1391, %v1725
        %v1727 = vpop.f32.mrb[0].mxu0
        %1728 = vmatprep.mubr.f32.mxu0 %v485
        %1729 = vmatmul.mubr.f32.gmra.mrb[0].mxu0 %v343
        %v1730 = vpop.f32.mrb[0].mxu0
        %v1731 = vadd.f32 %v1396, %v1730
        %v1732 = vpop.f32.mrb[0].mxu0
        %1733 = vmatprep.mubr.f32.mxu0 %v487
        %1734 = vmatmul.mubr.f32.gmra.mrb[0].mxu0 %v344
        %v1735 = vpop.f32.mrb[0].mxu0
        %v1736 = vadd.f32 %v1401, %v1735
        %v1737 = vpop.f32.mrb[0].mxu0
        %1738 = vmatprep.mubr.f32.mxu0 %v489
        %1739 = vmatmul.mubr.f32.gmra.mrb[0].mxu0 %v345
        %v1740 = vpop.f32.mrb[0].mxu0
        %v1741 = vadd.f32 %v1406, %v1740
        %v1742 = vpop.f32.mrb[0].mxu0
        %1743 = vmatprep.mubr.f32.mxu0 %v491
        %1744 = vmatmul.mubr.f32.gmra.mrb[0].mxu0 %v346
        %v1745 = vpop.f32.mrb[0].mxu0
        %v1746 = vadd.f32 %v1411, %v1745
        %v1747 = vpop.f32.mrb[0].mxu0
        %1748 = vmatprep.mubr.f32.mxu0 %v493
        %1749 = vmatmul.mubr.f32.gmra.mrb[0].mxu0 %v347
        %v1750 = vpop.f32.mrb[0].mxu0
        %v1751 = vadd.f32 %v1416, %v1750
        %v1752 = vpop.f32.mrb[0].mxu0
        %1753 = vmatprep.mubr.f32.mxu0 %v495
        %1754 = vmatmul.mubr.f32.gmra.mrb[0].mxu0 %v348
        %v1755 = vpop.f32.mrb[0].mxu0
        %v1756 = vadd.f32 %v1421, %v1755
        %v1757 = vpop.f32.mrb[0].mxu0
        %1758 = vmatprep.mubr.f32.mxu0 %v497
        %1759 = vmatmul.mubr.f32.gmra.mrb[0].mxu0 %v349
        %v1760 = vpop.f32.mrb[0].mxu0
        %v1761 = vadd.f32 %v1426, %v1760
        %v1762 = vpop.f32.mrb[0].mxu0
        %1763 = vmatprep.mubr.f32.mxu0 %v499
        %1764 = vmatmul.mubr.f32.gmra.mrb[0].mxu0 %v350
        %v1765 = vpop.f32.mrb[0].mxu0
        %v1766 = vadd.f32 %v1431, %v1765
        %v1767 = vpop.f32.mrb[0].mxu0
        %1768 = vmatprep.mubr.f32.mxu0 %v501
        %1769 = vmatmul.mubr.f32.gmra.mrb[0].mxu0 %v351
        %v1770 = vpop.f32.mrb[0].mxu0
        %v1771 = vadd.f32 %v1436, %v1770
        %v1772 = vpop.f32.mrb[0].mxu0
        %1773 = vmatprep.mubr.f32.mxu0 %v503
        %1774 = vmatmul.mubr.f32.gmra.mrb[0].mxu0 %v352
        %v1775 = vpop.f32.mrb[0].mxu0
        %v1776 = vadd.f32 %v1441, %v1775
        %v1777 = vpop.f32.mrb[0].mxu0
        %1778 = vmatprep.mubr.f32.mxu0 %v505
        %1779 = vmatmul.mubr.f32.gmra.mrb[0].mxu0 %v353
        %v1780 = vpop.f32.mrb[0].mxu0
        %v1781 = vadd.f32 %v1446, %v1780
        %v1782 = vpop.f32.mrb[0].mxu0
        %1783 = vmatprep.mubr.f32.mxu0 %v507
        %1784 = vmatmul.mubr.f32.gmra.mrb[0].mxu0 %v354
        %v1785 = vpop.f32.mrb[0].mxu0
        %v1786 = vadd.f32 %v1451, %v1785
        %v1787 = vpop.f32.mrb[0].mxu0
        %1788 = vmatprep.mubr.f32.mxu0 %v509
        %1789 = vmatmul.mubr.f32.gmra.mrb[0].mxu0 %v355
        %v1790 = vpop.f32.mrb[0].mxu0
        %v1791 = vadd.f32 %v1456, %v1790
        %v1792 = vpop.f32.mrb[0].mxu0
        %1793 = vmatprep.mubr.f32.mxu0 %v511
        %1794 = vmatmul.mubr.f32.gmra.mrb[0].mxu0 %v356
        %v1795 = vpop.f32.mrb[0].mxu0
        %v1796 = vadd.f32 %v1461, %v1795
        %v1797 = vpop.f32.mrb[0].mxu0
        %1798 = vmatprep.mubr.f32.mxu0 %v513
        %1799 = vmatmul.mubr.f32.gmra.mrb[0].mxu0 %v357
        %v1800 = vpop.f32.mrb[0].mxu0
        %v1801 = vadd.f32 %v1466, %v1800
        %v1802 = vpop.f32.mrb[0].mxu0
        %1803 = vmatprep.mubr.f32.mxu0 %v515
        %1804 = vmatmul.mubr.f32.gmra.mrb[0].mxu0 %v358
        %v1805 = vpop.f32.mrb[0].mxu0
        %v1806 = vadd.f32 %v1471, %v1805
        %v1807 = vpop.f32.mrb[0].mxu0
        %1808 = vmatprep.mubr.f32.mxu0 %v517
        %1809 = vmatmul.mubr.f32.gmra.mrb[0].mxu0 %v359
        %v1810 = vpop.f32.mrb[0].mxu0
        %v1811 = vadd.f32 %v1476, %v1810
        %v1812 = vpop.f32.mrb[0].mxu0
        %1813 = vmatprep.mubr.f32.mxu0 %v519
        %1814 = vmatmul.mubr.f32.gmra.mrb[0].mxu0 %v360
        %v1815 = vpop.f32.mrb[0].mxu0
        %v1816 = vadd.f32 %v1481, %v1815
        %v1817 = vpop.f32.mrb[0].mxu0
        %1818 = vmatprep.mubr.f32.mxu0 %v521
        %1819 = vmatmul.mubr.f32.gmra.mrb[0].mxu0 %v361
        %v1820 = vpop.f32.mrb[0].mxu0
        %v1821 = vadd.f32 %v1486, %v1820
        %v1822 = vpop.f32.mrb[0].mxu0
        %1823 = vmatprep.mubr.f32.mxu0 %v523
        %1824 = vmatmul.mubr.f32.gmra.mrb[0].mxu0 %v362
        %v1825 = vpop.f32.mrb[0].mxu0
        %v1826 = vadd.f32 %v1491, %v1825
        %v1827 = vpop.f32.mrb[0].mxu0
        %1828 = vmatprep.mubr.f32.mxu0 %v525
        %1829 = vmatmul.mubr.f32.gmra.mrb[0].mxu0 %v363
        %v1830 = vpop.f32.mrb[0].mxu0
        %v1831 = vadd.f32 %v1496, %v1830
        %v1832 = vpop.f32.mrb[0].mxu0
        %1833 = vmatprep.mubr.f32.mxu0 %v527
        %1834 = vmatmul.mubr.f32.gmra.mrb[0].mxu0 %v364
        %v1835 = vpop.f32.mrb[0].mxu0
        %v1836 = vadd.f32 %v1501, %v1835
        %v1837 = vpop.f32.mrb[0].mxu0
        %1838 = vmatprep.mubr.f32.mxu0 %v529
        %1839 = vmatmul.mubr.f32.gmra.mrb[0].mxu0 %v365
        %v1840 = vpop.f32.mrb[0].mxu0
        %v1841 = vadd.f32 %v1506, %v1840
        %v1842 = vpop.f32.mrb[0].mxu0
        %1843 = vmatprep.mubr.f32.mxu0 %v531
        %1844 = vmatmul.mubr.f32.gmra.mrb[0].mxu0 %v366
        %v1845 = vpop.f32.mrb[0].mxu0
        %v1846 = vadd.f32 %v1511, %v1845
        %v1847 = vpop.f32.mrb[0].mxu0
        %1848 = vmatprep.mubr.f32.mxu0 %v533
        %1849 = vmatmul.mubr.f32.gmra.mrb[0].mxu0 %v367
        %v1850 = vpop.f32.mrb[0].mxu0
        %v1851 = vadd.f32 %v1516, %v1850
        %v1852 = vpop.f32.mrb[0].mxu0
        %1853 = vmatprep.mubr.f32.mxu0 %v535
        %1854 = vmatmul.mubr.f32.gmra.mrb[0].mxu0 %v368
        %v1855 = vpop.f32.mrb[0].mxu0
        %v1856 = vadd.f32 %v1521, %v1855
        %v1857 = vpop.f32.mrb[0].mxu0
        %1858 = vmatprep.mubr.f32.mxu0 %v537
        %1859 = vmatmul.mubr.f32.gmra.mrb[0].mxu0 %v369
        %v1860 = vpop.f32.mrb[0].mxu0
        %v1861 = vadd.f32 %v1526, %v1860
        %v1862 = vpop.f32.mrb[0].mxu0
        %1863 = vmatprep.mubr.f32.mxu0 %v539
        %1864 = vmatmul.mubr.f32.gmra.mrb[0].mxu0 %v370
        %v1865 = vpop.f32.mrb[0].mxu0
        %v1866 = vadd.f32 %v1531, %v1865
        %v1867 = vpop.f32.mrb[0].mxu0
        %1868 = vmatprep.mubr.f32.mxu0 %v541
        %1869 = vmatmul.mubr.f32.gmra.mrb[0].mxu0 %v371
        %v1870 = vpop.f32.mrb[0].mxu0
        %v1871 = vadd.f32 %v1536, %v1870
        %v1872 = vpop.f32.mrb[0].mxu0
        %1873 = vmatprep.mubr.f32.mxu0 %v543
        %1874 = vmatmul.mubr.f32.gmra.mrb[0].mxu0 %v372
        %v1875 = vpop.f32.mrb[0].mxu0
        %v1876 = vadd.f32 %v1541, %v1875
        %v1877 = vpop.f32.mrb[0].mxu0
        %1878 = vmatprep.mubr.f32.mxu0 %v545
        %1879 = vmatmul.mubr.f32.gmra.mrb[0].mxu0 %v373
        %v1880 = vpop.f32.mrb[0].mxu0
        %v1881 = vadd.f32 %v1546, %v1880
        %v1882 = vpop.f32.mrb[0].mxu0
        %1883 = vmatprep.mubr.f32.mxu0 %v547
        %1884 = vmatmul.mubr.f32.gmra.mrb[0].mxu0 %v374
        %v1885 = vpop.f32.mrb[0].mxu0
        %v1886 = vadd.f32 %v1551, %v1885
        %v1887 = vpop.f32.mrb[0].mxu0
        %1888 = vmatprep.mubr.f32.mxu0 %v549
        %1889 = vmatmul.mubr.f32.gmra.mrb[0].mxu0 %v375
        %v1890 = vpop.f32.mrb[0].mxu0
        %v1891 = vadd.f32 %v1556, %v1890
        %v1892 = vpop.f32.mrb[0].mxu0
        %1893 = vmatprep.mubr.f32.mxu0 %v551
        %1894 = vmatmul.mubr.f32.gmra.mrb[0].mxu0 %v376
        %v1895 = vpop.f32.mrb[0].mxu0
        %v1896 = vadd.f32 %v1561, %v1895
        %v1897 = vpop.f32.mrb[0].mxu0
        %1898 = vmatprep.mubr.f32.mxu0 %v553
        %1899 = vmatmul.mubr.f32.gmra.mrb[0].mxu0 %v377
        %v1900 = vpop.f32.mrb[0].mxu0
        %v1901 = vadd.f32 %v1566, %v1900
        %v1902 = vpop.f32.mrb[0].mxu0
        %1903 = vmatprep.mubr.f32.mxu0 %v555
        %1904 = vmatmul.mubr.f32.gmra.mrb[0].mxu0 %v378
        %v1905 = vpop.f32.mrb[0].mxu0
        %v1906 = vadd.f32 %v1571, %v1905
        %v1907 = vpop.f32.mrb[0].mxu0
        %1908 = vmatprep.mubr.f32.mxu0 %v557
        %1909 = vmatmul.mubr.f32.gmra.mrb[0].mxu0 %v379
        %v1910 = vpop.f32.mrb[0].mxu0
        %v1911 = vadd.f32 %v1576, %v1910
        %v1912 = vpop.f32.mrb[0].mxu0
        %1913 = vdwg.mxu0
        %1914 = vmatprep.subr.mxu0 0.0
        %1915 = vmatpush1.msra.mxu0 %v844
        %1916 = vmatprep.subr.mxu0 0.0
        %1917 = vmatpush1.msra.mxu0 %v845
        %1918 = vmatprep.subr.mxu0 0.0
        %1919 = vmatpush1.msra.mxu0 %v846
        %1920 = vmatprep.subr.mxu0 0.0
        %1921 = vmatpush1.msra.mxu0 %v847
        %1922 = vmatprep.subr.mxu0 0.0
        %1923 = vmatpush1.msra.mxu0 %v848
        %1924 = vmatprep.subr.mxu0 0.0
        %1925 = vmatpush1.msra.mxu0 %v849
        %1926 = vmatprep.subr.mxu0 0.0
        %1927 = vmatpush1.msra.mxu0 %v850
        %1928 = vmatprep.subr.mxu0 0.0
        %1929 = vmatpush1.msra.mxu0 %v851
        %1930 = vmatprep.subr.mxu0 0.0
        %1931 = vmatpush1.msra.mxu0 %v852
        %1932 = vmatprep.subr.mxu0 0.0
        %1933 = vmatpush1.msra.mxu0 %v853
        %1934 = vmatprep.subr.mxu0 0.0
        %1935 = vmatpush1.msra.mxu0 %v854
        %1936 = vmatprep.subr.mxu0 0.0
        %1937 = vmatpush1.msra.mxu0 %v855
        %1938 = vmatprep.subr.mxu0 0.0
        %1939 = vmatpush1.msra.mxu0 %v856
        %1940 = vmatprep.subr.mxu0 0.0
        %1941 = vmatpush1.msra.mxu0 %v857
        %1942 = vmatprep.subr.mxu0 0.0
        %1943 = vmatpush1.msra.mxu0 %v858
        %1944 = vmatprep.subr.mxu0 0.0
        %1945 = vmatpush1.msra.mxu0 %v859
        %1946 = vmatprep.subr.mxu0 0.0
        %1947 = vmatpush1.msra.mxu0 0.0
        %1948 = vmatprep.subr.mxu0 0.0
        %1949 = vmatpush1.msra.mxu0 0.0
        %1950 = vmatprep.subr.mxu0 0.0
        %1951 = vmatpush1.msra.mxu0 0.0
        %1952 = vmatprep.subr.mxu0 0.0
        %1953 = vmatpush1.msra.mxu0 0.0
        %1954 = vmatprep.subr.mxu0 0.0
        %1955 = vmatpush1.msra.mxu0 0.0
        %1956 = vmatprep.subr.mxu0 0.0
        %1957 = vmatpush1.msra.mxu0 0.0
        %1958 = vmatprep.subr.mxu0 0.0
        %1959 = vmatpush1.msra.mxu0 0.0
        %1960 = vmatprep.subr.mxu0 0.0
        %1961 = vmatpush1.msra.mxu0 0.0
        %1962 = vmatprep.subr.mxu0 0.0
        %1963 = vmatpush1.msra.mxu0 0.0
        %1964 = vmatprep.subr.mxu0 0.0
        %1965 = vmatpush1.msra.mxu0 0.0
        %1966 = vmatprep.subr.mxu0 0.0
        %1967 = vmatpush1.msra.mxu0 0.0
        %1968 = vmatprep.subr.mxu0 0.0
        %1969 = vmatpush1.msra.mxu0 0.0
        %1970 = vmatprep.subr.mxu0 0.0
        %1971 = vmatpush1.msra.mxu0 0.0
        %1972 = vmatprep.subr.mxu0 0.0
        %1973 = vmatpush1.msra.mxu0 0.0
        %1974 = vmatprep.subr.mxu0 0.0
        %1975 = vmatpush1.msra.mxu0 0.0
        %1976 = vmatprep.subr.mxu0 0.0
        %1977 = vmatpush1.msra.mxu0 0.0
        %1978 = vmatprep.mubr.f32.mxu0 0.0
        %1979 = vmatmul.mubr.f32.gmra.mrb[0].mxu0 %v633
        %v1980 = vpop.f32.mrb[0].mxu0
        %v1981 = vadd.f32 %v1646, %v1980
        %v1982 = vpop.f32.mrb[0].mxu0
        %1983 = vmatprep.mubr.f32.mxu0 0.0
        %1984 = vmatmul.mubr.f32.gmra.mrb[0].mxu0 %v635
        %v1985 = vpop.f32.mrb[0].mxu0
        %v1986 = vadd.f32 %v1651, %v1985
        %v1987 = vpop.f32.mrb[0].mxu0
        %1988 = vmatprep.mubr.f32.mxu0 0.0
        %1989 = vmatmul.mubr.f32.gmra.mrb[0].mxu0 %v637
        %v1990 = vpop.f32.mrb[0].mxu0
        %v1991 = vadd.f32 %v1656, %v1990
        %v1992 = vpop.f32.mrb[0].mxu0
        %1993 = vmatprep.mubr.f32.mxu0 0.0
        %1994 = vmatmul.mubr.f32.gmra.mrb[0].mxu0 %v639
        %v1995 = vpop.f32.mrb[0].mxu0
        %v1996 = vadd.f32 %v1661, %v1995
        %v1997 = vpop.f32.mrb[0].mxu0
        %1998 = vmatprep.mubr.f32.mxu0 0.0
        %1999 = vmatmul.mubr.f32.gmra.mrb[0].mxu0 %v641
        %v2000 = vpop.f32.mrb[0].mxu0
        %v2001 = vadd.f32 %v1666, %v2000
        %v2002 = vpop.f32.mrb[0].mxu0
        %2003 = vmatprep.mubr.f32.mxu0 0.0
        %2004 = vmatmul.mubr.f32.gmra.mrb[0].mxu0 %v643
        %v2005 = vpop.f32.mrb[0].mxu0
        %v2006 = vadd.f32 %v1671, %v2005
        %v2007 = vpop.f32.mrb[0].mxu0
        %2008 = vmatprep.mubr.f32.mxu0 0.0
        %2009 = vmatmul.mubr.f32.gmra.mrb[0].mxu0 %v645
        %v2010 = vpop.f32.mrb[0].mxu0
        %v2011 = vadd.f32 %v1676, %v2010
        %v2012 = vpop.f32.mrb[0].mxu0
        %2013 = vmatprep.mubr.f32.mxu0 0.0
        %2014 = vmatmul.mubr.f32.gmra.mrb[0].mxu0 %v647
        %v2015 = vpop.f32.mrb[0].mxu0
        %v2016 = vadd.f32 %v1681, %v2015
        %v2017 = vpop.f32.mrb[0].mxu0
        %2018 = vmatprep.mubr.f32.mxu0 0.0
        %2019 = vmatmul.mubr.f32.gmra.mrb[0].mxu0 %v649
        %v2020 = vpop.f32.mrb[0].mxu0
        %v2021 = vadd.f32 %v1686, %v2020
        %v2022 = vpop.f32.mrb[0].mxu0
        %2023 = vmatprep.mubr.f32.mxu0 0.0
        %2024 = vmatmul.mubr.f32.gmra.mrb[0].mxu0 %v651
        %v2025 = vpop.f32.mrb[0].mxu0
        %v2026 = vadd.f32 %v1691, %v2025
        %v2027 = vpop.f32.mrb[0].mxu0
        %2028 = vmatprep.mubr.f32.mxu0 0.0
        %2029 = vmatmul.mubr.f32.gmra.mrb[0].mxu0 %v653
        %v2030 = vpop.f32.mrb[0].mxu0
        %v2031 = vadd.f32 %v1696, %v2030
        %v2032 = vpop.f32.mrb[0].mxu0
        %2033 = vmatprep.mubr.f32.mxu0 0.0
        %2034 = vmatmul.mubr.f32.gmra.mrb[0].mxu0 %v655
        %v2035 = vpop.f32.mrb[0].mxu0
        %v2036 = vadd.f32 %v1701, %v2035
        %v2037 = vpop.f32.mrb[0].mxu0
        %2038 = vmatprep.mubr.f32.mxu0 0.0
        %2039 = vmatmul.mubr.f32.gmra.mrb[0].mxu0 %v657
        %v2040 = vpop.f32.mrb[0].mxu0
        %v2041 = vadd.f32 %v1706, %v2040
        %v2042 = vpop.f32.mrb[0].mxu0
        %2043 = vmatprep.mubr.f32.mxu0 0.0
        %2044 = vmatmul.mubr.f32.gmra.mrb[0].mxu0 %v659
        %v2045 = vpop.f32.mrb[0].mxu0
        %v2046 = vadd.f32 %v1711, %v2045
        %v2047 = vpop.f32.mrb[0].mxu0
        %2048 = vmatprep.mubr.f32.mxu0 0.0
        %2049 = vmatmul.mubr.f32.gmra.mrb[0].mxu0 %v661
        %v2050 = vpop.f32.mrb[0].mxu0
        %v2051 = vadd.f32 %v1716, %v2050
        %v2052 = vpop.f32.mrb[0].mxu0
        %2053 = vmatprep.mubr.f32.mxu0 0.0
        %2054 = vmatmul.mubr.f32.gmra.mrb[0].mxu0 %v663
        %v2055 = vpop.f32.mrb[0].mxu0
        %v2056 = vadd.f32 %v1721, %v2055
        %v2057 = vpop.f32.mrb[0].mxu0
        %2058 = vmatprep.mubr.f32.mxu0 0.0
        %2059 = vmatmul.mubr.f32.gmra.mrb[0].mxu0 %v665
        %v2060 = vpop.f32.mrb[0].mxu0
        %v2061 = vadd.f32 %v1726, %v2060
        %v2062 = vpop.f32.mrb[0].mxu0
        %2063 = vmatprep.mubr.f32.mxu0 0.0
        %2064 = vmatmul.mubr.f32.gmra.mrb[0].mxu0 %v667
        %v2065 = vpop.f32.mrb[0].mxu0
        %v2066 = vadd.f32 %v1731, %v2065
        %v2067 = vpop.f32.mrb[0].mxu0
        %2068 = vmatprep.mubr.f32.mxu0 0.0
        %2069 = vmatmul.mubr.f32.gmra.mrb[0].mxu0 %v669
        %v2070 = vpop.f32.mrb[0].mxu0
        %v2071 = vadd.f32 %v1736, %v2070
        %v2072 = vpop.f32.mrb[0].mxu0
        %2073 = vmatprep.mubr.f32.mxu0 0.0
        %2074 = vmatmul.mubr.f32.gmra.mrb[0].mxu0 %v671
        %v2075 = vpop.f32.mrb[0].mxu0
        %v2076 = vadd.f32 %v1741, %v2075
        %v2077 = vpop.f32.mrb[0].mxu0
        %2078 = vmatprep.mubr.f32.mxu0 0.0
        %2079 = vmatmul.mubr.f32.gmra.mrb[0].mxu0 %v673
        %v2080 = vpop.f32.mrb[0].mxu0
        %v2081 = vadd.f32 %v1746, %v2080
        %v2082 = vpop.f32.mrb[0].mxu0
        %2083 = vmatprep.mubr.f32.mxu0 0.0
        %2084 = vmatmul.mubr.f32.gmra.mrb[0].mxu0 %v675
        %v2085 = vpop.f32.mrb[0].mxu0
        %v2086 = vadd.f32 %v1751, %v2085
        %v2087 = vpop.f32.mrb[0].mxu0
        %2088 = vmatprep.mubr.f32.mxu0 0.0
        %2089 = vmatmul.mubr.f32.gmra.mrb[0].mxu0 %v677
        %v2090 = vpop.f32.mrb[0].mxu0
        %v2091 = vadd.f32 %v1756, %v2090
        %v2092 = vpop.f32.mrb[0].mxu0
        %2093 = vmatprep.mubr.f32.mxu0 0.0
        %2094 = vmatmul.mubr.f32.gmra.mrb[0].mxu0 %v679
        %v2095 = vpop.f32.mrb[0].mxu0
        %v2096 = vadd.f32 %v1761, %v2095
        %v2097 = vpop.f32.mrb[0].mxu0
        %2098 = vmatprep.mubr.f32.mxu0 0.0
        %2099 = vmatmul.mubr.f32.gmra.mrb[0].mxu0 %v681
        %v2100 = vpop.f32.mrb[0].mxu0
        %v2101 = vadd.f32 %v1766, %v2100
        %v2102 = vpop.f32.mrb[0].mxu0
        %2103 = vmatprep.mubr.f32.mxu0 0.0
        %2104 = vmatmul.mubr.f32.gmra.mrb[0].mxu0 %v683
        %v2105 = vpop.f32.mrb[0].mxu0
        %v2106 = vadd.f32 %v1771, %v2105
        %v2107 = vpop.f32.mrb[0].mxu0
        %2108 = vmatprep.mubr.f32.mxu0 0.0
        %2109 = vmatmul.mubr.f32.gmra.mrb[0].mxu0 %v685
        %v2110 = vpop.f32.mrb[0].mxu0
        %v2111 = vadd.f32 %v1776, %v2110
        %v2112 = vpop.f32.mrb[0].mxu0
        %2113 = vmatprep.mubr.f32.mxu0 0.0
        %2114 = vmatmul.mubr.f32.gmra.mrb[0].mxu0 %v687
        %v2115 = vpop.f32.mrb[0].mxu0
        %v2116 = vadd.f32 %v1781, %v2115
        %v2117 = vpop.f32.mrb[0].mxu0
        %2118 = vmatprep.mubr.f32.mxu0 0.0
        %2119 = vmatmul.mubr.f32.gmra.mrb[0].mxu0 %v689
        %v2120 = vpop.f32.mrb[0].mxu0
        %v2121 = vadd.f32 %v1786, %v2120
        %v2122 = vpop.f32.mrb[0].mxu0
        %2123 = vmatprep.mubr.f32.mxu0 0.0
        %2124 = vmatmul.mubr.f32.gmra.mrb[0].mxu0 %v691
        %v2125 = vpop.f32.mrb[0].mxu0
        %v2126 = vadd.f32 %v1791, %v2125
        %v2127 = vpop.f32.mrb[0].mxu0
        %2128 = vmatprep.mubr.f32.mxu0 0.0
        %2129 = vmatmul.mubr.f32.gmra.mrb[0].mxu0 %v693
        %v2130 = vpop.f32.mrb[0].mxu0
        %v2131 = vadd.f32 %v1796, %v2130
        %v2132 = vpop.f32.mrb[0].mxu0
        %2133 = vmatprep.mubr.f32.mxu0 0.0
        %2134 = vmatmul.mubr.f32.gmra.mrb[0].mxu0 %v695
        %v2135 = vpop.f32.mrb[0].mxu0
        %v2136 = vadd.f32 %v1801, %v2135
        %v2137 = vpop.f32.mrb[0].mxu0
        %2138 = vmatprep.mubr.f32.mxu0 0.0
        %2139 = vmatmul.mubr.f32.gmra.mrb[0].mxu0 %v697
        %v2140 = vpop.f32.mrb[0].mxu0
        %v2141 = vadd.f32 %v1806, %v2140
        %v2142 = vpop.f32.mrb[0].mxu0
        %2143 = vmatprep.mubr.f32.mxu0 0.0
        %2144 = vmatmul.mubr.f32.gmra.mrb[0].mxu0 %v699
        %v2145 = vpop.f32.mrb[0].mxu0
        %v2146 = vadd.f32 %v1811, %v2145
        %v2147 = vpop.f32.mrb[0].mxu0
        %2148 = vmatprep.mubr.f32.mxu0 0.0
        %2149 = vmatmul.mubr.f32.gmra.mrb[0].mxu0 %v701
        %v2150 = vpop.f32.mrb[0].mxu0
        %v2151 = vadd.f32 %v1816, %v2150
        %v2152 = vpop.f32.mrb[0].mxu0
        %2153 = vmatprep.mubr.f32.mxu0 0.0
        %2154 = vmatmul.mubr.f32.gmra.mrb[0].mxu0 %v703
        %v2155 = vpop.f32.mrb[0].mxu0
        %v2156 = vadd.f32 %v1821, %v2155
        %v2157 = vpop.f32.mrb[0].mxu0
        %2158 = vmatprep.mubr.f32.mxu0 0.0
        %2159 = vmatmul.mubr.f32.gmra.mrb[0].mxu0 %v705
        %v2160 = vpop.f32.mrb[0].mxu0
        %v2161 = vadd.f32 %v1826, %v2160
        %v2162 = vpop.f32.mrb[0].mxu0
        %2163 = vmatprep.mubr.f32.mxu0 0.0
        %2164 = vmatmul.mubr.f32.gmra.mrb[0].mxu0 %v707
        %v2165 = vpop.f32.mrb[0].mxu0
        %v2166 = vadd.f32 %v1831, %v2165
        %v2167 = vpop.f32.mrb[0].mxu0
        %2168 = vmatprep.mubr.f32.mxu0 0.0
        %2169 = vmatmul.mubr.f32.gmra.mrb[0].mxu0 %v709
        %v2170 = vpop.f32.mrb[0].mxu0
        %v2171 = vadd.f32 %v1836, %v2170
        %v2172 = vpop.f32.mrb[0].mxu0
        %2173 = vmatprep.mubr.f32.mxu0 0.0
        %2174 = vmatmul.mubr.f32.gmra.mrb[0].mxu0 %v711
        %v2175 = vpop.f32.mrb[0].mxu0
        %v2176 = vadd.f32 %v1841, %v2175
        %v2177 = vpop.f32.mrb[0].mxu0
        %2178 = vmatprep.mubr.f32.mxu0 0.0
        %2179 = vmatmul.mubr.f32.gmra.mrb[0].mxu0 %v713
        %v2180 = vpop.f32.mrb[0].mxu0
        %v2181 = vadd.f32 %v1846, %v2180
        %v2182 = vpop.f32.mrb[0].mxu0
        %2183 = vmatprep.mubr.f32.mxu0 0.0
        %2184 = vmatmul.mubr.f32.gmra.mrb[0].mxu0 %v715
        %v2185 = vpop.f32.mrb[0].mxu0
        %v2186 = vadd.f32 %v1851, %v2185
        %v2187 = vpop.f32.mrb[0].mxu0
        %2188 = vmatprep.mubr.f32.mxu0 0.0
        %2189 = vmatmul.mubr.f32.gmra.mrb[0].mxu0 %v717
        %v2190 = vpop.f32.mrb[0].mxu0
        %v2191 = vadd.f32 %v1856, %v2190
        %v2192 = vpop.f32.mrb[0].mxu0
        %2193 = vmatprep.mubr.f32.mxu0 0.0
        %2194 = vmatmul.mubr.f32.gmra.mrb[0].mxu0 %v719
        %v2195 = vpop.f32.mrb[0].mxu0
        %v2196 = vadd.f32 %v1861, %v2195
        %v2197 = vpop.f32.mrb[0].mxu0
        %2198 = vmatprep.mubr.f32.mxu0 0.0
        %2199 = vmatmul.mubr.f32.gmra.mrb[0].mxu0 %v721
        %v2200 = vpop.f32.mrb[0].mxu0
        %v2201 = vadd.f32 %v1866, %v2200
        %v2202 = vpop.f32.mrb[0].mxu0
        %2203 = vmatprep.mubr.f32.mxu0 0.0
        %2204 = vmatmul.mubr.f32.gmra.mrb[0].mxu0 %v723
        %v2205 = vpop.f32.mrb[0].mxu0
        %v2206 = vadd.f32 %v1871, %v2205
        %v2207 = vpop.f32.mrb[0].mxu0
        %2208 = vmatprep.mubr.f32.mxu0 0.0
        %2209 = vmatmul.mubr.f32.gmra.mrb[0].mxu0 %v725
        %v2210 = vpop.f32.mrb[0].mxu0
        %v2211 = vadd.f32 %v1876, %v2210
        %v2212 = vpop.f32.mrb[0].mxu0
        %2213 = vmatprep.mubr.f32.mxu0 0.0
        %2214 = vmatmul.mubr.f32.gmra.mrb[0].mxu0 %v727
        %v2215 = vpop.f32.mrb[0].mxu0
        %v2216 = vadd.f32 %v1881, %v2215
        %v2217 = vpop.f32.mrb[0].mxu0
        %2218 = vmatprep.mubr.f32.mxu0 0.0
        %2219 = vmatmul.mubr.f32.gmra.mrb[0].mxu0 %v729
        %v2220 = vpop.f32.mrb[0].mxu0
        %v2221 = vadd.f32 %v1886, %v2220
        %v2222 = vpop.f32.mrb[0].mxu0
        %2223 = vmatprep.mubr.f32.mxu0 0.0
        %2224 = vmatmul.mubr.f32.gmra.mrb[0].mxu0 %v731
        %v2225 = vpop.f32.mrb[0].mxu0
        %v2226 = vadd.f32 %v1891, %v2225
        %v2227 = vpop.f32.mrb[0].mxu0
        %2228 = vmatprep.mubr.f32.mxu0 0.0
        %2229 = vmatmul.mubr.f32.gmra.mrb[0].mxu0 %v733
        %v2230 = vpop.f32.mrb[0].mxu0
        %v2231 = vadd.f32 %v1896, %v2230
        %v2232 = vpop.f32.mrb[0].mxu0
        %2233 = vmatprep.mubr.f32.mxu0 0.0
        %2234 = vmatmul.mubr.f32.gmra.mrb[0].mxu0 %v735
        %v2235 = vpop.f32.mrb[0].mxu0
        %v2236 = vadd.f32 %v1901, %v2235
        %v2237 = vpop.f32.mrb[0].mxu0
        %2238 = vmatprep.mubr.f32.mxu0 0.0
        %2239 = vmatmul.mubr.f32.gmra.mrb[0].mxu0 %v737
        %v2240 = vpop.f32.mrb[0].mxu0
        %v2241 = vadd.f32 %v1906, %v2240
        %v2242 = vpop.f32.mrb[0].mxu0
        %2243 = vmatprep.mubr.f32.mxu0 0.0
        %2244 = vmatmul.mubr.f32.gmra.mrb[0].mxu0 %v739
        %v2245 = vpop.f32.mrb[0].mxu0
        %v2246 = vadd.f32 %v1911, %v2245
        %v2247 = vpop.f32.mrb[0].mxu0
        %2248 = vdwg.mxu0
        %s2249 = scalar_lea.vmem [#allocation5], 768
        %v2250 = vld [vmem:[%s2249] sm:$0xff]
        %v2251 = vld [vmem:[%s2249 + $0x8] sm:$0xff]
        %v2252 = vld [vmem:[%s2249 + $0x10] sm:$0xff]
        %v2253 = vld [vmem:[%s2249 + $0x18] sm:$0xff]
        %v2254 = vld [vmem:[%s2249 + $0x20] sm:$0xff]
        %v2255 = vld [vmem:[%s2249 + $0x28] sm:$0xff]
        %v2256 = vld [vmem:[%s2249 + $0x30] sm:$0xff]
        %v2257 = vld [vmem:[%s2249 + $0x38] sm:$0xff]
        %v2258 = vld [vmem:[%s2249 + $0x40] sm:$0xff]
        %v2259 = vld [vmem:[%s2249 + $0x48] sm:$0xff]
        %v2260 = vld [vmem:[%s2249 + $0x50] sm:$0xff]
        %v2261 = vld [vmem:[%s2249 + $0x58] sm:$0xff]
        %v2262 = vld [vmem:[%s2249 + $0x60] sm:$0xff]
        %v2263 = vld [vmem:[%s2249 + $0x68] sm:$0xff]
        %v2264 = vld [vmem:[%s2249 + $0x70] sm:$0xff]
        %v2265 = vld [vmem:[%s2249 + $0x78] sm:$0xff]
        %v2266 = vld [vmem:[%s2249 + $0x80] sm:$0xff]
        %v2267 = vld [vmem:[%s2249 + $0x88] sm:$0xff]
        %v2268 = vld [vmem:[%s2249 + $0x90] sm:$0xff]
        %v2269 = vld [vmem:[%s2249 + $0x98] sm:$0xff]
        %v2270 = vld [vmem:[%s2249 + $0xa0] sm:$0xff]
        %v2271 = vld [vmem:[%s2249 + $0xa8] sm:$0xff]
        %v2272 = vld [vmem:[%s2249 + $0xb0] sm:$0xff]
        %v2273 = vld [vmem:[%s2249 + $0xb8] sm:$0xff]
        %v2274 = vld [vmem:[%s2249 + $0xc0] sm:$0xff]
        %v2275 = vld [vmem:[%s2249 + $0xc8] sm:$0xff]
        %v2276 = vld [vmem:[%s2249 + $0xd0] sm:$0xff]
        %v2277 = vld [vmem:[%s2249 + $0xd8] sm:$0xff]
        %v2278 = vld [vmem:[%s2249 + $0xe0] sm:$0xff]
        %v2279 = vld [vmem:[%s2249 + $0xe8] sm:$0xff]
        %v2280 = vld [vmem:[%s2249 + $0xf0] sm:$0xff]
        %v2281 = vld [vmem:[%s2249 + $0xf8] sm:$0xff]
        %v2282 = vld [vmem:[%s2249 + $0x100] sm:$0xff]
        %v2283 = vld [vmem:[%s2249 + $0x108] sm:$0xff]
        %v2284 = vld [vmem:[%s2249 + $0x110] sm:$0xff]
        %v2285 = vld [vmem:[%s2249 + $0x118] sm:$0xff]
        %v2286 = vld [vmem:[%s2249 + $0x120] sm:$0xff]
        %v2287 = vld [vmem:[%s2249 + $0x128] sm:$0xff]
        %v2288 = vld [vmem:[%s2249 + $0x130] sm:$0xff]
        %v2289 = vld [vmem:[%s2249 + $0x138] sm:$0xff]
        %v2290 = vld [vmem:[%s2249 + $0x140] sm:$0xff]
        %v2291 = vld [vmem:[%s2249 + $0x148] sm:$0xff]
        %v2292 = vld [vmem:[%s2249 + $0x150] sm:$0xff]
        %v2293 = vld [vmem:[%s2249 + $0x158] sm:$0xff]
        %v2294 = vld [vmem:[%s2249 + $0x160] sm:$0xff]
        %v2295 = vld [vmem:[%s2249 + $0x168] sm:$0xff]
        %v2296 = vld [vmem:[%s2249 + $0x170] sm:$0xff]
        %v2297 = vld [vmem:[%s2249 + $0x178] sm:$0xff]
        %2298 = vmatprep.subr.mxu0 0.0
        %2299 = vmatpush1.msra.mxu0 %v2250
        %2300 = vmatprep.subr.mxu0 0.0
        %2301 = vmatpush1.msra.mxu0 %v2251
        %2302 = vmatprep.subr.mxu0 0.0
        %2303 = vmatpush1.msra.mxu0 %v2252
        %2304 = vmatprep.subr.mxu0 0.0
        %2305 = vmatpush1.msra.mxu0 %v2253
        %2306 = vmatprep.subr.mxu0 0.0
        %2307 = vmatpush1.msra.mxu0 %v2254
        %2308 = vmatprep.subr.mxu0 0.0
        %2309 = vmatpush1.msra.mxu0 %v2255
        %2310 = vmatprep.subr.mxu0 0.0
        %2311 = vmatpush1.msra.mxu0 %v2256
        %2312 = vmatprep.subr.mxu0 0.0
        %2313 = vmatpush1.msra.mxu0 %v2257
        %2314 = vmatprep.subr.mxu0 0.0
        %2315 = vmatpush1.msra.mxu0 %v2258
        %2316 = vmatprep.subr.mxu0 0.0
        %2317 = vmatpush1.msra.mxu0 %v2259
        %2318 = vmatprep.subr.mxu0 0.0
        %2319 = vmatpush1.msra.mxu0 %v2260
        %2320 = vmatprep.subr.mxu0 0.0
        %2321 = vmatpush1.msra.mxu0 %v2261
        %2322 = vmatprep.subr.mxu0 0.0
        %2323 = vmatpush1.msra.mxu0 %v2262
        %2324 = vmatprep.subr.mxu0 0.0
        %2325 = vmatpush1.msra.mxu0 %v2263
        %2326 = vmatprep.subr.mxu0 0.0
        %2327 = vmatpush1.msra.mxu0 %v2264
        %2328 = vmatprep.subr.mxu0 0.0
        %2329 = vmatpush1.msra.mxu0 %v2265
        %2330 = vmatprep.subr.mxu0 0.0
        %2331 = vmatpush1.msra.mxu0 %v2266
        %2332 = vmatprep.subr.mxu0 0.0
        %2333 = vmatpush1.msra.mxu0 %v2267
        %2334 = vmatprep.subr.mxu0 0.0
        %2335 = vmatpush1.msra.mxu0 %v2268
        %2336 = vmatprep.subr.mxu0 0.0
        %2337 = vmatpush1.msra.mxu0 %v2269
        %2338 = vmatprep.subr.mxu0 0.0
        %2339 = vmatpush1.msra.mxu0 %v2270
        %2340 = vmatprep.subr.mxu0 0.0
        %2341 = vmatpush1.msra.mxu0 %v2271
        %2342 = vmatprep.subr.mxu0 0.0
        %2343 = vmatpush1.msra.mxu0 %v2272
        %2344 = vmatprep.subr.mxu0 0.0
        %2345 = vmatpush1.msra.mxu0 %v2273
        %2346 = vmatprep.subr.mxu0 0.0
        %2347 = vmatpush1.msra.mxu0 %v2274
        %2348 = vmatprep.subr.mxu0 0.0
        %2349 = vmatpush1.msra.mxu0 %v2275
        %2350 = vmatprep.subr.mxu0 0.0
        %2351 = vmatpush1.msra.mxu0 %v2276
        %2352 = vmatprep.subr.mxu0 0.0
        %2353 = vmatpush1.msra.mxu0 %v2277
        %2354 = vmatprep.subr.mxu0 0.0
        %2355 = vmatpush1.msra.mxu0 %v2278
        %2356 = vmatprep.subr.mxu0 0.0
        %2357 = vmatpush1.msra.mxu0 %v2279
        %2358 = vmatprep.subr.mxu0 0.0
        %2359 = vmatpush1.msra.mxu0 %v2280
        %2360 = vmatprep.subr.mxu0 0.0
        %2361 = vmatpush1.msra.mxu0 %v2281
        %2362 = vmatprep.mubr.f32.mxu0 %v463
        %2363 = vmatmul.mubr.f32.gmra.mrb[0].mxu0 %v332
        %v2364 = vpop.f32.mrb[0].mxu0
        %v2365 = vadd.f32 0.0, %v2364
        %v2366 = vpop.f32.mrb[0].mxu0
        %2367 = vmatprep.mubr.f32.mxu0 %v465
        %2368 = vmatmul.mubr.f32.gmra.mrb[0].mxu0 %v333
        %v2369 = vpop.f32.mrb[0].mxu0
        %v2370 = vadd.f32 0.0, %v2369
        %v2371 = vpop.f32.mrb[0].mxu0
        %2372 = vmatprep.mubr.f32.mxu0 %v467
        %2373 = vmatmul.mubr.f32.gmra.mrb[0].mxu0 %v334
        %v2374 = vpop.f32.mrb[0].mxu0
        %v2375 = vadd.f32 0.0, %v2374
        %v2376 = vpop.f32.mrb[0].mxu0
        %2377 = vmatprep.mubr.f32.mxu0 %v469
        %2378 = vmatmul.mubr.f32.gmra.mrb[0].mxu0 %v335
        %v2379 = vpop.f32.mrb[0].mxu0
        %v2380 = vadd.f32 0.0, %v2379
        %v2381 = vpop.f32.mrb[0].mxu0
        %2382 = vmatprep.mubr.f32.mxu0 %v471
        %2383 = vmatmul.mubr.f32.gmra.mrb[0].mxu0 %v336
        %v2384 = vpop.f32.mrb[0].mxu0
        %v2385 = vadd.f32 0.0, %v2384
        %v2386 = vpop.f32.mrb[0].mxu0
        %2387 = vmatprep.mubr.f32.mxu0 %v473
        %2388 = vmatmul.mubr.f32.gmra.mrb[0].mxu0 %v337
        %v2389 = vpop.f32.mrb[0].mxu0
        %v2390 = vadd.f32 0.0, %v2389
        %v2391 = vpop.f32.mrb[0].mxu0
        %2392 = vmatprep.mubr.f32.mxu0 %v475
        %2393 = vmatmul.mubr.f32.gmra.mrb[0].mxu0 %v338
        %v2394 = vpop.f32.mrb[0].mxu0
        %v2395 = vadd.f32 0.0, %v2394
        %v2396 = vpop.f32.mrb[0].mxu0
        %2397 = vmatprep.mubr.f32.mxu0 %v477
        %2398 = vmatmul.mubr.f32.gmra.mrb[0].mxu0 %v339
        %v2399 = vpop.f32.mrb[0].mxu0
        %v2400 = vadd.f32 0.0, %v2399
        %v2401 = vpop.f32.mrb[0].mxu0
        %2402 = vmatprep.mubr.f32.mxu0 %v479
        %2403 = vmatmul.mubr.f32.gmra.mrb[0].mxu0 %v340
        %v2404 = vpop.f32.mrb[0].mxu0
        %v2405 = vadd.f32 0.0, %v2404
        %v2406 = vpop.f32.mrb[0].mxu0
        %2407 = vmatprep.mubr.f32.mxu0 %v481
        %2408 = vmatmul.mubr.f32.gmra.mrb[0].mxu0 %v341
        %v2409 = vpop.f32.mrb[0].mxu0
        %v2410 = vadd.f32 0.0, %v2409
        %v2411 = vpop.f32.mrb[0].mxu0
        %2412 = vmatprep.mubr.f32.mxu0 %v483
        %2413 = vmatmul.mubr.f32.gmra.mrb[0].mxu0 %v342
        %v2414 = vpop.f32.mrb[0].mxu0
        %v2415 = vadd.f32 0.0, %v2414
        %v2416 = vpop.f32.mrb[0].mxu0
        %2417 = vmatprep.mubr.f32.mxu0 %v485
        %2418 = vmatmul.mubr.f32.gmra.mrb[0].mxu0 %v343
        %v2419 = vpop.f32.mrb[0].mxu0
        %v2420 = vadd.f32 0.0, %v2419
        %v2421 = vpop.f32.mrb[0].mxu0
        %2422 = vmatprep.mubr.f32.mxu0 %v487
        %2423 = vmatmul.mubr.f32.gmra.mrb[0].mxu0 %v344
        %v2424 = vpop.f32.mrb[0].mxu0
        %v2425 = vadd.f32 0.0, %v2424
        %v2426 = vpop.f32.mrb[0].mxu0
        %2427 = vmatprep.mubr.f32.mxu0 %v489
        %2428 = vmatmul.mubr.f32.gmra.mrb[0].mxu0 %v345
        %v2429 = vpop.f32.mrb[0].mxu0
        %v2430 = vadd.f32 0.0, %v2429
        %v2431 = vpop.f32.mrb[0].mxu0
        %2432 = vmatprep.mubr.f32.mxu0 %v491
        %2433 = vmatmul.mubr.f32.gmra.mrb[0].mxu0 %v346
        %v2434 = vpop.f32.mrb[0].mxu0
        %v2435 = vadd.f32 0.0, %v2434
        %v2436 = vpop.f32.mrb[0].mxu0
        %2437 = vmatprep.mubr.f32.mxu0 %v493
        %2438 = vmatmul.mubr.f32.gmra.mrb[0].mxu0 %v347
        %v2439 = vpop.f32.mrb[0].mxu0
        %v2440 = vadd.f32 0.0, %v2439
        %v2441 = vpop.f32.mrb[0].mxu0
        %2442 = vmatprep.mubr.f32.mxu0 %v495
        %2443 = vmatmul.mubr.f32.gmra.mrb[0].mxu0 %v348
        %v2444 = vpop.f32.mrb[0].mxu0
        %v2445 = vadd.f32 0.0, %v2444
        %v2446 = vpop.f32.mrb[0].mxu0
        %2447 = vmatprep.mubr.f32.mxu0 %v497
        %2448 = vmatmul.mubr.f32.gmra.mrb[0].mxu0 %v349
        %v2449 = vpop.f32.mrb[0].mxu0
        %v2450 = vadd.f32 0.0, %v2449
        %v2451 = vpop.f32.mrb[0].mxu0
        %2452 = vmatprep.mubr.f32.mxu0 %v499
        %2453 = vmatmul.mubr.f32.gmra.mrb[0].mxu0 %v350
        %v2454 = vpop.f32.mrb[0].mxu0
        %v2455 = vadd.f32 0.0, %v2454
        %v2456 = vpop.f32.mrb[0].mxu0
        %2457 = vmatprep.mubr.f32.mxu0 %v501
        %2458 = vmatmul.mubr.f32.gmra.mrb[0].mxu0 %v351
        %v2459 = vpop.f32.mrb[0].mxu0
        %v2460 = vadd.f32 0.0, %v2459
        %v2461 = vpop.f32.mrb[0].mxu0
        %2462 = vmatprep.mubr.f32.mxu0 %v503
        %2463 = vmatmul.mubr.f32.gmra.mrb[0].mxu0 %v352
        %v2464 = vpop.f32.mrb[0].mxu0
        %v2465 = vadd.f32 0.0, %v2464
        %v2466 = vpop.f32.mrb[0].mxu0
        %2467 = vmatprep.mubr.f32.mxu0 %v505
        %2468 = vmatmul.mubr.f32.gmra.mrb[0].mxu0 %v353
        %v2469 = vpop.f32.mrb[0].mxu0
        %v2470 = vadd.f32 0.0, %v2469
        %v2471 = vpop.f32.mrb[0].mxu0
        %2472 = vmatprep.mubr.f32.mxu0 %v507
        %2473 = vmatmul.mubr.f32.gmra.mrb[0].mxu0 %v354
        %v2474 = vpop.f32.mrb[0].mxu0
        %v2475 = vadd.f32 0.0, %v2474
        %v2476 = vpop.f32.mrb[0].mxu0
        %2477 = vmatprep.mubr.f32.mxu0 %v509
        %2478 = vmatmul.mubr.f32.gmra.mrb[0].mxu0 %v355
        %v2479 = vpop.f32.mrb[0].mxu0
        %v2480 = vadd.f32 0.0, %v2479
        %v2481 = vpop.f32.mrb[0].mxu0
        %2482 = vmatprep.mubr.f32.mxu0 %v511
        %2483 = vmatmul.mubr.f32.gmra.mrb[0].mxu0 %v356
        %v2484 = vpop.f32.mrb[0].mxu0
        %v2485 = vadd.f32 0.0, %v2484
        %v2486 = vpop.f32.mrb[0].mxu0
        %2487 = vmatprep.mubr.f32.mxu0 %v513
        %2488 = vmatmul.mubr.f32.gmra.mrb[0].mxu0 %v357
        %v2489 = vpop.f32.mrb[0].mxu0
        %v2490 = vadd.f32 0.0, %v2489
        %v2491 = vpop.f32.mrb[0].mxu0
        %2492 = vmatprep.mubr.f32.mxu0 %v515
        %2493 = vmatmul.mubr.f32.gmra.mrb[0].mxu0 %v358
        %v2494 = vpop.f32.mrb[0].mxu0
        %v2495 = vadd.f32 0.0, %v2494
        %v2496 = vpop.f32.mrb[0].mxu0
        %2497 = vmatprep.mubr.f32.mxu0 %v517
        %2498 = vmatmul.mubr.f32.gmra.mrb[0].mxu0 %v359
        %v2499 = vpop.f32.mrb[0].mxu0
        %v2500 = vadd.f32 0.0, %v2499
        %v2501 = vpop.f32.mrb[0].mxu0
        %2502 = vmatprep.mubr.f32.mxu0 %v519
        %2503 = vmatmul.mubr.f32.gmra.mrb[0].mxu0 %v360
        %v2504 = vpop.f32.mrb[0].mxu0
        %v2505 = vadd.f32 0.0, %v2504
        %v2506 = vpop.f32.mrb[0].mxu0
        %2507 = vmatprep.mubr.f32.mxu0 %v521
        %2508 = vmatmul.mubr.f32.gmra.mrb[0].mxu0 %v361
        %v2509 = vpop.f32.mrb[0].mxu0
        %v2510 = vadd.f32 0.0, %v2509
        %v2511 = vpop.f32.mrb[0].mxu0
        %2512 = vmatprep.mubr.f32.mxu0 %v523
        %2513 = vmatmul.mubr.f32.gmra.mrb[0].mxu0 %v362
        %v2514 = vpop.f32.mrb[0].mxu0
        %v2515 = vadd.f32 0.0, %v2514
        %v2516 = vpop.f32.mrb[0].mxu0
        %2517 = vmatprep.mubr.f32.mxu0 %v525
        %2518 = vmatmul.mubr.f32.gmra.mrb[0].mxu0 %v363
        %v2519 = vpop.f32.mrb[0].mxu0
        %v2520 = vadd.f32 0.0, %v2519
        %v2521 = vpop.f32.mrb[0].mxu0
        %2522 = vmatprep.mubr.f32.mxu0 %v527
        %2523 = vmatmul.mubr.f32.gmra.mrb[0].mxu0 %v364
        %v2524 = vpop.f32.mrb[0].mxu0
        %v2525 = vadd.f32 0.0, %v2524
        %v2526 = vpop.f32.mrb[0].mxu0
        %2527 = vmatprep.mubr.f32.mxu0 %v529
        %2528 = vmatmul.mubr.f32.gmra.mrb[0].mxu0 %v365
        %v2529 = vpop.f32.mrb[0].mxu0
        %v2530 = vadd.f32 0.0, %v2529
        %v2531 = vpop.f32.mrb[0].mxu0
        %2532 = vmatprep.mubr.f32.mxu0 %v531
        %2533 = vmatmul.mubr.f32.gmra.mrb[0].mxu0 %v366
        %v2534 = vpop.f32.mrb[0].mxu0
        %v2535 = vadd.f32 0.0, %v2534
        %v2536 = vpop.f32.mrb[0].mxu0
        %2537 = vmatprep.mubr.f32.mxu0 %v533
        %2538 = vmatmul.mubr.f32.gmra.mrb[0].mxu0 %v367
        %v2539 = vpop.f32.mrb[0].mxu0
        %v2540 = vadd.f32 0.0, %v2539
        %v2541 = vpop.f32.mrb[0].mxu0
        %2542 = vmatprep.mubr.f32.mxu0 %v535
        %2543 = vmatmul.mubr.f32.gmra.mrb[0].mxu0 %v368
        %v2544 = vpop.f32.mrb[0].mxu0
        %v2545 = vadd.f32 0.0, %v2544
        %v2546 = vpop.f32.mrb[0].mxu0
        %2547 = vmatprep.mubr.f32.mxu0 %v537
        %2548 = vmatmul.mubr.f32.gmra.mrb[0].mxu0 %v369
        %v2549 = vpop.f32.mrb[0].mxu0
        %v2550 = vadd.f32 0.0, %v2549
        %v2551 = vpop.f32.mrb[0].mxu0
        %2552 = vmatprep.mubr.f32.mxu0 %v539
        %2553 = vmatmul.mubr.f32.gmra.mrb[0].mxu0 %v370
        %v2554 = vpop.f32.mrb[0].mxu0
        %v2555 = vadd.f32 0.0, %v2554
        %v2556 = vpop.f32.mrb[0].mxu0
        %2557 = vmatprep.mubr.f32.mxu0 %v541
        %2558 = vmatmul.mubr.f32.gmra.mrb[0].mxu0 %v371
        %v2559 = vpop.f32.mrb[0].mxu0
        %v2560 = vadd.f32 0.0, %v2559
        %v2561 = vpop.f32.mrb[0].mxu0
        %2562 = vmatprep.mubr.f32.mxu0 %v543
        %2563 = vmatmul.mubr.f32.gmra.mrb[0].mxu0 %v372
        %v2564 = vpop.f32.mrb[0].mxu0
        %v2565 = vadd.f32 0.0, %v2564
        %v2566 = vpop.f32.mrb[0].mxu0
        %2567 = vmatprep.mubr.f32.mxu0 %v545
        %2568 = vmatmul.mubr.f32.gmra.mrb[0].mxu0 %v373
        %v2569 = vpop.f32.mrb[0].mxu0
        %v2570 = vadd.f32 0.0, %v2569
        %v2571 = vpop.f32.mrb[0].mxu0
        %2572 = vmatprep.mubr.f32.mxu0 %v547
        %2573 = vmatmul.mubr.f32.gmra.mrb[0].mxu0 %v374
        %v2574 = vpop.f32.mrb[0].mxu0
        %v2575 = vadd.f32 0.0, %v2574
        %v2576 = vpop.f32.mrb[0].mxu0
        %2577 = vmatprep.mubr.f32.mxu0 %v549
        %2578 = vmatmul.mubr.f32.gmra.mrb[0].mxu0 %v375
        %v2579 = vpop.f32.mrb[0].mxu0
        %v2580 = vadd.f32 0.0, %v2579
        %v2581 = vpop.f32.mrb[0].mxu0
        %2582 = vmatprep.mubr.f32.mxu0 %v551
        %2583 = vmatmul.mubr.f32.gmra.mrb[0].mxu0 %v376
        %v2584 = vpop.f32.mrb[0].mxu0
        %v2585 = vadd.f32 0.0, %v2584
        %v2586 = vpop.f32.mrb[0].mxu0
        %2587 = vmatprep.mubr.f32.mxu0 %v553
        %2588 = vmatmul.mubr.f32.gmra.mrb[0].mxu0 %v377
        %v2589 = vpop.f32.mrb[0].mxu0
        %v2590 = vadd.f32 0.0, %v2589
        %v2591 = vpop.f32.mrb[0].mxu0
        %2592 = vmatprep.mubr.f32.mxu0 %v555
        %2593 = vmatmul.mubr.f32.gmra.mrb[0].mxu0 %v378
        %v2594 = vpop.f32.mrb[0].mxu0
        %v2595 = vadd.f32 0.0, %v2594
        %v2596 = vpop.f32.mrb[0].mxu0
        %2597 = vmatprep.mubr.f32.mxu0 %v557
        %2598 = vmatmul.mubr.f32.gmra.mrb[0].mxu0 %v379
        %v2599 = vpop.f32.mrb[0].mxu0
        %v2600 = vadd.f32 0.0, %v2599
        %v2601 = vpop.f32.mrb[0].mxu0
        %2602 = vmatprep.mubr.f32.mxu0 %v559
        %2603 = vmatmul.mubr.f32.gmra.mrb[0].mxu0 %v380
        %v2604 = vpop.f32.mrb[0].mxu0
        %v2605 = vadd.f32 0.0, %v2604
        %v2606 = vpop.f32.mrb[0].mxu0
        %2607 = vmatprep.mubr.f32.mxu0 %v561
        %2608 = vmatmul.mubr.f32.gmra.mrb[0].mxu0 %v381
        %v2609 = vpop.f32.mrb[0].mxu0
        %v2610 = vadd.f32 0.0, %v2609
        %v2611 = vpop.f32.mrb[0].mxu0
        %2612 = vmatprep.mubr.f32.mxu0 %v563
        %2613 = vmatmul.mubr.f32.gmra.mrb[0].mxu0 %v382
        %v2614 = vpop.f32.mrb[0].mxu0
        %v2615 = vadd.f32 0.0, %v2614
        %v2616 = vpop.f32.mrb[0].mxu0
        %2617 = vmatprep.mubr.f32.mxu0 %v565
        %2618 = vmatmul.mubr.f32.gmra.mrb[0].mxu0 %v383
        %v2619 = vpop.f32.mrb[0].mxu0
        %v2620 = vadd.f32 0.0, %v2619
        %v2621 = vpop.f32.mrb[0].mxu0
        %2622 = vmatprep.mubr.f32.mxu0 %v567
        %2623 = vmatmul.mubr.f32.gmra.mrb[0].mxu0 %v384
        %v2624 = vpop.f32.mrb[0].mxu0
        %v2625 = vadd.f32 0.0, %v2624
        %v2626 = vpop.f32.mrb[0].mxu0
        %2627 = vmatprep.mubr.f32.mxu0 %v569
        %2628 = vmatmul.mubr.f32.gmra.mrb[0].mxu0 %v385
        %v2629 = vpop.f32.mrb[0].mxu0
        %v2630 = vadd.f32 0.0, %v2629
        %v2631 = vpop.f32.mrb[0].mxu0
        %2632 = vdwg.mxu0
        %2633 = vmatprep.subr.mxu0 0.0
        %2634 = vmatpush1.msra.mxu0 %v2282
        %2635 = vmatprep.subr.mxu0 0.0
        %2636 = vmatpush1.msra.mxu0 %v2283
        %2637 = vmatprep.subr.mxu0 0.0
        %2638 = vmatpush1.msra.mxu0 %v2284
        %2639 = vmatprep.subr.mxu0 0.0
        %2640 = vmatpush1.msra.mxu0 %v2285
        %2641 = vmatprep.subr.mxu0 0.0
        %2642 = vmatpush1.msra.mxu0 %v2286
        %2643 = vmatprep.subr.mxu0 0.0
        %2644 = vmatpush1.msra.mxu0 %v2287
        %2645 = vmatprep.subr.mxu0 0.0
        %2646 = vmatpush1.msra.mxu0 %v2288
        %2647 = vmatprep.subr.mxu0 0.0
        %2648 = vmatpush1.msra.mxu0 %v2289
        %2649 = vmatprep.subr.mxu0 0.0
        %2650 = vmatpush1.msra.mxu0 %v2290
        %2651 = vmatprep.subr.mxu0 0.0
        %2652 = vmatpush1.msra.mxu0 %v2291
        %2653 = vmatprep.subr.mxu0 0.0
        %2654 = vmatpush1.msra.mxu0 %v2292
        %2655 = vmatprep.subr.mxu0 0.0
        %2656 = vmatpush1.msra.mxu0 %v2293
        %2657 = vmatprep.subr.mxu0 0.0
        %2658 = vmatpush1.msra.mxu0 %v2294
        %2659 = vmatprep.subr.mxu0 0.0
        %2660 = vmatpush1.msra.mxu0 %v2295
        %2661 = vmatprep.subr.mxu0 0.0
        %2662 = vmatpush1.msra.mxu0 %v2296
        %2663 = vmatprep.subr.mxu0 0.0
        %2664 = vmatpush1.msra.mxu0 %v2297
        %2665 = vmatprep.subr.mxu0 0.0
        %2666 = vmatpush1.msra.mxu0 0.0
        %2667 = vmatprep.subr.mxu0 0.0
        %2668 = vmatpush1.msra.mxu0 0.0
        %2669 = vmatprep.subr.mxu0 0.0
        %2670 = vmatpush1.msra.mxu0 0.0
        %2671 = vmatprep.subr.mxu0 0.0
        %2672 = vmatpush1.msra.mxu0 0.0
        %2673 = vmatprep.subr.mxu0 0.0
        %2674 = vmatpush1.msra.mxu0 0.0
        %2675 = vmatprep.subr.mxu0 0.0
        %2676 = vmatpush1.msra.mxu0 0.0
        %2677 = vmatprep.subr.mxu0 0.0
        %2678 = vmatpush1.msra.mxu0 0.0
        %2679 = vmatprep.subr.mxu0 0.0
        %2680 = vmatpush1.msra.mxu0 0.0
        %2681 = vmatprep.subr.mxu0 0.0
        %2682 = vmatpush1.msra.mxu0 0.0
        %2683 = vmatprep.subr.mxu0 0.0
        %2684 = vmatpush1.msra.mxu0 0.0
        %2685 = vmatprep.subr.mxu0 0.0
        %2686 = vmatpush1.msra.mxu0 0.0
        %2687 = vmatprep.subr.mxu0 0.0
        %2688 = vmatpush1.msra.mxu0 0.0
        %2689 = vmatprep.subr.mxu0 0.0
        %2690 = vmatpush1.msra.mxu0 0.0
        %2691 = vmatprep.subr.mxu0 0.0
        %2692 = vmatpush1.msra.mxu0 0.0
        %2693 = vmatprep.subr.mxu0 0.0
        %2694 = vmatpush1.msra.mxu0 0.0
        %2695 = vmatprep.subr.mxu0 0.0
        %2696 = vmatpush1.msra.mxu0 0.0
        %2697 = vmatprep.mubr.f32.mxu0 0.0
        %2698 = vmatmul.mubr.f32.gmra.mrb[0].mxu0 %v645
        %v2699 = vpop.f32.mrb[0].mxu0
        %v2700 = vadd.f32 %v2365, %v2699
        %v2701 = vpop.f32.mrb[0].mxu0
        %2702 = vmatprep.mubr.f32.mxu0 0.0
        %2703 = vmatmul.mubr.f32.gmra.mrb[0].mxu0 %v647
        %v2704 = vpop.f32.mrb[0].mxu0
        %v2705 = vadd.f32 %v2370, %v2704
        %v2706 = vpop.f32.mrb[0].mxu0
        %2707 = vmatprep.mubr.f32.mxu0 0.0
        %2708 = vmatmul.mubr.f32.gmra.mrb[0].mxu0 %v649
        %v2709 = vpop.f32.mrb[0].mxu0
        %v2710 = vadd.f32 %v2375, %v2709
        %v2711 = vpop.f32.mrb[0].mxu0
        %2712 = vmatprep.mubr.f32.mxu0 0.0
        %2713 = vmatmul.mubr.f32.gmra.mrb[0].mxu0 %v651
        %v2714 = vpop.f32.mrb[0].mxu0
        %v2715 = vadd.f32 %v2380, %v2714
        %v2716 = vpop.f32.mrb[0].mxu0
        %2717 = vmatprep.mubr.f32.mxu0 0.0
        %2718 = vmatmul.mubr.f32.gmra.mrb[0].mxu0 %v653
        %v2719 = vpop.f32.mrb[0].mxu0
        %v2720 = vadd.f32 %v2385, %v2719
        %v2721 = vpop.f32.mrb[0].mxu0
        %2722 = vmatprep.mubr.f32.mxu0 0.0
        %2723 = vmatmul.mubr.f32.gmra.mrb[0].mxu0 %v655
        %v2724 = vpop.f32.mrb[0].mxu0
        %v2725 = vadd.f32 %v2390, %v2724
        %v2726 = vpop.f32.mrb[0].mxu0
        %2727 = vmatprep.mubr.f32.mxu0 0.0
        %2728 = vmatmul.mubr.f32.gmra.mrb[0].mxu0 %v657
        %v2729 = vpop.f32.mrb[0].mxu0
        %v2730 = vadd.f32 %v2395, %v2729
        %v2731 = vpop.f32.mrb[0].mxu0
        %2732 = vmatprep.mubr.f32.mxu0 0.0
        %2733 = vmatmul.mubr.f32.gmra.mrb[0].mxu0 %v659
        %v2734 = vpop.f32.mrb[0].mxu0
        %v2735 = vadd.f32 %v2400, %v2734
        %v2736 = vpop.f32.mrb[0].mxu0
        %2737 = vmatprep.mubr.f32.mxu0 0.0
        %2738 = vmatmul.mubr.f32.gmra.mrb[0].mxu0 %v661
        %v2739 = vpop.f32.mrb[0].mxu0
        %v2740 = vadd.f32 %v2405, %v2739
        %v2741 = vpop.f32.mrb[0].mxu0
        %2742 = vmatprep.mubr.f32.mxu0 0.0
        %2743 = vmatmul.mubr.f32.gmra.mrb[0].mxu0 %v663
        %v2744 = vpop.f32.mrb[0].mxu0
        %v2745 = vadd.f32 %v2410, %v2744
        %v2746 = vpop.f32.mrb[0].mxu0
        %2747 = vmatprep.mubr.f32.mxu0 0.0
        %2748 = vmatmul.mubr.f32.gmra.mrb[0].mxu0 %v665
        %v2749 = vpop.f32.mrb[0].mxu0
        %v2750 = vadd.f32 %v2415, %v2749
        %v2751 = vpop.f32.mrb[0].mxu0
        %2752 = vmatprep.mubr.f32.mxu0 0.0
        %2753 = vmatmul.mubr.f32.gmra.mrb[0].mxu0 %v667
        %v2754 = vpop.f32.mrb[0].mxu0
        %v2755 = vadd.f32 %v2420, %v2754
        %v2756 = vpop.f32.mrb[0].mxu0
        %2757 = vmatprep.mubr.f32.mxu0 0.0
        %2758 = vmatmul.mubr.f32.gmra.mrb[0].mxu0 %v669
        %v2759 = vpop.f32.mrb[0].mxu0
        %v2760 = vadd.f32 %v2425, %v2759
        %v2761 = vpop.f32.mrb[0].mxu0
        %2762 = vmatprep.mubr.f32.mxu0 0.0
        %2763 = vmatmul.mubr.f32.gmra.mrb[0].mxu0 %v671
        %v2764 = vpop.f32.mrb[0].mxu0
        %v2765 = vadd.f32 %v2430, %v2764
        %v2766 = vpop.f32.mrb[0].mxu0
        %2767 = vmatprep.mubr.f32.mxu0 0.0
        %2768 = vmatmul.mubr.f32.gmra.mrb[0].mxu0 %v673
        %v2769 = vpop.f32.mrb[0].mxu0
        %v2770 = vadd.f32 %v2435, %v2769
        %v2771 = vpop.f32.mrb[0].mxu0
        %2772 = vmatprep.mubr.f32.mxu0 0.0
        %2773 = vmatmul.mubr.f32.gmra.mrb[0].mxu0 %v675
        %v2774 = vpop.f32.mrb[0].mxu0
        %v2775 = vadd.f32 %v2440, %v2774
        %v2776 = vpop.f32.mrb[0].mxu0
        %2777 = vmatprep.mubr.f32.mxu0 0.0
        %2778 = vmatmul.mubr.f32.gmra.mrb[0].mxu0 %v677
        %v2779 = vpop.f32.mrb[0].mxu0
        %v2780 = vadd.f32 %v2445, %v2779
        %v2781 = vpop.f32.mrb[0].mxu0
        %2782 = vmatprep.mubr.f32.mxu0 0.0
        %2783 = vmatmul.mubr.f32.gmra.mrb[0].mxu0 %v679
        %v2784 = vpop.f32.mrb[0].mxu0
        %v2785 = vadd.f32 %v2450, %v2784
        %v2786 = vpop.f32.mrb[0].mxu0
        %2787 = vmatprep.mubr.f32.mxu0 0.0
        %2788 = vmatmul.mubr.f32.gmra.mrb[0].mxu0 %v681
        %v2789 = vpop.f32.mrb[0].mxu0
        %v2790 = vadd.f32 %v2455, %v2789
        %v2791 = vpop.f32.mrb[0].mxu0
        %2792 = vmatprep.mubr.f32.mxu0 0.0
        %2793 = vmatmul.mubr.f32.gmra.mrb[0].mxu0 %v683
        %v2794 = vpop.f32.mrb[0].mxu0
        %v2795 = vadd.f32 %v2460, %v2794
        %v2796 = vpop.f32.mrb[0].mxu0
        %2797 = vmatprep.mubr.f32.mxu0 0.0
        %2798 = vmatmul.mubr.f32.gmra.mrb[0].mxu0 %v685
        %v2799 = vpop.f32.mrb[0].mxu0
        %v2800 = vadd.f32 %v2465, %v2799
        %v2801 = vpop.f32.mrb[0].mxu0
        %2802 = vmatprep.mubr.f32.mxu0 0.0
        %2803 = vmatmul.mubr.f32.gmra.mrb[0].mxu0 %v687
        %v2804 = vpop.f32.mrb[0].mxu0
        %v2805 = vadd.f32 %v2470, %v2804
        %v2806 = vpop.f32.mrb[0].mxu0
        %2807 = vmatprep.mubr.f32.mxu0 0.0
        %2808 = vmatmul.mubr.f32.gmra.mrb[0].mxu0 %v689
        %v2809 = vpop.f32.mrb[0].mxu0
        %v2810 = vadd.f32 %v2475, %v2809
        %v2811 = vpop.f32.mrb[0].mxu0
        %2812 = vmatprep.mubr.f32.mxu0 0.0
        %2813 = vmatmul.mubr.f32.gmra.mrb[0].mxu0 %v691
        %v2814 = vpop.f32.mrb[0].mxu0
        %v2815 = vadd.f32 %v2480, %v2814
        %v2816 = vpop.f32.mrb[0].mxu0
        %2817 = vmatprep.mubr.f32.mxu0 0.0
        %2818 = vmatmul.mubr.f32.gmra.mrb[0].mxu0 %v693
        %v2819 = vpop.f32.mrb[0].mxu0
        %v2820 = vadd.f32 %v2485, %v2819
        %v2821 = vpop.f32.mrb[0].mxu0
        %2822 = vmatprep.mubr.f32.mxu0 0.0
        %2823 = vmatmul.mubr.f32.gmra.mrb[0].mxu0 %v695
        %v2824 = vpop.f32.mrb[0].mxu0
        %v2825 = vadd.f32 %v2490, %v2824
        %v2826 = vpop.f32.mrb[0].mxu0
        %2827 = vmatprep.mubr.f32.mxu0 0.0
        %2828 = vmatmul.mubr.f32.gmra.mrb[0].mxu0 %v697
        %v2829 = vpop.f32.mrb[0].mxu0
        %v2830 = vadd.f32 %v2495, %v2829
        %v2831 = vpop.f32.mrb[0].mxu0
        %2832 = vmatprep.mubr.f32.mxu0 0.0
        %2833 = vmatmul.mubr.f32.gmra.mrb[0].mxu0 %v699
        %v2834 = vpop.f32.mrb[0].mxu0
        %v2835 = vadd.f32 %v2500, %v2834
        %v2836 = vpop.f32.mrb[0].mxu0
        %2837 = vmatprep.mubr.f32.mxu0 0.0
        %2838 = vmatmul.mubr.f32.gmra.mrb[0].mxu0 %v701
        %v2839 = vpop.f32.mrb[0].mxu0
        %v2840 = vadd.f32 %v2505, %v2839
        %v2841 = vpop.f32.mrb[0].mxu0
        %2842 = vmatprep.mubr.f32.mxu0 0.0
        %2843 = vmatmul.mubr.f32.gmra.mrb[0].mxu0 %v703
        %v2844 = vpop.f32.mrb[0].mxu0
        %v2845 = vadd.f32 %v2510, %v2844
        %v2846 = vpop.f32.mrb[0].mxu0
        %2847 = vmatprep.mubr.f32.mxu0 0.0
        %2848 = vmatmul.mubr.f32.gmra.mrb[0].mxu0 %v705
        %v2849 = vpop.f32.mrb[0].mxu0
        %v2850 = vadd.f32 %v2515, %v2849
        %v2851 = vpop.f32.mrb[0].mxu0
        %2852 = vmatprep.mubr.f32.mxu0 0.0
        %2853 = vmatmul.mubr.f32.gmra.mrb[0].mxu0 %v707
        %v2854 = vpop.f32.mrb[0].mxu0
        %v2855 = vadd.f32 %v2520, %v2854
        %v2856 = vpop.f32.mrb[0].mxu0
        %2857 = vmatprep.mubr.f32.mxu0 0.0
        %2858 = vmatmul.mubr.f32.gmra.mrb[0].mxu0 %v709
        %v2859 = vpop.f32.mrb[0].mxu0
        %v2860 = vadd.f32 %v2525, %v2859
        %v2861 = vpop.f32.mrb[0].mxu0
        %2862 = vmatprep.mubr.f32.mxu0 0.0
        %2863 = vmatmul.mubr.f32.gmra.mrb[0].mxu0 %v711
        %v2864 = vpop.f32.mrb[0].mxu0
        %v2865 = vadd.f32 %v2530, %v2864
        %v2866 = vpop.f32.mrb[0].mxu0
        %2867 = vmatprep.mubr.f32.mxu0 0.0
        %2868 = vmatmul.mubr.f32.gmra.mrb[0].mxu0 %v713
        %v2869 = vpop.f32.mrb[0].mxu0
        %v2870 = vadd.f32 %v2535, %v2869
        %v2871 = vpop.f32.mrb[0].mxu0
        %2872 = vmatprep.mubr.f32.mxu0 0.0
        %2873 = vmatmul.mubr.f32.gmra.mrb[0].mxu0 %v715
        %v2874 = vpop.f32.mrb[0].mxu0
        %v2875 = vadd.f32 %v2540, %v2874
        %v2876 = vpop.f32.mrb[0].mxu0
        %2877 = vmatprep.mubr.f32.mxu0 0.0
        %2878 = vmatmul.mubr.f32.gmra.mrb[0].mxu0 %v717
        %v2879 = vpop.f32.mrb[0].mxu0
        %v2880 = vadd.f32 %v2545, %v2879
        %v2881 = vpop.f32.mrb[0].mxu0
        %2882 = vmatprep.mubr.f32.mxu0 0.0
        %2883 = vmatmul.mubr.f32.gmra.mrb[0].mxu0 %v719
        %v2884 = vpop.f32.mrb[0].mxu0
        %v2885 = vadd.f32 %v2550, %v2884
        %v2886 = vpop.f32.mrb[0].mxu0
        %2887 = vmatprep.mubr.f32.mxu0 0.0
        %2888 = vmatmul.mubr.f32.gmra.mrb[0].mxu0 %v721
        %v2889 = vpop.f32.mrb[0].mxu0
        %v2890 = vadd.f32 %v2555, %v2889
        %v2891 = vpop.f32.mrb[0].mxu0
        %2892 = vmatprep.mubr.f32.mxu0 0.0
        %2893 = vmatmul.mubr.f32.gmra.mrb[0].mxu0 %v723
        %v2894 = vpop.f32.mrb[0].mxu0
        %v2895 = vadd.f32 %v2560, %v2894
        %v2896 = vpop.f32.mrb[0].mxu0
        %2897 = vmatprep.mubr.f32.mxu0 0.0
        %2898 = vmatmul.mubr.f32.gmra.mrb[0].mxu0 %v725
        %v2899 = vpop.f32.mrb[0].mxu0
        %v2900 = vadd.f32 %v2565, %v2899
        %v2901 = vpop.f32.mrb[0].mxu0
        %2902 = vmatprep.mubr.f32.mxu0 0.0
        %2903 = vmatmul.mubr.f32.gmra.mrb[0].mxu0 %v727
        %v2904 = vpop.f32.mrb[0].mxu0
        %v2905 = vadd.f32 %v2570, %v2904
        %v2906 = vpop.f32.mrb[0].mxu0
        %2907 = vmatprep.mubr.f32.mxu0 0.0
        %2908 = vmatmul.mubr.f32.gmra.mrb[0].mxu0 %v729
        %v2909 = vpop.f32.mrb[0].mxu0
        %v2910 = vadd.f32 %v2575, %v2909
        %v2911 = vpop.f32.mrb[0].mxu0
        %2912 = vmatprep.mubr.f32.mxu0 0.0
        %2913 = vmatmul.mubr.f32.gmra.mrb[0].mxu0 %v731
        %v2914 = vpop.f32.mrb[0].mxu0
        %v2915 = vadd.f32 %v2580, %v2914
        %v2916 = vpop.f32.mrb[0].mxu0
        %2917 = vmatprep.mubr.f32.mxu0 0.0
        %2918 = vmatmul.mubr.f32.gmra.mrb[0].mxu0 %v733
        %v2919 = vpop.f32.mrb[0].mxu0
        %v2920 = vadd.f32 %v2585, %v2919
        %v2921 = vpop.f32.mrb[0].mxu0
        %2922 = vmatprep.mubr.f32.mxu0 0.0
        %2923 = vmatmul.mubr.f32.gmra.mrb[0].mxu0 %v735
        %v2924 = vpop.f32.mrb[0].mxu0
        %v2925 = vadd.f32 %v2590, %v2924
        %v2926 = vpop.f32.mrb[0].mxu0
        %2927 = vmatprep.mubr.f32.mxu0 0.0
        %2928 = vmatmul.mubr.f32.gmra.mrb[0].mxu0 %v737
        %v2929 = vpop.f32.mrb[0].mxu0
        %v2930 = vadd.f32 %v2595, %v2929
        %v2931 = vpop.f32.mrb[0].mxu0
        %2932 = vmatprep.mubr.f32.mxu0 0.0
        %2933 = vmatmul.mubr.f32.gmra.mrb[0].mxu0 %v739
        %v2934 = vpop.f32.mrb[0].mxu0
        %v2935 = vadd.f32 %v2600, %v2934
        %v2936 = vpop.f32.mrb[0].mxu0
        %2937 = vmatprep.mubr.f32.mxu0 0.0
        %2938 = vmatmul.mubr.f32.gmra.mrb[0].mxu0 %v741
        %v2939 = vpop.f32.mrb[0].mxu0
        %v2940 = vadd.f32 %v2605, %v2939
        %v2941 = vpop.f32.mrb[0].mxu0
        %2942 = vmatprep.mubr.f32.mxu0 0.0
        %2943 = vmatmul.mubr.f32.gmra.mrb[0].mxu0 %v743
        %v2944 = vpop.f32.mrb[0].mxu0
        %v2945 = vadd.f32 %v2610, %v2944
        %v2946 = vpop.f32.mrb[0].mxu0
        %2947 = vmatprep.mubr.f32.mxu0 0.0
        %2948 = vmatmul.mubr.f32.gmra.mrb[0].mxu0 %v745
        %v2949 = vpop.f32.mrb[0].mxu0
        %v2950 = vadd.f32 %v2615, %v2949
        %v2951 = vpop.f32.mrb[0].mxu0
        %2952 = vmatprep.mubr.f32.mxu0 0.0
        %2953 = vmatmul.mubr.f32.gmra.mrb[0].mxu0 %v747
        %v2954 = vpop.f32.mrb[0].mxu0
        %v2955 = vadd.f32 %v2620, %v2954
        %v2956 = vpop.f32.mrb[0].mxu0
        %2957 = vmatprep.mubr.f32.mxu0 0.0
        %2958 = vmatmul.mubr.f32.gmra.mrb[0].mxu0 %v749
        %v2959 = vpop.f32.mrb[0].mxu0
        %v2960 = vadd.f32 %v2625, %v2959
        %v2961 = vpop.f32.mrb[0].mxu0
        %2962 = vmatprep.mubr.f32.mxu0 0.0
        %2963 = vmatmul.mubr.f32.gmra.mrb[0].mxu0 %v751
        %v2964 = vpop.f32.mrb[0].mxu0
        %v2965 = vadd.f32 %v2630, %v2964
        %v2966 = vpop.f32.mrb[0].mxu0
        %2967 = vdwg.mxu0
        %v2968 = vadd.f32 %v1981, %v2700
        %v2969 = vadd.f32 %v1986, %v2705
        %v2970 = vadd.f32 %v1991, %v2710
        %v2971 = vadd.f32 %v1996, %v2715
        %v2972 = vadd.f32 %v2001, %v2720
        %v2973 = vadd.f32 %v2006, %v2725
        %v2974 = vadd.f32 %v2011, %v2730
        %v2975 = vadd.f32 %v2016, %v2735
        %v2976 = vadd.f32 %v2021, %v2740
        %v2977 = vadd.f32 %v2026, %v2745
        %v2978 = vadd.f32 %v2031, %v2750
        %v2979 = vadd.f32 %v2036, %v2755
        %v2980 = vadd.f32 %v2041, %v2760
        %v2981 = vadd.f32 %v2046, %v2765
        %v2982 = vadd.f32 %v2051, %v2770
        %v2983 = vadd.f32 %v2056, %v2775
        %v2984 = vadd.f32 %v2061, %v2780
        %v2985 = vadd.f32 %v2066, %v2785
        %v2986 = vadd.f32 %v2071, %v2790
        %v2987 = vadd.f32 %v2076, %v2795
        %v2988 = vadd.f32 %v2081, %v2800
        %v2989 = vadd.f32 %v2086, %v2805
        %v2990 = vadd.f32 %v2091, %v2810
        %v2991 = vadd.f32 %v2096, %v2815
        %v2992 = vadd.f32 %v2101, %v2820
        %v2993 = vadd.f32 %v2106, %v2825
        %v2994 = vadd.f32 %v2111, %v2830
        %v2995 = vadd.f32 %v2116, %v2835
        %v2996 = vadd.f32 %v2121, %v2840
        %v2997 = vadd.f32 %v2126, %v2845
        %v2998 = vadd.f32 %v2131, %v2850
        %v2999 = vadd.f32 %v2136, %v2855
        %v3000 = vadd.f32 %v2141, %v2860
        %v3001 = vadd.f32 %v2146, %v2865
        %v3002 = vadd.f32 %v2151, %v2870
        %v3003 = vadd.f32 %v2156, %v2875
        %v3004 = vadd.f32 %v2161, %v2880
        %v3005 = vadd.f32 %v2166, %v2885
        %v3006 = vadd.f32 %v2171, %v2890
        %v3007 = vadd.f32 %v2176, %v2895
        %v3008 = vadd.f32 %v2181, %v2900
        %v3009 = vadd.f32 %v2186, %v2905
        %v3010 = vadd.f32 %v2191, %v2910
        %v3011 = vadd.f32 %v2196, %v2915
        %v3012 = vadd.f32 %v2201, %v2920
        %v3013 = vadd.f32 %v2206, %v2925
        %v3014 = vadd.f32 %v2211, %v2930
        %v3015 = vadd.f32 %v2216, %v2935
        %v3016 = vadd.f32 %v2221, %v2940
        %v3017 = vadd.f32 %v2226, %v2945
        %v3018 = vadd.f32 %v2231, %v2950
        %v3019 = vadd.f32 %v2236, %v2955
        %v3020 = vadd.f32 %v2241, %v2960
        %v3021 = vadd.f32 %v2246, %v2965
        %v3022 = vld [vmem:[%s2] sm:$0x1]
        %v3024 = vlaneseq
        %v3025 = vshrl.u32 %v3024, 7
        %v3026 = vsub.s32 0, %v3025
        %v3027 = vrot.slane %v3022, %v3026
        %v3029 = vmul.f32 %v2968, %v3027
        %v3030 = vmul.f32 %v2969, %v3027
        %v3031 = vmul.f32 %v2970, %v3027
        %v3032 = vmul.f32 %v2971, %v3027
        %v3033 = vmul.f32 %v2972, %v3027
        %v3034 = vmul.f32 %v2973, %v3027
        %v3035 = vmul.f32 %v2974, %v3027
        %v3036 = vmul.f32 %v2975, %v3027
        %v3037 = vmul.f32 %v2976, %v3027
        %v3038 = vmul.f32 %v2977, %v3027
        %v3039 = vmul.f32 %v2978, %v3027
        %v3040 = vmul.f32 %v2979, %v3027
        %v3041 = vmul.f32 %v2980, %v3027
        %v3042 = vmul.f32 %v2981, %v3027
        %v3043 = vmul.f32 %v2982, %v3027
        %v3044 = vmul.f32 %v2983, %v3027
        %v3045 = vmul.f32 %v2984, %v3027
        %v3046 = vmul.f32 %v2985, %v3027
        %v3047 = vmul.f32 %v2986, %v3027
        %v3048 = vmul.f32 %v2987, %v3027
        %v3049 = vmul.f32 %v2988, %v3027
        %v3050 = vmul.f32 %v2989, %v3027
        %v3051 = vmul.f32 %v2990, %v3027
        %v3052 = vmul.f32 %v2991, %v3027
        %v3053 = vmul.f32 %v2992, %v3027
        %v3054 = vmul.f32 %v2993, %v3027
        %v3055 = vmul.f32 %v2994, %v3027
        %v3056 = vmul.f32 %v2995, %v3027
        %v3057 = vmul.f32 %v2996, %v3027
        %v3058 = vmul.f32 %v2997, %v3027
        %v3059 = vmul.f32 %v2998, %v3027
        %v3060 = vmul.f32 %v2999, %v3027
        %v3061 = vmul.f32 %v3000, %v3027
        %v3062 = vmul.f32 %v3001, %v3027
        %v3063 = vmul.f32 %v3002, %v3027
        %v3064 = vmul.f32 %v3003, %v3027
        %v3065 = vmul.f32 %v3004, %v3027
        %v3066 = vmul.f32 %v3005, %v3027
        %v3067 = vmul.f32 %v3006, %v3027
        %v3068 = vmul.f32 %v3007, %v3027
        %v3069 = vmul.f32 %v3008, %v3027
        %v3070 = vmul.f32 %v3009, %v3027
        %v3071 = vmul.f32 %v3010, %v3027
        %v3072 = vmul.f32 %v3011, %v3027
        %v3073 = vmul.f32 %v3012, %v3027
        %v3074 = vmul.f32 %v3013, %v3027
        %v3075 = vmul.f32 %v3014, %v3027
        %v3076 = vmul.f32 %v3015, %v3027
        %v3077 = vmul.f32 %v3016, %v3027
        %v3078 = vmul.f32 %v3017, %v3027
        %v3079 = vmul.f32 %v3018, %v3027
        %v3080 = vmul.f32 %v3019, %v3027
        %v3081 = vmul.f32 %v3020, %v3027
        %v3082 = vmul.f32 %v3021, %v3027
        %v3083 = vld [vmem:[%s3] sm:$0x1]
        %v3085 = vlaneseq
        %v3086 = vshrl.u32 %v3085, 7
        %v3087 = vsub.s32 0, %v3086
        %v3088 = vrot.slane %v3083, %v3087
        %v3090 = vadd.f32 %v3029, %v3088
        %v3091 = vadd.f32 %v3030, %v3088
        %v3092 = vadd.f32 %v3031, %v3088
        %v3093 = vadd.f32 %v3032, %v3088
        %v3094 = vadd.f32 %v3033, %v3088
        %v3095 = vadd.f32 %v3034, %v3088
        %v3096 = vadd.f32 %v3035, %v3088
        %v3097 = vadd.f32 %v3036, %v3088
        %v3098 = vadd.f32 %v3037, %v3088
        %v3099 = vadd.f32 %v3038, %v3088
        %v3100 = vadd.f32 %v3039, %v3088
        %v3101 = vadd.f32 %v3040, %v3088
        %v3102 = vadd.f32 %v3041, %v3088
        %v3103 = vadd.f32 %v3042, %v3088
        %v3104 = vadd.f32 %v3043, %v3088
        %v3105 = vadd.f32 %v3044, %v3088
        %v3106 = vadd.f32 %v3045, %v3088
        %v3107 = vadd.f32 %v3046, %v3088
        %v3108 = vadd.f32 %v3047, %v3088
        %v3109 = vadd.f32 %v3048, %v3088
        %v3110 = vadd.f32 %v3049, %v3088
        %v3111 = vadd.f32 %v3050, %v3088
        %v3112 = vadd.f32 %v3051, %v3088
        %v3113 = vadd.f32 %v3052, %v3088
        %v3114 = vadd.f32 %v3053, %v3088
        %v3115 = vadd.f32 %v3054, %v3088
        %v3116 = vadd.f32 %v3055, %v3088
        %v3117 = vadd.f32 %v3056, %v3088
        %v3118 = vadd.f32 %v3057, %v3088
        %v3119 = vadd.f32 %v3058, %v3088
        %v3120 = vadd.f32 %v3059, %v3088
        %v3121 = vadd.f32 %v3060, %v3088
        %v3122 = vadd.f32 %v3061, %v3088
        %v3123 = vadd.f32 %v3062, %v3088
        %v3124 = vadd.f32 %v3063, %v3088
        %v3125 = vadd.f32 %v3064, %v3088
        %v3126 = vadd.f32 %v3065, %v3088
        %v3127 = vadd.f32 %v3066, %v3088
        %v3128 = vadd.f32 %v3067, %v3088
        %v3129 = vadd.f32 %v3068, %v3088
        %v3130 = vadd.f32 %v3069, %v3088
        %v3131 = vadd.f32 %v3070, %v3088
        %v3132 = vadd.f32 %v3071, %v3088
        %v3133 = vadd.f32 %v3072, %v3088
        %v3134 = vadd.f32 %v3073, %v3088
        %v3135 = vadd.f32 %v3074, %v3088
        %v3136 = vadd.f32 %v3075, %v3088
        %v3137 = vadd.f32 %v3076, %v3088
        %v3138 = vadd.f32 %v3077, %v3088
        %v3139 = vadd.f32 %v3078, %v3088
        %v3140 = vadd.f32 %v3079, %v3088
        %v3141 = vadd.f32 %v3080, %v3088
        %v3142 = vadd.f32 %v3081, %v3088
        %v3143 = vadd.f32 %v3082, %v3088
        %v3144 = vmax.f32 %v3090, 0.0
        %v3145 = vmax.f32 %v3091, 0.0
        %v3146 = vmax.f32 %v3092, 0.0
        %v3147 = vmax.f32 %v3093, 0.0
        %v3148 = vmax.f32 %v3094, 0.0
        %v3149 = vmax.f32 %v3095, 0.0
        %v3150 = vmax.f32 %v3096, 0.0
        %v3151 = vmax.f32 %v3097, 0.0
        %v3152 = vmax.f32 %v3098, 0.0
        %v3153 = vmax.f32 %v3099, 0.0
        %v3154 = vmax.f32 %v3100, 0.0
        %v3155 = vmax.f32 %v3101, 0.0
        %v3156 = vmax.f32 %v3102, 0.0
        %v3157 = vmax.f32 %v3103, 0.0
        %v3158 = vmax.f32 %v3104, 0.0
        %v3159 = vmax.f32 %v3105, 0.0
        %v3160 = vmax.f32 %v3106, 0.0
        %v3161 = vmax.f32 %v3107, 0.0
        %v3162 = vmax.f32 %v3108, 0.0
        %v3163 = vmax.f32 %v3109, 0.0
        %v3164 = vmax.f32 %v3110, 0.0
        %v3165 = vmax.f32 %v3111, 0.0
        %v3166 = vmax.f32 %v3112, 0.0
        %v3167 = vmax.f32 %v3113, 0.0
        %v3168 = vmax.f32 %v3114, 0.0
        %v3169 = vmax.f32 %v3115, 0.0
        %v3170 = vmax.f32 %v3116, 0.0
        %v3171 = vmax.f32 %v3117, 0.0
        %v3172 = vmax.f32 %v3118, 0.0
        %v3173 = vmax.f32 %v3119, 0.0
        %v3174 = vmax.f32 %v3120, 0.0
        %v3175 = vmax.f32 %v3121, 0.0
        %v3176 = vmax.f32 %v3122, 0.0
        %v3177 = vmax.f32 %v3123, 0.0
        %v3178 = vmax.f32 %v3124, 0.0
        %v3179 = vmax.f32 %v3125, 0.0
        %v3180 = vmax.f32 %v3126, 0.0
        %v3181 = vmax.f32 %v3127, 0.0
        %v3182 = vmax.f32 %v3128, 0.0
        %v3183 = vmax.f32 %v3129, 0.0
        %v3184 = vmax.f32 %v3130, 0.0
        %v3185 = vmax.f32 %v3131, 0.0
        %v3186 = vmax.f32 %v3132, 0.0
        %v3187 = vmax.f32 %v3133, 0.0
        %v3188 = vmax.f32 %v3134, 0.0
        %v3189 = vmax.f32 %v3135, 0.0
        %v3190 = vmax.f32 %v3136, 0.0
        %v3191 = vmax.f32 %v3137, 0.0
        %v3192 = vmax.f32 %v3138, 0.0
        %v3193 = vmax.f32 %v3139, 0.0
        %v3194 = vmax.f32 %v3140, 0.0
        %v3195 = vmax.f32 %v3141, 0.0
        %v3196 = vmax.f32 %v3142, 0.0
        %v3197 = vmax.f32 %v3143, 0.0
        %v3198 = vlaneseq
        %v3199 = vshrl.u32 %v3198, 7
        %v3200 = vadd.s32 %v3199, 8
        %v3201 = vadd.s32 %v3199, 16
        %vm3202 = vcmp.ge.s32.totalorder %v3199, 1
        %vm3203 = vcmp.ge.s32.totalorder %v3200, 1
        %vm3204 = vcmp.ge.s32.totalorder %v3201, 1
        %vm3205 = vmand 0, %vm3202
        %vm3206 = vmand 0, %vm3203
        %vm3207 = vmand 0, %vm3204
        %vm3208 = vmand 1, %vm3202
        %vm3209 = vmand 1, %vm3203
        %vm3210 = vmand 1, %vm3204
        %vm3211 = vcmp.le.s32.totalorder %v3199, 16
        %vm3212 = vcmp.le.s32.totalorder %v3200, 16
        %vm3213 = vcmp.le.s32.totalorder %v3201, 16
        %vm3214 = vmand %vm3205, %vm3211
        %vm3215 = vmand %vm3206, %vm3212
        %vm3216 = vmand %vm3207, %vm3213
        %vm3217 = vmand %vm3208, %vm3211
        %vm3218 = vmand %vm3209, %vm3212
        %vm3219 = vmand %vm3210, %vm3213
        %v3220 = vsel %vm3214, %v3144, 0.0
        %v3221 = vsel %vm3215, %v3145, 0.0
        %v3222 = vsel %vm3216, %v3146, 0.0
        %v3223 = vsel %vm3217, %v3147, 0.0
        %v3224 = vsel %vm3218, %v3148, 0.0
        %v3225 = vsel %vm3219, %v3149, 0.0
        %v3226 = vsel %vm3217, %v3150, 0.0
        %v3227 = vsel %vm3218, %v3151, 0.0
        %v3228 = vsel %vm3219, %v3152, 0.0
        %v3229 = vsel %vm3217, %v3153, 0.0
        %v3230 = vsel %vm3218, %v3154, 0.0
        %v3231 = vsel %vm3219, %v3155, 0.0
        %v3232 = vsel %vm3217, %v3156, 0.0
        %v3233 = vsel %vm3218, %v3157, 0.0
        %v3234 = vsel %vm3219, %v3158, 0.0
        %v3235 = vsel %vm3217, %v3159, 0.0
        %v3236 = vsel %vm3218, %v3160, 0.0
        %v3237 = vsel %vm3219, %v3161, 0.0
        %v3238 = vsel %vm3217, %v3162, 0.0
        %v3239 = vsel %vm3218, %v3163, 0.0
        %v3240 = vsel %vm3219, %v3164, 0.0
        %v3241 = vsel %vm3217, %v3165, 0.0
        %v3242 = vsel %vm3218, %v3166, 0.0
        %v3243 = vsel %vm3219, %v3167, 0.0
        %v3244 = vsel %vm3217, %v3168, 0.0
        %v3245 = vsel %vm3218, %v3169, 0.0
        %v3246 = vsel %vm3219, %v3170, 0.0
        %v3247 = vsel %vm3217, %v3171, 0.0
        %v3248 = vsel %vm3218, %v3172, 0.0
        %v3249 = vsel %vm3219, %v3173, 0.0
        %v3250 = vsel %vm3217, %v3174, 0.0
        %v3251 = vsel %vm3218, %v3175, 0.0
        %v3252 = vsel %vm3219, %v3176, 0.0
        %v3253 = vsel %vm3217, %v3177, 0.0
        %v3254 = vsel %vm3218, %v3178, 0.0
        %v3255 = vsel %vm3219, %v3179, 0.0
        %v3256 = vsel %vm3217, %v3180, 0.0
        %v3257 = vsel %vm3218, %v3181, 0.0
        %v3258 = vsel %vm3219, %v3182, 0.0
        %v3259 = vsel %vm3217, %v3183, 0.0
        %v3260 = vsel %vm3218, %v3184, 0.0
        %v3261 = vsel %vm3219, %v3185, 0.0
        %v3262 = vsel %vm3217, %v3186, 0.0
        %v3263 = vsel %vm3218, %v3187, 0.0
        %v3264 = vsel %vm3219, %v3188, 0.0
        %v3265 = vsel %vm3217, %v3189, 0.0
        %v3266 = vsel %vm3218, %v3190, 0.0
        %v3267 = vsel %vm3219, %v3191, 0.0
        %v3268 = vsel %vm3217, %v3192, 0.0
        %v3269 = vsel %vm3218, %v3193, 0.0
        %v3270 = vsel %vm3219, %v3194, 0.0
        %v3271 = vsel %vm3214, %v3195, 0.0
        %v3272 = vsel %vm3215, %v3196, 0.0
        %v3273 = vsel %vm3216, %v3197, 0.0
        %v3329 = vrot.slane %v3220, 1
        %v3330 = vrot.slane %v3221, 1
        %v3331 = vsel %vm448, %v3329, %v3330
        %v3332 = vrot.slane %v3222, 1
        %v3333 = vsel %vm448, %v3330, %v3332
        %v3334 = vrot.slane %v3223, 1
        %v3335 = vsel %vm448, %v3332, %v3334
        %v3336 = vrot.slane %v3224, 1
        %v3337 = vsel %vm448, %v3334, %v3336
        %v3338 = vrot.slane %v3225, 1
        %v3339 = vsel %vm448, %v3336, %v3338
        %v3340 = vrot.slane %v3226, 1
        %v3341 = vsel %vm448, %v3338, %v3340
        %v3342 = vrot.slane %v3227, 1
        %v3343 = vsel %vm448, %v3340, %v3342
        %v3344 = vrot.slane %v3228, 1
        %v3345 = vsel %vm448, %v3342, %v3344
        %v3346 = vrot.slane %v3229, 1
        %v3347 = vsel %vm448, %v3344, %v3346
        %v3348 = vrot.slane %v3230, 1
        %v3349 = vsel %vm448, %v3346, %v3348
        %v3350 = vrot.slane %v3231, 1
        %v3351 = vsel %vm448, %v3348, %v3350
        %v3352 = vrot.slane %v3232, 1
        %v3353 = vsel %vm448, %v3350, %v3352
        %v3354 = vrot.slane %v3233, 1
        %v3355 = vsel %vm448, %v3352, %v3354
        %v3356 = vrot.slane %v3234, 1
        %v3357 = vsel %vm448, %v3354, %v3356
        %v3358 = vrot.slane %v3235, 1
        %v3359 = vsel %vm448, %v3356, %v3358
        %v3360 = vrot.slane %v3236, 1
        %v3361 = vsel %vm448, %v3358, %v3360
        %v3362 = vrot.slane %v3237, 1
        %v3363 = vsel %vm448, %v3360, %v3362
        %v3364 = vrot.slane %v3238, 1
        %v3365 = vsel %vm448, %v3362, %v3364
        %v3366 = vrot.slane %v3239, 1
        %v3367 = vsel %vm448, %v3364, %v3366
        %v3368 = vrot.slane %v3240, 1
        %v3369 = vsel %vm448, %v3366, %v3368
        %v3370 = vrot.slane %v3241, 1
        %v3371 = vsel %vm448, %v3368, %v3370
        %v3372 = vrot.slane %v3242, 1
        %v3373 = vsel %vm448, %v3370, %v3372
        %v3374 = vrot.slane %v3243, 1
        %v3375 = vsel %vm448, %v3372, %v3374
        %v3376 = vrot.slane %v3244, 1
        %v3377 = vsel %vm448, %v3374, %v3376
        %v3378 = vrot.slane %v3245, 1
        %v3379 = vsel %vm448, %v3376, %v3378
        %v3380 = vrot.slane %v3246, 1
        %v3381 = vsel %vm448, %v3378, %v3380
        %v3382 = vrot.slane %v3247, 1
        %v3383 = vsel %vm448, %v3380, %v3382
        %v3384 = vrot.slane %v3248, 1
        %v3385 = vsel %vm448, %v3382, %v3384
        %v3386 = vrot.slane %v3249, 1
        %v3387 = vsel %vm448, %v3384, %v3386
        %v3388 = vrot.slane %v3250, 1
        %v3389 = vsel %vm448, %v3386, %v3388
        %v3390 = vrot.slane %v3251, 1
        %v3391 = vsel %vm448, %v3388, %v3390
        %v3392 = vrot.slane %v3252, 1
        %v3393 = vsel %vm448, %v3390, %v3392
        %v3394 = vrot.slane %v3253, 1
        %v3395 = vsel %vm448, %v3392, %v3394
        %v3396 = vrot.slane %v3254, 1
        %v3397 = vsel %vm448, %v3394, %v3396
        %v3398 = vrot.slane %v3255, 1
        %v3399 = vsel %vm448, %v3396, %v3398
        %v3400 = vrot.slane %v3256, 1
        %v3401 = vsel %vm448, %v3398, %v3400
        %v3402 = vrot.slane %v3257, 1
        %v3403 = vsel %vm448, %v3400, %v3402
        %v3404 = vrot.slane %v3258, 1
        %v3405 = vsel %vm448, %v3402, %v3404
        %v3406 = vrot.slane %v3259, 1
        %v3407 = vsel %vm448, %v3404, %v3406
        %v3408 = vrot.slane %v3260, 1
        %v3409 = vsel %vm448, %v3406, %v3408
        %v3410 = vrot.slane %v3261, 1
        %v3411 = vsel %vm448, %v3408, %v3410
        %v3412 = vrot.slane %v3262, 1
        %v3413 = vsel %vm448, %v3410, %v3412
        %v3414 = vrot.slane %v3263, 1
        %v3415 = vsel %vm448, %v3412, %v3414
        %v3416 = vrot.slane %v3264, 1
        %v3417 = vsel %vm448, %v3414, %v3416
        %v3418 = vrot.slane %v3265, 1
        %v3419 = vsel %vm448, %v3416, %v3418
        %v3420 = vrot.slane %v3266, 1
        %v3421 = vsel %vm448, %v3418, %v3420
        %v3422 = vrot.slane %v3267, 1
        %v3423 = vsel %vm448, %v3420, %v3422
        %v3424 = vrot.slane %v3268, 1
        %v3425 = vsel %vm448, %v3422, %v3424
        %v3426 = vrot.slane %v3269, 1
        %v3427 = vsel %vm448, %v3424, %v3426
        %v3428 = vrot.slane %v3270, 1
        %v3429 = vsel %vm448, %v3426, %v3428
        %v3430 = vrot.slane %v3271, 1
        %v3431 = vsel %vm448, %v3428, %v3430
        %v3432 = vrot.slane %v3272, 1
        %v3433 = vsel %vm448, %v3430, %v3432
        %v3434 = vrot.slane %v3273, 1
        %v3435 = vsel %vm448, %v3432, %v3434
        %v3436 = vrot.slane 0.0, 1
        %v3437 = vsel %vm448, %v3434, %v3436
        %v3492 = vrot.slane %v3220, 2
        %v3493 = vrot.slane %v3221, 2
        %v3494 = vsel %vm630, %v3492, %v3493
        %v3495 = vrot.slane %v3222, 2
        %v3496 = vsel %vm630, %v3493, %v3495
        %v3497 = vrot.slane %v3223, 2
        %v3498 = vsel %vm630, %v3495, %v3497
        %v3499 = vrot.slane %v3224, 2
        %v3500 = vsel %vm630, %v3497, %v3499
        %v3501 = vrot.slane %v3225, 2
        %v3502 = vsel %vm630, %v3499, %v3501
        %v3503 = vrot.slane %v3226, 2
        %v3504 = vsel %vm630, %v3501, %v3503
        %v3505 = vrot.slane %v3227, 2
        %v3506 = vsel %vm630, %v3503, %v3505
        %v3507 = vrot.slane %v3228, 2
        %v3508 = vsel %vm630, %v3505, %v3507
        %v3509 = vrot.slane %v3229, 2
        %v3510 = vsel %vm630, %v3507, %v3509
        %v3511 = vrot.slane %v3230, 2
        %v3512 = vsel %vm630, %v3509, %v3511
        %v3513 = vrot.slane %v3231, 2
        %v3514 = vsel %vm630, %v3511, %v3513
        %v3515 = vrot.slane %v3232, 2
        %v3516 = vsel %vm630, %v3513, %v3515
        %v3517 = vrot.slane %v3233, 2
        %v3518 = vsel %vm630, %v3515, %v3517
        %v3519 = vrot.slane %v3234, 2
        %v3520 = vsel %vm630, %v3517, %v3519
        %v3521 = vrot.slane %v3235, 2
        %v3522 = vsel %vm630, %v3519, %v3521
        %v3523 = vrot.slane %v3236, 2
        %v3524 = vsel %vm630, %v3521, %v3523
        %v3525 = vrot.slane %v3237, 2
        %v3526 = vsel %vm630, %v3523, %v3525
        %v3527 = vrot.slane %v3238, 2
        %v3528 = vsel %vm630, %v3525, %v3527
        %v3529 = vrot.slane %v3239, 2
        %v3530 = vsel %vm630, %v3527, %v3529
        %v3531 = vrot.slane %v3240, 2
        %v3532 = vsel %vm630, %v3529, %v3531
        %v3533 = vrot.slane %v3241, 2
        %v3534 = vsel %vm630, %v3531, %v3533
        %v3535 = vrot.slane %v3242, 2
        %v3536 = vsel %vm630, %v3533, %v3535
        %v3537 = vrot.slane %v3243, 2
        %v3538 = vsel %vm630, %v3535, %v3537
        %v3539 = vrot.slane %v3244, 2
        %v3540 = vsel %vm630, %v3537, %v3539
        %v3541 = vrot.slane %v3245, 2
        %v3542 = vsel %vm630, %v3539, %v3541
        %v3543 = vrot.slane %v3246, 2
        %v3544 = vsel %vm630, %v3541, %v3543
        %v3545 = vrot.slane %v3247, 2
        %v3546 = vsel %vm630, %v3543, %v3545
        %v3547 = vrot.slane %v3248, 2
        %v3548 = vsel %vm630, %v3545, %v3547
        %v3549 = vrot.slane %v3249, 2
        %v3550 = vsel %vm630, %v3547, %v3549
        %v3551 = vrot.slane %v3250, 2
        %v3552 = vsel %vm630, %v3549, %v3551
        %v3553 = vrot.slane %v3251, 2
        %v3554 = vsel %vm630, %v3551, %v3553
        %v3555 = vrot.slane %v3252, 2
        %v3556 = vsel %vm630, %v3553, %v3555
        %v3557 = vrot.slane %v3253, 2
        %v3558 = vsel %vm630, %v3555, %v3557
        %v3559 = vrot.slane %v3254, 2
        %v3560 = vsel %vm630, %v3557, %v3559
        %v3561 = vrot.slane %v3255, 2
        %v3562 = vsel %vm630, %v3559, %v3561
        %v3563 = vrot.slane %v3256, 2
        %v3564 = vsel %vm630, %v3561, %v3563
        %v3565 = vrot.slane %v3257, 2
        %v3566 = vsel %vm630, %v3563, %v3565
        %v3567 = vrot.slane %v3258, 2
        %v3568 = vsel %vm630, %v3565, %v3567
        %v3569 = vrot.slane %v3259, 2
        %v3570 = vsel %vm630, %v3567, %v3569
        %v3571 = vrot.slane %v3260, 2
        %v3572 = vsel %vm630, %v3569, %v3571
        %v3573 = vrot.slane %v3261, 2
        %v3574 = vsel %vm630, %v3571, %v3573
        %v3575 = vrot.slane %v3262, 2
        %v3576 = vsel %vm630, %v3573, %v3575
        %v3577 = vrot.slane %v3263, 2
        %v3578 = vsel %vm630, %v3575, %v3577
        %v3579 = vrot.slane %v3264, 2
        %v3580 = vsel %vm630, %v3577, %v3579
        %v3581 = vrot.slane %v3265, 2
        %v3582 = vsel %vm630, %v3579, %v3581
        %v3583 = vrot.slane %v3266, 2
        %v3584 = vsel %vm630, %v3581, %v3583
        %v3585 = vrot.slane %v3267, 2
        %v3586 = vsel %vm630, %v3583, %v3585
        %v3587 = vrot.slane %v3268, 2
        %v3588 = vsel %vm630, %v3585, %v3587
        %v3589 = vrot.slane %v3269, 2
        %v3590 = vsel %vm630, %v3587, %v3589
        %v3591 = vrot.slane %v3270, 2
        %v3592 = vsel %vm630, %v3589, %v3591
        %v3593 = vrot.slane %v3271, 2
        %v3594 = vsel %vm630, %v3591, %v3593
        %v3595 = vrot.slane %v3272, 2
        %v3596 = vsel %vm630, %v3593, %v3595
        %v3597 = vrot.slane %v3273, 2
        %v3598 = vsel %vm630, %v3595, %v3597
        %v3599 = vrot.slane 0.0, 2
        %v3600 = vsel %vm630, %v3597, %v3599
        %v3655 = vld [vmem:[#allocation7] sm:$0xff]
        %v3656 = vld [vmem:[#allocation7 + $0x8] sm:$0xff]
        %v3657 = vld [vmem:[#allocation7 + $0x10] sm:$0xff]
        %v3658 = vld [vmem:[#allocation7 + $0x18] sm:$0xff]
        %v3659 = vld [vmem:[#allocation7 + $0x20] sm:$0xff]
        %v3660 = vld [vmem:[#allocation7 + $0x28] sm:$0xff]
        %v3661 = vld [vmem:[#allocation7 + $0x30] sm:$0xff]
        %v3662 = vld [vmem:[#allocation7 + $0x38] sm:$0xff]
        %v3663 = vld [vmem:[#allocation7 + $0x40] sm:$0xff]
        %v3664 = vld [vmem:[#allocation7 + $0x48] sm:$0xff]
        %v3665 = vld [vmem:[#allocation7 + $0x50] sm:$0xff]
        %v3666 = vld [vmem:[#allocation7 + $0x58] sm:$0xff]
        %v3667 = vld [vmem:[#allocation7 + $0x60] sm:$0xff]
        %v3668 = vld [vmem:[#allocation7 + $0x68] sm:$0xff]
        %v3669 = vld [vmem:[#allocation7 + $0x70] sm:$0xff]
        %v3670 = vld [vmem:[#allocation7 + $0x78] sm:$0xff]
        %v3671 = vld [vmem:[#allocation7 + $0x80] sm:$0xff]
        %v3672 = vld [vmem:[#allocation7 + $0x88] sm:$0xff]
        %v3673 = vld [vmem:[#allocation7 + $0x90] sm:$0xff]
        %v3674 = vld [vmem:[#allocation7 + $0x98] sm:$0xff]
        %v3675 = vld [vmem:[#allocation7 + $0xa0] sm:$0xff]
        %v3676 = vld [vmem:[#allocation7 + $0xa8] sm:$0xff]
        %v3677 = vld [vmem:[#allocation7 + $0xb0] sm:$0xff]
        %v3678 = vld [vmem:[#allocation7 + $0xb8] sm:$0xff]
        %v3679 = vld [vmem:[#allocation7 + $0xc0] sm:$0xff]
        %v3680 = vld [vmem:[#allocation7 + $0xc8] sm:$0xff]
        %v3681 = vld [vmem:[#allocation7 + $0xd0] sm:$0xff]
        %v3682 = vld [vmem:[#allocation7 + $0xd8] sm:$0xff]
        %v3683 = vld [vmem:[#allocation7 + $0xe0] sm:$0xff]
        %v3684 = vld [vmem:[#allocation7 + $0xe8] sm:$0xff]
        %v3685 = vld [vmem:[#allocation7 + $0xf0] sm:$0xff]
        %v3686 = vld [vmem:[#allocation7 + $0xf8] sm:$0xff]
        %v3687 = vld [vmem:[#allocation7 + $0x100] sm:$0xff]
        %v3688 = vld [vmem:[#allocation7 + $0x108] sm:$0xff]
        %v3689 = vld [vmem:[#allocation7 + $0x110] sm:$0xff]
        %v3690 = vld [vmem:[#allocation7 + $0x118] sm:$0xff]
        %v3691 = vld [vmem:[#allocation7 + $0x120] sm:$0xff]
        %v3692 = vld [vmem:[#allocation7 + $0x128] sm:$0xff]
        %v3693 = vld [vmem:[#allocation7 + $0x130] sm:$0xff]
        %v3694 = vld [vmem:[#allocation7 + $0x138] sm:$0xff]
        %v3695 = vld [vmem:[#allocation7 + $0x140] sm:$0xff]
        %v3696 = vld [vmem:[#allocation7 + $0x148] sm:$0xff]
        %v3697 = vld [vmem:[#allocation7 + $0x150] sm:$0xff]
        %v3698 = vld [vmem:[#allocation7 + $0x158] sm:$0xff]
        %v3699 = vld [vmem:[#allocation7 + $0x160] sm:$0xff]
        %v3700 = vld [vmem:[#allocation7 + $0x168] sm:$0xff]
        %v3701 = vld [vmem:[#allocation7 + $0x170] sm:$0xff]
        %v3702 = vld [vmem:[#allocation7 + $0x178] sm:$0xff]
        %s3703 = scalar_lea.vmem [#allocation7], 384
        %v3704 = vld [vmem:[%s3703] sm:$0xff]
        %v3705 = vld [vmem:[%s3703 + $0x8] sm:$0xff]
        %v3706 = vld [vmem:[%s3703 + $0x10] sm:$0xff]
        %v3707 = vld [vmem:[%s3703 + $0x18] sm:$0xff]
        %v3708 = vld [vmem:[%s3703 + $0x20] sm:$0xff]
        %v3709 = vld [vmem:[%s3703 + $0x28] sm:$0xff]
        %v3710 = vld [vmem:[%s3703 + $0x30] sm:$0xff]
        %v3711 = vld [vmem:[%s3703 + $0x38] sm:$0xff]
        %v3712 = vld [vmem:[%s3703 + $0x40] sm:$0xff]
        %v3713 = vld [vmem:[%s3703 + $0x48] sm:$0xff]
        %v3714 = vld [vmem:[%s3703 + $0x50] sm:$0xff]
        %v3715 = vld [vmem:[%s3703 + $0x58] sm:$0xff]
        %v3716 = vld [vmem:[%s3703 + $0x60] sm:$0xff]
        %v3717 = vld [vmem:[%s3703 + $0x68] sm:$0xff]
        %v3718 = vld [vmem:[%s3703 + $0x70] sm:$0xff]
        %v3719 = vld [vmem:[%s3703 + $0x78] sm:$0xff]
        %v3720 = vld [vmem:[%s3703 + $0x80] sm:$0xff]
        %v3721 = vld [vmem:[%s3703 + $0x88] sm:$0xff]
        %v3722 = vld [vmem:[%s3703 + $0x90] sm:$0xff]
        %v3723 = vld [vmem:[%s3703 + $0x98] sm:$0xff]
        %v3724 = vld [vmem:[%s3703 + $0xa0] sm:$0xff]
        %v3725 = vld [vmem:[%s3703 + $0xa8] sm:$0xff]
        %v3726 = vld [vmem:[%s3703 + $0xb0] sm:$0xff]
        %v3727 = vld [vmem:[%s3703 + $0xb8] sm:$0xff]
        %v3728 = vld [vmem:[%s3703 + $0xc0] sm:$0xff]
        %v3729 = vld [vmem:[%s3703 + $0xc8] sm:$0xff]
        %v3730 = vld [vmem:[%s3703 + $0xd0] sm:$0xff]
        %v3731 = vld [vmem:[%s3703 + $0xd8] sm:$0xff]
        %v3732 = vld [vmem:[%s3703 + $0xe0] sm:$0xff]
        %v3733 = vld [vmem:[%s3703 + $0xe8] sm:$0xff]
        %v3734 = vld [vmem:[%s3703 + $0xf0] sm:$0xff]
        %v3735 = vld [vmem:[%s3703 + $0xf8] sm:$0xff]
        %v3736 = vld [vmem:[%s3703 + $0x100] sm:$0xff]
        %v3737 = vld [vmem:[%s3703 + $0x108] sm:$0xff]
        %v3738 = vld [vmem:[%s3703 + $0x110] sm:$0xff]
        %v3739 = vld [vmem:[%s3703 + $0x118] sm:$0xff]
        %v3740 = vld [vmem:[%s3703 + $0x120] sm:$0xff]
        %v3741 = vld [vmem:[%s3703 + $0x128] sm:$0xff]
        %v3742 = vld [vmem:[%s3703 + $0x130] sm:$0xff]
        %v3743 = vld [vmem:[%s3703 + $0x138] sm:$0xff]
        %v3744 = vld [vmem:[%s3703 + $0x140] sm:$0xff]
        %v3745 = vld [vmem:[%s3703 + $0x148] sm:$0xff]
        %v3746 = vld [vmem:[%s3703 + $0x150] sm:$0xff]
        %v3747 = vld [vmem:[%s3703 + $0x158] sm:$0xff]
        %v3748 = vld [vmem:[%s3703 + $0x160] sm:$0xff]
        %v3749 = vld [vmem:[%s3703 + $0x168] sm:$0xff]
        %v3750 = vld [vmem:[%s3703 + $0x170] sm:$0xff]
        %v3751 = vld [vmem:[%s3703 + $0x178] sm:$0xff]
        %3752 = vmatprep.subr.mxu0 0.0
        %3753 = vmatpush1.msra.mxu0 %v3704
        %3754 = vmatprep.subr.mxu0 0.0
        %3755 = vmatpush1.msra.mxu0 %v3705
        %3756 = vmatprep.subr.mxu0 0.0
        %3757 = vmatpush1.msra.mxu0 %v3706
        %3758 = vmatprep.subr.mxu0 0.0
        %3759 = vmatpush1.msra.mxu0 %v3707
        %3760 = vmatprep.subr.mxu0 0.0
        %3761 = vmatpush1.msra.mxu0 %v3708
        %3762 = vmatprep.subr.mxu0 0.0
        %3763 = vmatpush1.msra.mxu0 %v3709
        %3764 = vmatprep.subr.mxu0 0.0
        %3765 = vmatpush1.msra.mxu0 %v3710
        %3766 = vmatprep.subr.mxu0 0.0
        %3767 = vmatpush1.msra.mxu0 %v3711
        %3768 = vmatprep.subr.mxu0 0.0
        %3769 = vmatpush1.msra.mxu0 %v3712
        %3770 = vmatprep.subr.mxu0 0.0
        %3771 = vmatpush1.msra.mxu0 %v3713
        %3772 = vmatprep.subr.mxu0 0.0
        %3773 = vmatpush1.msra.mxu0 %v3714
        %3774 = vmatprep.subr.mxu0 0.0
        %3775 = vmatpush1.msra.mxu0 %v3715
        %3776 = vmatprep.subr.mxu0 0.0
        %3777 = vmatpush1.msra.mxu0 %v3716
        %3778 = vmatprep.subr.mxu0 0.0
        %3779 = vmatpush1.msra.mxu0 %v3717
        %3780 = vmatprep.subr.mxu0 0.0
        %3781 = vmatpush1.msra.mxu0 %v3718
        %3782 = vmatprep.subr.mxu0 0.0
        %3783 = vmatpush1.msra.mxu0 %v3719
        %3784 = vmatprep.subr.mxu0 0.0
        %3785 = vmatpush1.msra.mxu0 %v3720
        %3786 = vmatprep.subr.mxu0 0.0
        %3787 = vmatpush1.msra.mxu0 %v3721
        %3788 = vmatprep.subr.mxu0 0.0
        %3789 = vmatpush1.msra.mxu0 %v3722
        %3790 = vmatprep.subr.mxu0 0.0
        %3791 = vmatpush1.msra.mxu0 %v3723
        %3792 = vmatprep.subr.mxu0 0.0
        %3793 = vmatpush1.msra.mxu0 %v3724
        %3794 = vmatprep.subr.mxu0 0.0
        %3795 = vmatpush1.msra.mxu0 %v3725
        %3796 = vmatprep.subr.mxu0 0.0
        %3797 = vmatpush1.msra.mxu0 %v3726
        %3798 = vmatprep.subr.mxu0 0.0
        %3799 = vmatpush1.msra.mxu0 %v3727
        %3800 = vmatprep.subr.mxu0 0.0
        %3801 = vmatpush1.msra.mxu0 %v3728
        %3802 = vmatprep.subr.mxu0 0.0
        %3803 = vmatpush1.msra.mxu0 %v3729
        %3804 = vmatprep.subr.mxu0 0.0
        %3805 = vmatpush1.msra.mxu0 %v3730
        %3806 = vmatprep.subr.mxu0 0.0
        %3807 = vmatpush1.msra.mxu0 %v3731
        %3808 = vmatprep.subr.mxu0 0.0
        %3809 = vmatpush1.msra.mxu0 %v3732
        %3810 = vmatprep.subr.mxu0 0.0
        %3811 = vmatpush1.msra.mxu0 %v3733
        %3812 = vmatprep.subr.mxu0 0.0
        %3813 = vmatpush1.msra.mxu0 %v3734
        %3814 = vmatprep.subr.mxu0 0.0
        %3815 = vmatpush1.msra.mxu0 %v3735
        %3816 = vmatprep.mubr.f32.mxu0 %v3337
        %3817 = vmatmul.mubr.f32.gmra.mrb[0].mxu0 %v3223
        %v3818 = vpop.f32.mrb[0].mxu0
        %v3819 = vadd.f32 0.0, %v3818
        %v3820 = vpop.f32.mrb[0].mxu0
        %3821 = vmatprep.mubr.f32.mxu0 %v3339
        %3822 = vmatmul.mubr.f32.gmra.mrb[0].mxu0 %v3224
        %v3823 = vpop.f32.mrb[0].mxu0
        %v3824 = vadd.f32 0.0, %v3823
        %v3825 = vpop.f32.mrb[0].mxu0
        %3826 = vmatprep.mubr.f32.mxu0 %v3341
        %3827 = vmatmul.mubr.f32.gmra.mrb[0].mxu0 %v3225
        %v3828 = vpop.f32.mrb[0].mxu0
        %v3829 = vadd.f32 0.0, %v3828
        %v3830 = vpop.f32.mrb[0].mxu0
        %3831 = vmatprep.mubr.f32.mxu0 %v3343
        %3832 = vmatmul.mubr.f32.gmra.mrb[0].mxu0 %v3226
        %v3833 = vpop.f32.mrb[0].mxu0
        %v3834 = vadd.f32 0.0, %v3833
        %v3835 = vpop.f32.mrb[0].mxu0
        %3836 = vmatprep.mubr.f32.mxu0 %v3345
        %3837 = vmatmul.mubr.f32.gmra.mrb[0].mxu0 %v3227
        %v3838 = vpop.f32.mrb[0].mxu0
        %v3839 = vadd.f32 0.0, %v3838
        %v3840 = vpop.f32.mrb[0].mxu0
        %3841 = vmatprep.mubr.f32.mxu0 %v3347
        %3842 = vmatmul.mubr.f32.gmra.mrb[0].mxu0 %v3228
        %v3843 = vpop.f32.mrb[0].mxu0
        %v3844 = vadd.f32 0.0, %v3843
        %v3845 = vpop.f32.mrb[0].mxu0
        %3846 = vmatprep.mubr.f32.mxu0 %v3349
        %3847 = vmatmul.mubr.f32.gmra.mrb[0].mxu0 %v3229
        %v3848 = vpop.f32.mrb[0].mxu0
        %v3849 = vadd.f32 0.0, %v3848
        %v3850 = vpop.f32.mrb[0].mxu0
        %3851 = vmatprep.mubr.f32.mxu0 %v3351
        %3852 = vmatmul.mubr.f32.gmra.mrb[0].mxu0 %v3230
        %v3853 = vpop.f32.mrb[0].mxu0
        %v3854 = vadd.f32 0.0, %v3853
        %v3855 = vpop.f32.mrb[0].mxu0
        %3856 = vmatprep.mubr.f32.mxu0 %v3353
        %3857 = vmatmul.mubr.f32.gmra.mrb[0].mxu0 %v3231
        %v3858 = vpop.f32.mrb[0].mxu0
        %v3859 = vadd.f32 0.0, %v3858
        %v3860 = vpop.f32.mrb[0].mxu0
        %3861 = vmatprep.mubr.f32.mxu0 %v3355
        %3862 = vmatmul.mubr.f32.gmra.mrb[0].mxu0 %v3232
        %v3863 = vpop.f32.mrb[0].mxu0
        %v3864 = vadd.f32 0.0, %v3863
        %v3865 = vpop.f32.mrb[0].mxu0
        %3866 = vmatprep.mubr.f32.mxu0 %v3357
        %3867 = vmatmul.mubr.f32.gmra.mrb[0].mxu0 %v3233
        %v3868 = vpop.f32.mrb[0].mxu0
        %v3869 = vadd.f32 0.0, %v3868
        %v3870 = vpop.f32.mrb[0].mxu0
        %3871 = vmatprep.mubr.f32.mxu0 %v3359
        %3872 = vmatmul.mubr.f32.gmra.mrb[0].mxu0 %v3234
        %v3873 = vpop.f32.mrb[0].mxu0
        %v3874 = vadd.f32 0.0, %v3873
        %v3875 = vpop.f32.mrb[0].mxu0
        %3876 = vmatprep.mubr.f32.mxu0 %v3361
        %3877 = vmatmul.mubr.f32.gmra.mrb[0].mxu0 %v3235
        %v3878 = vpop.f32.mrb[0].mxu0
        %v3879 = vadd.f32 0.0, %v3878
        %v3880 = vpop.f32.mrb[0].mxu0
        %3881 = vmatprep.mubr.f32.mxu0 %v3363
        %3882 = vmatmul.mubr.f32.gmra.mrb[0].mxu0 %v3236
        %v3883 = vpop.f32.mrb[0].mxu0
        %v3884 = vadd.f32 0.0, %v3883
        %v3885 = vpop.f32.mrb[0].mxu0
        %3886 = vmatprep.mubr.f32.mxu0 %v3365
        %3887 = vmatmul.mubr.f32.gmra.mrb[0].mxu0 %v3237
        %v3888 = vpop.f32.mrb[0].mxu0
        %v3889 = vadd.f32 0.0, %v3888
        %v3890 = vpop.f32.mrb[0].mxu0
        %3891 = vmatprep.mubr.f32.mxu0 %v3367
        %3892 = vmatmul.mubr.f32.gmra.mrb[0].mxu0 %v3238
        %v3893 = vpop.f32.mrb[0].mxu0
        %v3894 = vadd.f32 0.0, %v3893
        %v3895 = vpop.f32.mrb[0].mxu0
        %3896 = vmatprep.mubr.f32.mxu0 %v3369
        %3897 = vmatmul.mubr.f32.gmra.mrb[0].mxu0 %v3239
        %v3898 = vpop.f32.mrb[0].mxu0
        %v3899 = vadd.f32 0.0, %v3898
        %v3900 = vpop.f32.mrb[0].mxu0
        %3901 = vmatprep.mubr.f32.mxu0 %v3371
        %3902 = vmatmul.mubr.f32.gmra.mrb[0].mxu0 %v3240
        %v3903 = vpop.f32.mrb[0].mxu0
        %v3904 = vadd.f32 0.0, %v3903
        %v3905 = vpop.f32.mrb[0].mxu0
        %3906 = vmatprep.mubr.f32.mxu0 %v3373
        %3907 = vmatmul.mubr.f32.gmra.mrb[0].mxu0 %v3241
        %v3908 = vpop.f32.mrb[0].mxu0
        %v3909 = vadd.f32 0.0, %v3908
        %v3910 = vpop.f32.mrb[0].mxu0
        %3911 = vmatprep.mubr.f32.mxu0 %v3375
        %3912 = vmatmul.mubr.f32.gmra.mrb[0].mxu0 %v3242
        %v3913 = vpop.f32.mrb[0].mxu0
        %v3914 = vadd.f32 0.0, %v3913
        %v3915 = vpop.f32.mrb[0].mxu0
        %3916 = vmatprep.mubr.f32.mxu0 %v3377
        %3917 = vmatmul.mubr.f32.gmra.mrb[0].mxu0 %v3243
        %v3918 = vpop.f32.mrb[0].mxu0
        %v3919 = vadd.f32 0.0, %v3918
        %v3920 = vpop.f32.mrb[0].mxu0
        %3921 = vmatprep.mubr.f32.mxu0 %v3379
        %3922 = vmatmul.mubr.f32.gmra.mrb[0].mxu0 %v3244
        %v3923 = vpop.f32.mrb[0].mxu0
        %v3924 = vadd.f32 0.0, %v3923
        %v3925 = vpop.f32.mrb[0].mxu0
        %3926 = vmatprep.mubr.f32.mxu0 %v3381
        %3927 = vmatmul.mubr.f32.gmra.mrb[0].mxu0 %v3245
        %v3928 = vpop.f32.mrb[0].mxu0
        %v3929 = vadd.f32 0.0, %v3928
        %v3930 = vpop.f32.mrb[0].mxu0
        %3931 = vmatprep.mubr.f32.mxu0 %v3383
        %3932 = vmatmul.mubr.f32.gmra.mrb[0].mxu0 %v3246
        %v3933 = vpop.f32.mrb[0].mxu0
        %v3934 = vadd.f32 0.0, %v3933
        %v3935 = vpop.f32.mrb[0].mxu0
        %3936 = vmatprep.mubr.f32.mxu0 %v3385
        %3937 = vmatmul.mubr.f32.gmra.mrb[0].mxu0 %v3247
        %v3938 = vpop.f32.mrb[0].mxu0
        %v3939 = vadd.f32 0.0, %v3938
        %v3940 = vpop.f32.mrb[0].mxu0
        %3941 = vmatprep.mubr.f32.mxu0 %v3387
        %3942 = vmatmul.mubr.f32.gmra.mrb[0].mxu0 %v3248
        %v3943 = vpop.f32.mrb[0].mxu0
        %v3944 = vadd.f32 0.0, %v3943
        %v3945 = vpop.f32.mrb[0].mxu0
        %3946 = vmatprep.mubr.f32.mxu0 %v3389
        %3947 = vmatmul.mubr.f32.gmra.mrb[0].mxu0 %v3249
        %v3948 = vpop.f32.mrb[0].mxu0
        %v3949 = vadd.f32 0.0, %v3948
        %v3950 = vpop.f32.mrb[0].mxu0
        %3951 = vmatprep.mubr.f32.mxu0 %v3391
        %3952 = vmatmul.mubr.f32.gmra.mrb[0].mxu0 %v3250
        %v3953 = vpop.f32.mrb[0].mxu0
        %v3954 = vadd.f32 0.0, %v3953
        %v3955 = vpop.f32.mrb[0].mxu0
        %3956 = vmatprep.mubr.f32.mxu0 %v3393
        %3957 = vmatmul.mubr.f32.gmra.mrb[0].mxu0 %v3251
        %v3958 = vpop.f32.mrb[0].mxu0
        %v3959 = vadd.f32 0.0, %v3958
        %v3960 = vpop.f32.mrb[0].mxu0
        %3961 = vmatprep.mubr.f32.mxu0 %v3395
        %3962 = vmatmul.mubr.f32.gmra.mrb[0].mxu0 %v3252
        %v3963 = vpop.f32.mrb[0].mxu0
        %v3964 = vadd.f32 0.0, %v3963
        %v3965 = vpop.f32.mrb[0].mxu0
        %3966 = vmatprep.mubr.f32.mxu0 %v3397
        %3967 = vmatmul.mubr.f32.gmra.mrb[0].mxu0 %v3253
        %v3968 = vpop.f32.mrb[0].mxu0
        %v3969 = vadd.f32 0.0, %v3968
        %v3970 = vpop.f32.mrb[0].mxu0
        %3971 = vmatprep.mubr.f32.mxu0 %v3399
        %3972 = vmatmul.mubr.f32.gmra.mrb[0].mxu0 %v3254
        %v3973 = vpop.f32.mrb[0].mxu0
        %v3974 = vadd.f32 0.0, %v3973
        %v3975 = vpop.f32.mrb[0].mxu0
        %3976 = vmatprep.mubr.f32.mxu0 %v3401
        %3977 = vmatmul.mubr.f32.gmra.mrb[0].mxu0 %v3255
        %v3978 = vpop.f32.mrb[0].mxu0
        %v3979 = vadd.f32 0.0, %v3978
        %v3980 = vpop.f32.mrb[0].mxu0
        %3981 = vmatprep.mubr.f32.mxu0 %v3403
        %3982 = vmatmul.mubr.f32.gmra.mrb[0].mxu0 %v3256
        %v3983 = vpop.f32.mrb[0].mxu0
        %v3984 = vadd.f32 0.0, %v3983
        %v3985 = vpop.f32.mrb[0].mxu0
        %3986 = vmatprep.mubr.f32.mxu0 %v3405
        %3987 = vmatmul.mubr.f32.gmra.mrb[0].mxu0 %v3257
        %v3988 = vpop.f32.mrb[0].mxu0
        %v3989 = vadd.f32 0.0, %v3988
        %v3990 = vpop.f32.mrb[0].mxu0
        %3991 = vmatprep.mubr.f32.mxu0 %v3407
        %3992 = vmatmul.mubr.f32.gmra.mrb[0].mxu0 %v3258
        %v3993 = vpop.f32.mrb[0].mxu0
        %v3994 = vadd.f32 0.0, %v3993
        %v3995 = vpop.f32.mrb[0].mxu0
        %3996 = vmatprep.mubr.f32.mxu0 %v3409
        %3997 = vmatmul.mubr.f32.gmra.mrb[0].mxu0 %v3259
        %v3998 = vpop.f32.mrb[0].mxu0
        %v3999 = vadd.f32 0.0, %v3998
        %v4000 = vpop.f32.mrb[0].mxu0
        %4001 = vmatprep.mubr.f32.mxu0 %v3411
        %4002 = vmatmul.mubr.f32.gmra.mrb[0].mxu0 %v3260
        %v4003 = vpop.f32.mrb[0].mxu0
        %v4004 = vadd.f32 0.0, %v4003
        %v4005 = vpop.f32.mrb[0].mxu0
        %4006 = vmatprep.mubr.f32.mxu0 %v3413
        %4007 = vmatmul.mubr.f32.gmra.mrb[0].mxu0 %v3261
        %v4008 = vpop.f32.mrb[0].mxu0
        %v4009 = vadd.f32 0.0, %v4008
        %v4010 = vpop.f32.mrb[0].mxu0
        %4011 = vmatprep.mubr.f32.mxu0 %v3415
        %4012 = vmatmul.mubr.f32.gmra.mrb[0].mxu0 %v3262
        %v4013 = vpop.f32.mrb[0].mxu0
        %v4014 = vadd.f32 0.0, %v4013
        %v4015 = vpop.f32.mrb[0].mxu0
        %4016 = vmatprep.mubr.f32.mxu0 %v3417
        %4017 = vmatmul.mubr.f32.gmra.mrb[0].mxu0 %v3263
        %v4018 = vpop.f32.mrb[0].mxu0
        %v4019 = vadd.f32 0.0, %v4018
        %v4020 = vpop.f32.mrb[0].mxu0
        %4021 = vmatprep.mubr.f32.mxu0 %v3419
        %4022 = vmatmul.mubr.f32.gmra.mrb[0].mxu0 %v3264
        %v4023 = vpop.f32.mrb[0].mxu0
        %v4024 = vadd.f32 0.0, %v4023
        %v4025 = vpop.f32.mrb[0].mxu0
        %4026 = vmatprep.mubr.f32.mxu0 %v3421
        %4027 = vmatmul.mubr.f32.gmra.mrb[0].mxu0 %v3265
        %v4028 = vpop.f32.mrb[0].mxu0
        %v4029 = vadd.f32 0.0, %v4028
        %v4030 = vpop.f32.mrb[0].mxu0
        %4031 = vmatprep.mubr.f32.mxu0 %v3423
        %4032 = vmatmul.mubr.f32.gmra.mrb[0].mxu0 %v3266
        %v4033 = vpop.f32.mrb[0].mxu0
        %v4034 = vadd.f32 0.0, %v4033
        %v4035 = vpop.f32.mrb[0].mxu0
        %4036 = vmatprep.mubr.f32.mxu0 %v3425
        %4037 = vmatmul.mubr.f32.gmra.mrb[0].mxu0 %v3267
        %v4038 = vpop.f32.mrb[0].mxu0
        %v4039 = vadd.f32 0.0, %v4038
        %v4040 = vpop.f32.mrb[0].mxu0
        %4041 = vmatprep.mubr.f32.mxu0 %v3427
        %4042 = vmatmul.mubr.f32.gmra.mrb[0].mxu0 %v3268
        %v4043 = vpop.f32.mrb[0].mxu0
        %v4044 = vadd.f32 0.0, %v4043
        %v4045 = vpop.f32.mrb[0].mxu0
        %4046 = vmatprep.mubr.f32.mxu0 %v3429
        %4047 = vmatmul.mubr.f32.gmra.mrb[0].mxu0 %v3269
        %v4048 = vpop.f32.mrb[0].mxu0
        %v4049 = vadd.f32 0.0, %v4048
        %v4050 = vpop.f32.mrb[0].mxu0
        %4051 = vmatprep.mubr.f32.mxu0 %v3431
        %4052 = vmatmul.mubr.f32.gmra.mrb[0].mxu0 %v3270
        %v4053 = vpop.f32.mrb[0].mxu0
        %v4054 = vadd.f32 0.0, %v4053
        %v4055 = vpop.f32.mrb[0].mxu0
        %4056 = vdwg.mxu0
        %4057 = vmatprep.subr.mxu0 0.0
        %4058 = vmatpush1.msra.mxu0 %v3736
        %4059 = vmatprep.subr.mxu0 0.0
        %4060 = vmatpush1.msra.mxu0 %v3737
        %4061 = vmatprep.subr.mxu0 0.0
        %4062 = vmatpush1.msra.mxu0 %v3738
        %4063 = vmatprep.subr.mxu0 0.0
        %4064 = vmatpush1.msra.mxu0 %v3739
        %4065 = vmatprep.subr.mxu0 0.0
        %4066 = vmatpush1.msra.mxu0 %v3740
        %4067 = vmatprep.subr.mxu0 0.0
        %4068 = vmatpush1.msra.mxu0 %v3741
        %4069 = vmatprep.subr.mxu0 0.0
        %4070 = vmatpush1.msra.mxu0 %v3742
        %4071 = vmatprep.subr.mxu0 0.0
        %4072 = vmatpush1.msra.mxu0 %v3743
        %4073 = vmatprep.subr.mxu0 0.0
        %4074 = vmatpush1.msra.mxu0 %v3744
        %4075 = vmatprep.subr.mxu0 0.0
        %4076 = vmatpush1.msra.mxu0 %v3745
        %4077 = vmatprep.subr.mxu0 0.0
        %4078 = vmatpush1.msra.mxu0 %v3746
        %4079 = vmatprep.subr.mxu0 0.0
        %4080 = vmatpush1.msra.mxu0 %v3747
        %4081 = vmatprep.subr.mxu0 0.0
        %4082 = vmatpush1.msra.mxu0 %v3748
        %4083 = vmatprep.subr.mxu0 0.0
        %4084 = vmatpush1.msra.mxu0 %v3749
        %4085 = vmatprep.subr.mxu0 0.0
        %4086 = vmatpush1.msra.mxu0 %v3750
        %4087 = vmatprep.subr.mxu0 0.0
        %4088 = vmatpush1.msra.mxu0 %v3751
        %4089 = vmatprep.subr.mxu0 0.0
        %4090 = vmatpush1.msra.mxu0 0.0
        %4091 = vmatprep.subr.mxu0 0.0
        %4092 = vmatpush1.msra.mxu0 0.0
        %4093 = vmatprep.subr.mxu0 0.0
        %4094 = vmatpush1.msra.mxu0 0.0
        %4095 = vmatprep.subr.mxu0 0.0
        %4096 = vmatpush1.msra.mxu0 0.0
        %4097 = vmatprep.subr.mxu0 0.0
        %4098 = vmatpush1.msra.mxu0 0.0
        %4099 = vmatprep.subr.mxu0 0.0
        %4100 = vmatpush1.msra.mxu0 0.0
        %4101 = vmatprep.subr.mxu0 0.0
        %4102 = vmatpush1.msra.mxu0 0.0
        %4103 = vmatprep.subr.mxu0 0.0
        %4104 = vmatpush1.msra.mxu0 0.0
        %4105 = vmatprep.subr.mxu0 0.0
        %4106 = vmatpush1.msra.mxu0 0.0
        %4107 = vmatprep.subr.mxu0 0.0
        %4108 = vmatpush1.msra.mxu0 0.0
        %4109 = vmatprep.subr.mxu0 0.0
        %4110 = vmatpush1.msra.mxu0 0.0
        %4111 = vmatprep.subr.mxu0 0.0
        %4112 = vmatpush1.msra.mxu0 0.0
        %4113 = vmatprep.subr.mxu0 0.0
        %4114 = vmatpush1.msra.mxu0 0.0
        %4115 = vmatprep.subr.mxu0 0.0
        %4116 = vmatpush1.msra.mxu0 0.0
        %4117 = vmatprep.subr.mxu0 0.0
        %4118 = vmatpush1.msra.mxu0 0.0
        %4119 = vmatprep.subr.mxu0 0.0
        %4120 = vmatpush1.msra.mxu0 0.0
        %4121 = vmatprep.mubr.f32.mxu0 0.0
        %4122 = vmatmul.mubr.f32.gmra.mrb[0].mxu0 %v3500
        %v4123 = vpop.f32.mrb[0].mxu0
        %v4124 = vadd.f32 %v3819, %v4123
        %v4125 = vpop.f32.mrb[0].mxu0
        %4126 = vmatprep.mubr.f32.mxu0 0.0
        %4127 = vmatmul.mubr.f32.gmra.mrb[0].mxu0 %v3502
        %v4128 = vpop.f32.mrb[0].mxu0
        %v4129 = vadd.f32 %v3824, %v4128
        %v4130 = vpop.f32.mrb[0].mxu0
        %4131 = vmatprep.mubr.f32.mxu0 0.0
        %4132 = vmatmul.mubr.f32.gmra.mrb[0].mxu0 %v3504
        %v4133 = vpop.f32.mrb[0].mxu0
        %v4134 = vadd.f32 %v3829, %v4133
        %v4135 = vpop.f32.mrb[0].mxu0
        %4136 = vmatprep.mubr.f32.mxu0 0.0
        %4137 = vmatmul.mubr.f32.gmra.mrb[0].mxu0 %v3506
        %v4138 = vpop.f32.mrb[0].mxu0
        %v4139 = vadd.f32 %v3834, %v4138
        %v4140 = vpop.f32.mrb[0].mxu0
        %4141 = vmatprep.mubr.f32.mxu0 0.0
        %4142 = vmatmul.mubr.f32.gmra.mrb[0].mxu0 %v3508
        %v4143 = vpop.f32.mrb[0].mxu0
        %v4144 = vadd.f32 %v3839, %v4143
        %v4145 = vpop.f32.mrb[0].mxu0
        %4146 = vmatprep.mubr.f32.mxu0 0.0
        %4147 = vmatmul.mubr.f32.gmra.mrb[0].mxu0 %v3510
        %v4148 = vpop.f32.mrb[0].mxu0
        %v4149 = vadd.f32 %v3844, %v4148
        %v4150 = vpop.f32.mrb[0].mxu0
        %4151 = vmatprep.mubr.f32.mxu0 0.0
        %4152 = vmatmul.mubr.f32.gmra.mrb[0].mxu0 %v3512
        %v4153 = vpop.f32.mrb[0].mxu0
        %v4154 = vadd.f32 %v3849, %v4153
        %v4155 = vpop.f32.mrb[0].mxu0
        %4156 = vmatprep.mubr.f32.mxu0 0.0
        %4157 = vmatmul.mubr.f32.gmra.mrb[0].mxu0 %v3514
        %v4158 = vpop.f32.mrb[0].mxu0
        %v4159 = vadd.f32 %v3854, %v4158
        %v4160 = vpop.f32.mrb[0].mxu0
        %4161 = vmatprep.mubr.f32.mxu0 0.0
        %4162 = vmatmul.mubr.f32.gmra.mrb[0].mxu0 %v3516
        %v4163 = vpop.f32.mrb[0].mxu0
        %v4164 = vadd.f32 %v3859, %v4163
        %v4165 = vpop.f32.mrb[0].mxu0
        %4166 = vmatprep.mubr.f32.mxu0 0.0
        %4167 = vmatmul.mubr.f32.gmra.mrb[0].mxu0 %v3518
        %v4168 = vpop.f32.mrb[0].mxu0
        %v4169 = vadd.f32 %v3864, %v4168
        %v4170 = vpop.f32.mrb[0].mxu0
        %4171 = vmatprep.mubr.f32.mxu0 0.0
        %4172 = vmatmul.mubr.f32.gmra.mrb[0].mxu0 %v3520
        %v4173 = vpop.f32.mrb[0].mxu0
        %v4174 = vadd.f32 %v3869, %v4173
        %v4175 = vpop.f32.mrb[0].mxu0
        %4176 = vmatprep.mubr.f32.mxu0 0.0
        %4177 = vmatmul.mubr.f32.gmra.mrb[0].mxu0 %v3522
        %v4178 = vpop.f32.mrb[0].mxu0
        %v4179 = vadd.f32 %v3874, %v4178
        %v4180 = vpop.f32.mrb[0].mxu0
        %4181 = vmatprep.mubr.f32.mxu0 0.0
        %4182 = vmatmul.mubr.f32.gmra.mrb[0].mxu0 %v3524
        %v4183 = vpop.f32.mrb[0].mxu0
        %v4184 = vadd.f32 %v3879, %v4183
        %v4185 = vpop.f32.mrb[0].mxu0
        %4186 = vmatprep.mubr.f32.mxu0 0.0
        %4187 = vmatmul.mubr.f32.gmra.mrb[0].mxu0 %v3526
        %v4188 = vpop.f32.mrb[0].mxu0
        %v4189 = vadd.f32 %v3884, %v4188
        %v4190 = vpop.f32.mrb[0].mxu0
        %4191 = vmatprep.mubr.f32.mxu0 0.0
        %4192 = vmatmul.mubr.f32.gmra.mrb[0].mxu0 %v3528
        %v4193 = vpop.f32.mrb[0].mxu0
        %v4194 = vadd.f32 %v3889, %v4193
        %v4195 = vpop.f32.mrb[0].mxu0
        %4196 = vmatprep.mubr.f32.mxu0 0.0
        %4197 = vmatmul.mubr.f32.gmra.mrb[0].mxu0 %v3530
        %v4198 = vpop.f32.mrb[0].mxu0
        %v4199 = vadd.f32 %v3894, %v4198
        %v4200 = vpop.f32.mrb[0].mxu0
        %4201 = vmatprep.mubr.f32.mxu0 0.0
        %4202 = vmatmul.mubr.f32.gmra.mrb[0].mxu0 %v3532
        %v4203 = vpop.f32.mrb[0].mxu0
        %v4204 = vadd.f32 %v3899, %v4203
        %v4205 = vpop.f32.mrb[0].mxu0
        %4206 = vmatprep.mubr.f32.mxu0 0.0
        %4207 = vmatmul.mubr.f32.gmra.mrb[0].mxu0 %v3534
        %v4208 = vpop.f32.mrb[0].mxu0
        %v4209 = vadd.f32 %v3904, %v4208
        %v4210 = vpop.f32.mrb[0].mxu0
        %4211 = vmatprep.mubr.f32.mxu0 0.0
        %4212 = vmatmul.mubr.f32.gmra.mrb[0].mxu0 %v3536
        %v4213 = vpop.f32.mrb[0].mxu0
        %v4214 = vadd.f32 %v3909, %v4213
        %v4215 = vpop.f32.mrb[0].mxu0
        %4216 = vmatprep.mubr.f32.mxu0 0.0
        %4217 = vmatmul.mubr.f32.gmra.mrb[0].mxu0 %v3538
        %v4218 = vpop.f32.mrb[0].mxu0
        %v4219 = vadd.f32 %v3914, %v4218
        %v4220 = vpop.f32.mrb[0].mxu0
        %4221 = vmatprep.mubr.f32.mxu0 0.0
        %4222 = vmatmul.mubr.f32.gmra.mrb[0].mxu0 %v3540
        %v4223 = vpop.f32.mrb[0].mxu0
        %v4224 = vadd.f32 %v3919, %v4223
        %v4225 = vpop.f32.mrb[0].mxu0
        %4226 = vmatprep.mubr.f32.mxu0 0.0
        %4227 = vmatmul.mubr.f32.gmra.mrb[0].mxu0 %v3542
        %v4228 = vpop.f32.mrb[0].mxu0
        %v4229 = vadd.f32 %v3924, %v4228
        %v4230 = vpop.f32.mrb[0].mxu0
        %4231 = vmatprep.mubr.f32.mxu0 0.0
        %4232 = vmatmul.mubr.f32.gmra.mrb[0].mxu0 %v3544
        %v4233 = vpop.f32.mrb[0].mxu0
        %v4234 = vadd.f32 %v3929, %v4233
        %v4235 = vpop.f32.mrb[0].mxu0
        %4236 = vmatprep.mubr.f32.mxu0 0.0
        %4237 = vmatmul.mubr.f32.gmra.mrb[0].mxu0 %v3546
        %v4238 = vpop.f32.mrb[0].mxu0
        %v4239 = vadd.f32 %v3934, %v4238
        %v4240 = vpop.f32.mrb[0].mxu0
        %4241 = vmatprep.mubr.f32.mxu0 0.0
        %4242 = vmatmul.mubr.f32.gmra.mrb[0].mxu0 %v3548
        %v4243 = vpop.f32.mrb[0].mxu0
        %v4244 = vadd.f32 %v3939, %v4243
        %v4245 = vpop.f32.mrb[0].mxu0
        %4246 = vmatprep.mubr.f32.mxu0 0.0
        %4247 = vmatmul.mubr.f32.gmra.mrb[0].mxu0 %v3550
        %v4248 = vpop.f32.mrb[0].mxu0
        %v4249 = vadd.f32 %v3944, %v4248
        %v4250 = vpop.f32.mrb[0].mxu0
        %4251 = vmatprep.mubr.f32.mxu0 0.0
        %4252 = vmatmul.mubr.f32.gmra.mrb[0].mxu0 %v3552
        %v4253 = vpop.f32.mrb[0].mxu0
        %v4254 = vadd.f32 %v3949, %v4253
        %v4255 = vpop.f32.mrb[0].mxu0
        %4256 = vmatprep.mubr.f32.mxu0 0.0
        %4257 = vmatmul.mubr.f32.gmra.mrb[0].mxu0 %v3554
        %v4258 = vpop.f32.mrb[0].mxu0
        %v4259 = vadd.f32 %v3954, %v4258
        %v4260 = vpop.f32.mrb[0].mxu0
        %4261 = vmatprep.mubr.f32.mxu0 0.0
        %4262 = vmatmul.mubr.f32.gmra.mrb[0].mxu0 %v3556
        %v4263 = vpop.f32.mrb[0].mxu0
        %v4264 = vadd.f32 %v3959, %v4263
        %v4265 = vpop.f32.mrb[0].mxu0
        %4266 = vmatprep.mubr.f32.mxu0 0.0
        %4267 = vmatmul.mubr.f32.gmra.mrb[0].mxu0 %v3558
        %v4268 = vpop.f32.mrb[0].mxu0
        %v4269 = vadd.f32 %v3964, %v4268
        %v4270 = vpop.f32.mrb[0].mxu0
        %4271 = vmatprep.mubr.f32.mxu0 0.0
        %4272 = vmatmul.mubr.f32.gmra.mrb[0].mxu0 %v3560
        %v4273 = vpop.f32.mrb[0].mxu0
        %v4274 = vadd.f32 %v3969, %v4273
        %v4275 = vpop.f32.mrb[0].mxu0
        %4276 = vmatprep.mubr.f32.mxu0 0.0
        %4277 = vmatmul.mubr.f32.gmra.mrb[0].mxu0 %v3562
        %v4278 = vpop.f32.mrb[0].mxu0
        %v4279 = vadd.f32 %v3974, %v4278
        %v4280 = vpop.f32.mrb[0].mxu0
        %4281 = vmatprep.mubr.f32.mxu0 0.0
        %4282 = vmatmul.mubr.f32.gmra.mrb[0].mxu0 %v3564
        %v4283 = vpop.f32.mrb[0].mxu0
        %v4284 = vadd.f32 %v3979, %v4283
        %v4285 = vpop.f32.mrb[0].mxu0
        %4286 = vmatprep.mubr.f32.mxu0 0.0
        %4287 = vmatmul.mubr.f32.gmra.mrb[0].mxu0 %v3566
        %v4288 = vpop.f32.mrb[0].mxu0
        %v4289 = vadd.f32 %v3984, %v4288
        %v4290 = vpop.f32.mrb[0].mxu0
        %4291 = vmatprep.mubr.f32.mxu0 0.0
        %4292 = vmatmul.mubr.f32.gmra.mrb[0].mxu0 %v3568
        %v4293 = vpop.f32.mrb[0].mxu0
        %v4294 = vadd.f32 %v3989, %v4293
        %v4295 = vpop.f32.mrb[0].mxu0
        %4296 = vmatprep.mubr.f32.mxu0 0.0
        %4297 = vmatmul.mubr.f32.gmra.mrb[0].mxu0 %v3570
        %v4298 = vpop.f32.mrb[0].mxu0
        %v4299 = vadd.f32 %v3994, %v4298
        %v4300 = vpop.f32.mrb[0].mxu0
        %4301 = vmatprep.mubr.f32.mxu0 0.0
        %4302 = vmatmul.mubr.f32.gmra.mrb[0].mxu0 %v3572
        %v4303 = vpop.f32.mrb[0].mxu0
        %v4304 = vadd.f32 %v3999, %v4303
        %v4305 = vpop.f32.mrb[0].mxu0
        %4306 = vmatprep.mubr.f32.mxu0 0.0
        %4307 = vmatmul.mubr.f32.gmra.mrb[0].mxu0 %v3574
        %v4308 = vpop.f32.mrb[0].mxu0
        %v4309 = vadd.f32 %v4004, %v4308
        %v4310 = vpop.f32.mrb[0].mxu0
        %4311 = vmatprep.mubr.f32.mxu0 0.0
        %4312 = vmatmul.mubr.f32.gmra.mrb[0].mxu0 %v3576
        %v4313 = vpop.f32.mrb[0].mxu0
        %v4314 = vadd.f32 %v4009, %v4313
        %v4315 = vpop.f32.mrb[0].mxu0
        %4316 = vmatprep.mubr.f32.mxu0 0.0
        %4317 = vmatmul.mubr.f32.gmra.mrb[0].mxu0 %v3578
        %v4318 = vpop.f32.mrb[0].mxu0
        %v4319 = vadd.f32 %v4014, %v4318
        %v4320 = vpop.f32.mrb[0].mxu0
        %4321 = vmatprep.mubr.f32.mxu0 0.0
        %4322 = vmatmul.mubr.f32.gmra.mrb[0].mxu0 %v3580
        %v4323 = vpop.f32.mrb[0].mxu0
        %v4324 = vadd.f32 %v4019, %v4323
        %v4325 = vpop.f32.mrb[0].mxu0
        %4326 = vmatprep.mubr.f32.mxu0 0.0
        %4327 = vmatmul.mubr.f32.gmra.mrb[0].mxu0 %v3582
        %v4328 = vpop.f32.mrb[0].mxu0
        %v4329 = vadd.f32 %v4024, %v4328
        %v4330 = vpop.f32.mrb[0].mxu0
        %4331 = vmatprep.mubr.f32.mxu0 0.0
        %4332 = vmatmul.mubr.f32.gmra.mrb[0].mxu0 %v3584
        %v4333 = vpop.f32.mrb[0].mxu0
        %v4334 = vadd.f32 %v4029, %v4333
        %v4335 = vpop.f32.mrb[0].mxu0
        %4336 = vmatprep.mubr.f32.mxu0 0.0
        %4337 = vmatmul.mubr.f32.gmra.mrb[0].mxu0 %v3586
        %v4338 = vpop.f32.mrb[0].mxu0
        %v4339 = vadd.f32 %v4034, %v4338
        %v4340 = vpop.f32.mrb[0].mxu0
        %4341 = vmatprep.mubr.f32.mxu0 0.0
        %4342 = vmatmul.mubr.f32.gmra.mrb[0].mxu0 %v3588
        %v4343 = vpop.f32.mrb[0].mxu0
        %v4344 = vadd.f32 %v4039, %v4343
        %v4345 = vpop.f32.mrb[0].mxu0
        %4346 = vmatprep.mubr.f32.mxu0 0.0
        %4347 = vmatmul.mubr.f32.gmra.mrb[0].mxu0 %v3590
        %v4348 = vpop.f32.mrb[0].mxu0
        %v4349 = vadd.f32 %v4044, %v4348
        %v4350 = vpop.f32.mrb[0].mxu0
        %4351 = vmatprep.mubr.f32.mxu0 0.0
        %4352 = vmatmul.mubr.f32.gmra.mrb[0].mxu0 %v3592
        %v4353 = vpop.f32.mrb[0].mxu0
        %v4354 = vadd.f32 %v4049, %v4353
        %v4355 = vpop.f32.mrb[0].mxu0
        %4356 = vmatprep.mubr.f32.mxu0 0.0
        %4357 = vmatmul.mubr.f32.gmra.mrb[0].mxu0 %v3594
        %v4358 = vpop.f32.mrb[0].mxu0
        %v4359 = vadd.f32 %v4054, %v4358
        %v4360 = vpop.f32.mrb[0].mxu0
        %4361 = vdwg.mxu0
        %4362 = vmatprep.subr.mxu0 0.0
        %4363 = vmatpush1.msra.mxu0 %v3655
        %4364 = vmatprep.subr.mxu0 0.0
        %4365 = vmatpush1.msra.mxu0 %v3656
        %4366 = vmatprep.subr.mxu0 0.0
        %4367 = vmatpush1.msra.mxu0 %v3657
        %4368 = vmatprep.subr.mxu0 0.0
        %4369 = vmatpush1.msra.mxu0 %v3658
        %4370 = vmatprep.subr.mxu0 0.0
        %4371 = vmatpush1.msra.mxu0 %v3659
        %4372 = vmatprep.subr.mxu0 0.0
        %4373 = vmatpush1.msra.mxu0 %v3660
        %4374 = vmatprep.subr.mxu0 0.0
        %4375 = vmatpush1.msra.mxu0 %v3661
        %4376 = vmatprep.subr.mxu0 0.0
        %4377 = vmatpush1.msra.mxu0 %v3662
        %4378 = vmatprep.subr.mxu0 0.0
        %4379 = vmatpush1.msra.mxu0 %v3663
        %4380 = vmatprep.subr.mxu0 0.0
        %4381 = vmatpush1.msra.mxu0 %v3664
        %4382 = vmatprep.subr.mxu0 0.0
        %4383 = vmatpush1.msra.mxu0 %v3665
        %4384 = vmatprep.subr.mxu0 0.0
        %4385 = vmatpush1.msra.mxu0 %v3666
        %4386 = vmatprep.subr.mxu0 0.0
        %4387 = vmatpush1.msra.mxu0 %v3667
        %4388 = vmatprep.subr.mxu0 0.0
        %4389 = vmatpush1.msra.mxu0 %v3668
        %4390 = vmatprep.subr.mxu0 0.0
        %4391 = vmatpush1.msra.mxu0 %v3669
        %4392 = vmatprep.subr.mxu0 0.0
        %4393 = vmatpush1.msra.mxu0 %v3670
        %4394 = vmatprep.subr.mxu0 0.0
        %4395 = vmatpush1.msra.mxu0 %v3671
        %4396 = vmatprep.subr.mxu0 0.0
        %4397 = vmatpush1.msra.mxu0 %v3672
        %4398 = vmatprep.subr.mxu0 0.0
        %4399 = vmatpush1.msra.mxu0 %v3673
        %4400 = vmatprep.subr.mxu0 0.0
        %4401 = vmatpush1.msra.mxu0 %v3674
        %4402 = vmatprep.subr.mxu0 0.0
        %4403 = vmatpush1.msra.mxu0 %v3675
        %4404 = vmatprep.subr.mxu0 0.0
        %4405 = vmatpush1.msra.mxu0 %v3676
        %4406 = vmatprep.subr.mxu0 0.0
        %4407 = vmatpush1.msra.mxu0 %v3677
        %4408 = vmatprep.subr.mxu0 0.0
        %4409 = vmatpush1.msra.mxu0 %v3678
        %4410 = vmatprep.subr.mxu0 0.0
        %4411 = vmatpush1.msra.mxu0 %v3679
        %4412 = vmatprep.subr.mxu0 0.0
        %4413 = vmatpush1.msra.mxu0 %v3680
        %4414 = vmatprep.subr.mxu0 0.0
        %4415 = vmatpush1.msra.mxu0 %v3681
        %4416 = vmatprep.subr.mxu0 0.0
        %4417 = vmatpush1.msra.mxu0 %v3682
        %4418 = vmatprep.subr.mxu0 0.0
        %4419 = vmatpush1.msra.mxu0 %v3683
        %4420 = vmatprep.subr.mxu0 0.0
        %4421 = vmatpush1.msra.mxu0 %v3684
        %4422 = vmatprep.subr.mxu0 0.0
        %4423 = vmatpush1.msra.mxu0 %v3685
        %4424 = vmatprep.subr.mxu0 0.0
        %4425 = vmatpush1.msra.mxu0 %v3686
        %4426 = vmatprep.mubr.f32.mxu0 %v3331
        %4427 = vmatmul.mubr.f32.gmra.mrb[0].mxu0 %v3220
        %v4428 = vpop.f32.mrb[0].mxu0
        %v4429 = vadd.f32 %v4124, %v4428
        %v4430 = vpop.f32.mrb[0].mxu0
        %4431 = vmatprep.mubr.f32.mxu0 %v3333
        %4432 = vmatmul.mubr.f32.gmra.mrb[0].mxu0 %v3221
        %v4433 = vpop.f32.mrb[0].mxu0
        %v4434 = vadd.f32 %v4129, %v4433
        %v4435 = vpop.f32.mrb[0].mxu0
        %4436 = vmatprep.mubr.f32.mxu0 %v3335
        %4437 = vmatmul.mubr.f32.gmra.mrb[0].mxu0 %v3222
        %v4438 = vpop.f32.mrb[0].mxu0
        %v4439 = vadd.f32 %v4134, %v4438
        %v4440 = vpop.f32.mrb[0].mxu0
        %4441 = vmatprep.mubr.f32.mxu0 %v3337
        %4442 = vmatmul.mubr.f32.gmra.mrb[0].mxu0 %v3223
        %v4443 = vpop.f32.mrb[0].mxu0
        %v4444 = vadd.f32 %v4139, %v4443
        %v4445 = vpop.f32.mrb[0].mxu0
        %4446 = vmatprep.mubr.f32.mxu0 %v3339
        %4447 = vmatmul.mubr.f32.gmra.mrb[0].mxu0 %v3224
        %v4448 = vpop.f32.mrb[0].mxu0
        %v4449 = vadd.f32 %v4144, %v4448
        %v4450 = vpop.f32.mrb[0].mxu0
        %4451 = vmatprep.mubr.f32.mxu0 %v3341
        %4452 = vmatmul.mubr.f32.gmra.mrb[0].mxu0 %v3225
        %v4453 = vpop.f32.mrb[0].mxu0
        %v4454 = vadd.f32 %v4149, %v4453
        %v4455 = vpop.f32.mrb[0].mxu0
        %4456 = vmatprep.mubr.f32.mxu0 %v3343
        %4457 = vmatmul.mubr.f32.gmra.mrb[0].mxu0 %v3226
        %v4458 = vpop.f32.mrb[0].mxu0
        %v4459 = vadd.f32 %v4154, %v4458
        %v4460 = vpop.f32.mrb[0].mxu0
        %4461 = vmatprep.mubr.f32.mxu0 %v3345
        %4462 = vmatmul.mubr.f32.gmra.mrb[0].mxu0 %v3227
        %v4463 = vpop.f32.mrb[0].mxu0
        %v4464 = vadd.f32 %v4159, %v4463
        %v4465 = vpop.f32.mrb[0].mxu0
        %4466 = vmatprep.mubr.f32.mxu0 %v3347
        %4467 = vmatmul.mubr.f32.gmra.mrb[0].mxu0 %v3228
        %v4468 = vpop.f32.mrb[0].mxu0
        %v4469 = vadd.f32 %v4164, %v4468
        %v4470 = vpop.f32.mrb[0].mxu0
        %4471 = vmatprep.mubr.f32.mxu0 %v3349
        %4472 = vmatmul.mubr.f32.gmra.mrb[0].mxu0 %v3229
        %v4473 = vpop.f32.mrb[0].mxu0
        %v4474 = vadd.f32 %v4169, %v4473
        %v4475 = vpop.f32.mrb[0].mxu0
        %4476 = vmatprep.mubr.f32.mxu0 %v3351
        %4477 = vmatmul.mubr.f32.gmra.mrb[0].mxu0 %v3230
        %v4478 = vpop.f32.mrb[0].mxu0
        %v4479 = vadd.f32 %v4174, %v4478
        %v4480 = vpop.f32.mrb[0].mxu0
        %4481 = vmatprep.mubr.f32.mxu0 %v3353
        %4482 = vmatmul.mubr.f32.gmra.mrb[0].mxu0 %v3231
        %v4483 = vpop.f32.mrb[0].mxu0
        %v4484 = vadd.f32 %v4179, %v4483
        %v4485 = vpop.f32.mrb[0].mxu0
        %4486 = vmatprep.mubr.f32.mxu0 %v3355
        %4487 = vmatmul.mubr.f32.gmra.mrb[0].mxu0 %v3232
        %v4488 = vpop.f32.mrb[0].mxu0
        %v4489 = vadd.f32 %v4184, %v4488
        %v4490 = vpop.f32.mrb[0].mxu0
        %4491 = vmatprep.mubr.f32.mxu0 %v3357
        %4492 = vmatmul.mubr.f32.gmra.mrb[0].mxu0 %v3233
        %v4493 = vpop.f32.mrb[0].mxu0
        %v4494 = vadd.f32 %v4189, %v4493
        %v4495 = vpop.f32.mrb[0].mxu0
        %4496 = vmatprep.mubr.f32.mxu0 %v3359
        %4497 = vmatmul.mubr.f32.gmra.mrb[0].mxu0 %v3234
        %v4498 = vpop.f32.mrb[0].mxu0
        %v4499 = vadd.f32 %v4194, %v4498
        %v4500 = vpop.f32.mrb[0].mxu0
        %4501 = vmatprep.mubr.f32.mxu0 %v3361
        %4502 = vmatmul.mubr.f32.gmra.mrb[0].mxu0 %v3235
        %v4503 = vpop.f32.mrb[0].mxu0
        %v4504 = vadd.f32 %v4199, %v4503
        %v4505 = vpop.f32.mrb[0].mxu0
        %4506 = vmatprep.mubr.f32.mxu0 %v3363
        %4507 = vmatmul.mubr.f32.gmra.mrb[0].mxu0 %v3236
        %v4508 = vpop.f32.mrb[0].mxu0
        %v4509 = vadd.f32 %v4204, %v4508
        %v4510 = vpop.f32.mrb[0].mxu0
        %4511 = vmatprep.mubr.f32.mxu0 %v3365
        %4512 = vmatmul.mubr.f32.gmra.mrb[0].mxu0 %v3237
        %v4513 = vpop.f32.mrb[0].mxu0
        %v4514 = vadd.f32 %v4209, %v4513
        %v4515 = vpop.f32.mrb[0].mxu0
        %4516 = vmatprep.mubr.f32.mxu0 %v3367
        %4517 = vmatmul.mubr.f32.gmra.mrb[0].mxu0 %v3238
        %v4518 = vpop.f32.mrb[0].mxu0
        %v4519 = vadd.f32 %v4214, %v4518
        %v4520 = vpop.f32.mrb[0].mxu0
        %4521 = vmatprep.mubr.f32.mxu0 %v3369
        %4522 = vmatmul.mubr.f32.gmra.mrb[0].mxu0 %v3239
        %v4523 = vpop.f32.mrb[0].mxu0
        %v4524 = vadd.f32 %v4219, %v4523
        %v4525 = vpop.f32.mrb[0].mxu0
        %4526 = vmatprep.mubr.f32.mxu0 %v3371
        %4527 = vmatmul.mubr.f32.gmra.mrb[0].mxu0 %v3240
        %v4528 = vpop.f32.mrb[0].mxu0
        %v4529 = vadd.f32 %v4224, %v4528
        %v4530 = vpop.f32.mrb[0].mxu0
        %4531 = vmatprep.mubr.f32.mxu0 %v3373
        %4532 = vmatmul.mubr.f32.gmra.mrb[0].mxu0 %v3241
        %v4533 = vpop.f32.mrb[0].mxu0
        %v4534 = vadd.f32 %v4229, %v4533
        %v4535 = vpop.f32.mrb[0].mxu0
        %4536 = vmatprep.mubr.f32.mxu0 %v3375
        %4537 = vmatmul.mubr.f32.gmra.mrb[0].mxu0 %v3242
        %v4538 = vpop.f32.mrb[0].mxu0
        %v4539 = vadd.f32 %v4234, %v4538
        %v4540 = vpop.f32.mrb[0].mxu0
        %4541 = vmatprep.mubr.f32.mxu0 %v3377
        %4542 = vmatmul.mubr.f32.gmra.mrb[0].mxu0 %v3243
        %v4543 = vpop.f32.mrb[0].mxu0
        %v4544 = vadd.f32 %v4239, %v4543
        %v4545 = vpop.f32.mrb[0].mxu0
        %4546 = vmatprep.mubr.f32.mxu0 %v3379
        %4547 = vmatmul.mubr.f32.gmra.mrb[0].mxu0 %v3244
        %v4548 = vpop.f32.mrb[0].mxu0
        %v4549 = vadd.f32 %v4244, %v4548
        %v4550 = vpop.f32.mrb[0].mxu0
        %4551 = vmatprep.mubr.f32.mxu0 %v3381
        %4552 = vmatmul.mubr.f32.gmra.mrb[0].mxu0 %v3245
        %v4553 = vpop.f32.mrb[0].mxu0
        %v4554 = vadd.f32 %v4249, %v4553
        %v4555 = vpop.f32.mrb[0].mxu0
        %4556 = vmatprep.mubr.f32.mxu0 %v3383
        %4557 = vmatmul.mubr.f32.gmra.mrb[0].mxu0 %v3246
        %v4558 = vpop.f32.mrb[0].mxu0
        %v4559 = vadd.f32 %v4254, %v4558
        %v4560 = vpop.f32.mrb[0].mxu0
        %4561 = vmatprep.mubr.f32.mxu0 %v3385
        %4562 = vmatmul.mubr.f32.gmra.mrb[0].mxu0 %v3247
        %v4563 = vpop.f32.mrb[0].mxu0
        %v4564 = vadd.f32 %v4259, %v4563
        %v4565 = vpop.f32.mrb[0].mxu0
        %4566 = vmatprep.mubr.f32.mxu0 %v3387
        %4567 = vmatmul.mubr.f32.gmra.mrb[0].mxu0 %v3248
        %v4568 = vpop.f32.mrb[0].mxu0
        %v4569 = vadd.f32 %v4264, %v4568
        %v4570 = vpop.f32.mrb[0].mxu0
        %4571 = vmatprep.mubr.f32.mxu0 %v3389
        %4572 = vmatmul.mubr.f32.gmra.mrb[0].mxu0 %v3249
        %v4573 = vpop.f32.mrb[0].mxu0
        %v4574 = vadd.f32 %v4269, %v4573
        %v4575 = vpop.f32.mrb[0].mxu0
        %4576 = vmatprep.mubr.f32.mxu0 %v3391
        %4577 = vmatmul.mubr.f32.gmra.mrb[0].mxu0 %v3250
        %v4578 = vpop.f32.mrb[0].mxu0
        %v4579 = vadd.f32 %v4274, %v4578
        %v4580 = vpop.f32.mrb[0].mxu0
        %4581 = vmatprep.mubr.f32.mxu0 %v3393
        %4582 = vmatmul.mubr.f32.gmra.mrb[0].mxu0 %v3251
        %v4583 = vpop.f32.mrb[0].mxu0
        %v4584 = vadd.f32 %v4279, %v4583
        %v4585 = vpop.f32.mrb[0].mxu0
        %4586 = vmatprep.mubr.f32.mxu0 %v3395
        %4587 = vmatmul.mubr.f32.gmra.mrb[0].mxu0 %v3252
        %v4588 = vpop.f32.mrb[0].mxu0
        %v4589 = vadd.f32 %v4284, %v4588
        %v4590 = vpop.f32.mrb[0].mxu0
        %4591 = vmatprep.mubr.f32.mxu0 %v3397
        %4592 = vmatmul.mubr.f32.gmra.mrb[0].mxu0 %v3253
        %v4593 = vpop.f32.mrb[0].mxu0
        %v4594 = vadd.f32 %v4289, %v4593
        %v4595 = vpop.f32.mrb[0].mxu0
        %4596 = vmatprep.mubr.f32.mxu0 %v3399
        %4597 = vmatmul.mubr.f32.gmra.mrb[0].mxu0 %v3254
        %v4598 = vpop.f32.mrb[0].mxu0
        %v4599 = vadd.f32 %v4294, %v4598
        %v4600 = vpop.f32.mrb[0].mxu0
        %4601 = vmatprep.mubr.f32.mxu0 %v3401
        %4602 = vmatmul.mubr.f32.gmra.mrb[0].mxu0 %v3255
        %v4603 = vpop.f32.mrb[0].mxu0
        %v4604 = vadd.f32 %v4299, %v4603
        %v4605 = vpop.f32.mrb[0].mxu0
        %4606 = vmatprep.mubr.f32.mxu0 %v3403
        %4607 = vmatmul.mubr.f32.gmra.mrb[0].mxu0 %v3256
        %v4608 = vpop.f32.mrb[0].mxu0
        %v4609 = vadd.f32 %v4304, %v4608
        %v4610 = vpop.f32.mrb[0].mxu0
        %4611 = vmatprep.mubr.f32.mxu0 %v3405
        %4612 = vmatmul.mubr.f32.gmra.mrb[0].mxu0 %v3257
        %v4613 = vpop.f32.mrb[0].mxu0
        %v4614 = vadd.f32 %v4309, %v4613
        %v4615 = vpop.f32.mrb[0].mxu0
        %4616 = vmatprep.mubr.f32.mxu0 %v3407
        %4617 = vmatmul.mubr.f32.gmra.mrb[0].mxu0 %v3258
        %v4618 = vpop.f32.mrb[0].mxu0
        %v4619 = vadd.f32 %v4314, %v4618
        %v4620 = vpop.f32.mrb[0].mxu0
        %4621 = vmatprep.mubr.f32.mxu0 %v3409
        %4622 = vmatmul.mubr.f32.gmra.mrb[0].mxu0 %v3259
        %v4623 = vpop.f32.mrb[0].mxu0
        %v4624 = vadd.f32 %v4319, %v4623
        %v4625 = vpop.f32.mrb[0].mxu0
        %4626 = vmatprep.mubr.f32.mxu0 %v3411
        %4627 = vmatmul.mubr.f32.gmra.mrb[0].mxu0 %v3260
        %v4628 = vpop.f32.mrb[0].mxu0
        %v4629 = vadd.f32 %v4324, %v4628
        %v4630 = vpop.f32.mrb[0].mxu0
        %4631 = vmatprep.mubr.f32.mxu0 %v3413
        %4632 = vmatmul.mubr.f32.gmra.mrb[0].mxu0 %v3261
        %v4633 = vpop.f32.mrb[0].mxu0
        %v4634 = vadd.f32 %v4329, %v4633
        %v4635 = vpop.f32.mrb[0].mxu0
        %4636 = vmatprep.mubr.f32.mxu0 %v3415
        %4637 = vmatmul.mubr.f32.gmra.mrb[0].mxu0 %v3262
        %v4638 = vpop.f32.mrb[0].mxu0
        %v4639 = vadd.f32 %v4334, %v4638
        %v4640 = vpop.f32.mrb[0].mxu0
        %4641 = vmatprep.mubr.f32.mxu0 %v3417
        %4642 = vmatmul.mubr.f32.gmra.mrb[0].mxu0 %v3263
        %v4643 = vpop.f32.mrb[0].mxu0
        %v4644 = vadd.f32 %v4339, %v4643
        %v4645 = vpop.f32.mrb[0].mxu0
        %4646 = vmatprep.mubr.f32.mxu0 %v3419
        %4647 = vmatmul.mubr.f32.gmra.mrb[0].mxu0 %v3264
        %v4648 = vpop.f32.mrb[0].mxu0
        %v4649 = vadd.f32 %v4344, %v4648
        %v4650 = vpop.f32.mrb[0].mxu0
        %4651 = vmatprep.mubr.f32.mxu0 %v3421
        %4652 = vmatmul.mubr.f32.gmra.mrb[0].mxu0 %v3265
        %v4653 = vpop.f32.mrb[0].mxu0
        %v4654 = vadd.f32 %v4349, %v4653
        %v4655 = vpop.f32.mrb[0].mxu0
        %4656 = vmatprep.mubr.f32.mxu0 %v3423
        %4657 = vmatmul.mubr.f32.gmra.mrb[0].mxu0 %v3266
        %v4658 = vpop.f32.mrb[0].mxu0
        %v4659 = vadd.f32 %v4354, %v4658
        %v4660 = vpop.f32.mrb[0].mxu0
        %4661 = vmatprep.mubr.f32.mxu0 %v3425
        %4662 = vmatmul.mubr.f32.gmra.mrb[0].mxu0 %v3267
        %v4663 = vpop.f32.mrb[0].mxu0
        %v4664 = vadd.f32 %v4359, %v4663
        %v4665 = vpop.f32.mrb[0].mxu0
        %4666 = vdwg.mxu0
        %4667 = vmatprep.subr.mxu0 0.0
        %4668 = vmatpush1.msra.mxu0 %v3687
        %4669 = vmatprep.subr.mxu0 0.0
        %4670 = vmatpush1.msra.mxu0 %v3688
        %4671 = vmatprep.subr.mxu0 0.0
        %4672 = vmatpush1.msra.mxu0 %v3689
        %4673 = vmatprep.subr.mxu0 0.0
        %4674 = vmatpush1.msra.mxu0 %v3690
        %4675 = vmatprep.subr.mxu0 0.0
        %4676 = vmatpush1.msra.mxu0 %v3691
        %4677 = vmatprep.subr.mxu0 0.0
        %4678 = vmatpush1.msra.mxu0 %v3692
        %4679 = vmatprep.subr.mxu0 0.0
        %4680 = vmatpush1.msra.mxu0 %v3693
        %4681 = vmatprep.subr.mxu0 0.0
        %4682 = vmatpush1.msra.mxu0 %v3694
        %4683 = vmatprep.subr.mxu0 0.0
        %4684 = vmatpush1.msra.mxu0 %v3695
        %4685 = vmatprep.subr.mxu0 0.0
        %4686 = vmatpush1.msra.mxu0 %v3696
        %4687 = vmatprep.subr.mxu0 0.0
        %4688 = vmatpush1.msra.mxu0 %v3697
        %4689 = vmatprep.subr.mxu0 0.0
        %4690 = vmatpush1.msra.mxu0 %v3698
        %4691 = vmatprep.subr.mxu0 0.0
        %4692 = vmatpush1.msra.mxu0 %v3699
        %4693 = vmatprep.subr.mxu0 0.0
        %4694 = vmatpush1.msra.mxu0 %v3700
        %4695 = vmatprep.subr.mxu0 0.0
        %4696 = vmatpush1.msra.mxu0 %v3701
        %4697 = vmatprep.subr.mxu0 0.0
        %4698 = vmatpush1.msra.mxu0 %v3702
        %4699 = vmatprep.subr.mxu0 0.0
        %4700 = vmatpush1.msra.mxu0 0.0
        %4701 = vmatprep.subr.mxu0 0.0
        %4702 = vmatpush1.msra.mxu0 0.0
        %4703 = vmatprep.subr.mxu0 0.0
        %4704 = vmatpush1.msra.mxu0 0.0
        %4705 = vmatprep.subr.mxu0 0.0
        %4706 = vmatpush1.msra.mxu0 0.0
        %4707 = vmatprep.subr.mxu0 0.0
        %4708 = vmatpush1.msra.mxu0 0.0
        %4709 = vmatprep.subr.mxu0 0.0
        %4710 = vmatpush1.msra.mxu0 0.0
        %4711 = vmatprep.subr.mxu0 0.0
        %4712 = vmatpush1.msra.mxu0 0.0
        %4713 = vmatprep.subr.mxu0 0.0
        %4714 = vmatpush1.msra.mxu0 0.0
        %4715 = vmatprep.subr.mxu0 0.0
        %4716 = vmatpush1.msra.mxu0 0.0
        %4717 = vmatprep.subr.mxu0 0.0
        %4718 = vmatpush1.msra.mxu0 0.0
        %4719 = vmatprep.subr.mxu0 0.0
        %4720 = vmatpush1.msra.mxu0 0.0
        %4721 = vmatprep.subr.mxu0 0.0
        %4722 = vmatpush1.msra.mxu0 0.0
        %4723 = vmatprep.subr.mxu0 0.0
        %4724 = vmatpush1.msra.mxu0 0.0
        %4725 = vmatprep.subr.mxu0 0.0
        %4726 = vmatpush1.msra.mxu0 0.0
        %4727 = vmatprep.subr.mxu0 0.0
        %4728 = vmatpush1.msra.mxu0 0.0
        %4729 = vmatprep.subr.mxu0 0.0
        %4730 = vmatpush1.msra.mxu0 0.0
        %4731 = vmatprep.mubr.f32.mxu0 0.0
        %4732 = vmatmul.mubr.f32.gmra.mrb[0].mxu0 %v3494
        %v4733 = vpop.f32.mrb[0].mxu0
        %v4734 = vadd.f32 %v4429, %v4733
        %v4735 = vpop.f32.mrb[0].mxu0
        %4736 = vmatprep.mubr.f32.mxu0 0.0
        %4737 = vmatmul.mubr.f32.gmra.mrb[0].mxu0 %v3496
        %v4738 = vpop.f32.mrb[0].mxu0
        %v4739 = vadd.f32 %v4434, %v4738
        %v4740 = vpop.f32.mrb[0].mxu0
        %4741 = vmatprep.mubr.f32.mxu0 0.0
        %4742 = vmatmul.mubr.f32.gmra.mrb[0].mxu0 %v3498
        %v4743 = vpop.f32.mrb[0].mxu0
        %v4744 = vadd.f32 %v4439, %v4743
        %v4745 = vpop.f32.mrb[0].mxu0
        %4746 = vmatprep.mubr.f32.mxu0 0.0
        %4747 = vmatmul.mubr.f32.gmra.mrb[0].mxu0 %v3500
        %v4748 = vpop.f32.mrb[0].mxu0
        %v4749 = vadd.f32 %v4444, %v4748
        %v4750 = vpop.f32.mrb[0].mxu0
        %4751 = vmatprep.mubr.f32.mxu0 0.0
        %4752 = vmatmul.mubr.f32.gmra.mrb[0].mxu0 %v3502
        %v4753 = vpop.f32.mrb[0].mxu0
        %v4754 = vadd.f32 %v4449, %v4753
        %v4755 = vpop.f32.mrb[0].mxu0
        %4756 = vmatprep.mubr.f32.mxu0 0.0
        %4757 = vmatmul.mubr.f32.gmra.mrb[0].mxu0 %v3504
        %v4758 = vpop.f32.mrb[0].mxu0
        %v4759 = vadd.f32 %v4454, %v4758
        %v4760 = vpop.f32.mrb[0].mxu0
        %4761 = vmatprep.mubr.f32.mxu0 0.0
        %4762 = vmatmul.mubr.f32.gmra.mrb[0].mxu0 %v3506
        %v4763 = vpop.f32.mrb[0].mxu0
        %v4764 = vadd.f32 %v4459, %v4763
        %v4765 = vpop.f32.mrb[0].mxu0
        %4766 = vmatprep.mubr.f32.mxu0 0.0
        %4767 = vmatmul.mubr.f32.gmra.mrb[0].mxu0 %v3508
        %v4768 = vpop.f32.mrb[0].mxu0
        %v4769 = vadd.f32 %v4464, %v4768
        %v4770 = vpop.f32.mrb[0].mxu0
        %4771 = vmatprep.mubr.f32.mxu0 0.0
        %4772 = vmatmul.mubr.f32.gmra.mrb[0].mxu0 %v3510
        %v4773 = vpop.f32.mrb[0].mxu0
        %v4774 = vadd.f32 %v4469, %v4773
        %v4775 = vpop.f32.mrb[0].mxu0
        %4776 = vmatprep.mubr.f32.mxu0 0.0
        %4777 = vmatmul.mubr.f32.gmra.mrb[0].mxu0 %v3512
        %v4778 = vpop.f32.mrb[0].mxu0
        %v4779 = vadd.f32 %v4474, %v4778
        %v4780 = vpop.f32.mrb[0].mxu0
        %4781 = vmatprep.mubr.f32.mxu0 0.0
        %4782 = vmatmul.mubr.f32.gmra.mrb[0].mxu0 %v3514
        %v4783 = vpop.f32.mrb[0].mxu0
        %v4784 = vadd.f32 %v4479, %v4783
        %v4785 = vpop.f32.mrb[0].mxu0
        %4786 = vmatprep.mubr.f32.mxu0 0.0
        %4787 = vmatmul.mubr.f32.gmra.mrb[0].mxu0 %v3516
        %v4788 = vpop.f32.mrb[0].mxu0
        %v4789 = vadd.f32 %v4484, %v4788
        %v4790 = vpop.f32.mrb[0].mxu0
        %4791 = vmatprep.mubr.f32.mxu0 0.0
        %4792 = vmatmul.mubr.f32.gmra.mrb[0].mxu0 %v3518
        %v4793 = vpop.f32.mrb[0].mxu0
        %v4794 = vadd.f32 %v4489, %v4793
        %v4795 = vpop.f32.mrb[0].mxu0
        %4796 = vmatprep.mubr.f32.mxu0 0.0
        %4797 = vmatmul.mubr.f32.gmra.mrb[0].mxu0 %v3520
        %v4798 = vpop.f32.mrb[0].mxu0
        %v4799 = vadd.f32 %v4494, %v4798
        %v4800 = vpop.f32.mrb[0].mxu0
        %4801 = vmatprep.mubr.f32.mxu0 0.0
        %4802 = vmatmul.mubr.f32.gmra.mrb[0].mxu0 %v3522
        %v4803 = vpop.f32.mrb[0].mxu0
        %v4804 = vadd.f32 %v4499, %v4803
        %v4805 = vpop.f32.mrb[0].mxu0
        %4806 = vmatprep.mubr.f32.mxu0 0.0
        %4807 = vmatmul.mubr.f32.gmra.mrb[0].mxu0 %v3524
        %v4808 = vpop.f32.mrb[0].mxu0
        %v4809 = vadd.f32 %v4504, %v4808
        %v4810 = vpop.f32.mrb[0].mxu0
        %4811 = vmatprep.mubr.f32.mxu0 0.0
        %4812 = vmatmul.mubr.f32.gmra.mrb[0].mxu0 %v3526
        %v4813 = vpop.f32.mrb[0].mxu0
        %v4814 = vadd.f32 %v4509, %v4813
        %v4815 = vpop.f32.mrb[0].mxu0
        %4816 = vmatprep.mubr.f32.mxu0 0.0
        %4817 = vmatmul.mubr.f32.gmra.mrb[0].mxu0 %v3528
        %v4818 = vpop.f32.mrb[0].mxu0
        %v4819 = vadd.f32 %v4514, %v4818
        %v4820 = vpop.f32.mrb[0].mxu0
        %4821 = vmatprep.mubr.f32.mxu0 0.0
        %4822 = vmatmul.mubr.f32.gmra.mrb[0].mxu0 %v3530
        %v4823 = vpop.f32.mrb[0].mxu0
        %v4824 = vadd.f32 %v4519, %v4823
        %v4825 = vpop.f32.mrb[0].mxu0
        %4826 = vmatprep.mubr.f32.mxu0 0.0
        %4827 = vmatmul.mubr.f32.gmra.mrb[0].mxu0 %v3532
        %v4828 = vpop.f32.mrb[0].mxu0
        %v4829 = vadd.f32 %v4524, %v4828
        %v4830 = vpop.f32.mrb[0].mxu0
        %4831 = vmatprep.mubr.f32.mxu0 0.0
        %4832 = vmatmul.mubr.f32.gmra.mrb[0].mxu0 %v3534
        %v4833 = vpop.f32.mrb[0].mxu0
        %v4834 = vadd.f32 %v4529, %v4833
        %v4835 = vpop.f32.mrb[0].mxu0
        %4836 = vmatprep.mubr.f32.mxu0 0.0
        %4837 = vmatmul.mubr.f32.gmra.mrb[0].mxu0 %v3536
        %v4838 = vpop.f32.mrb[0].mxu0
        %v4839 = vadd.f32 %v4534, %v4838
        %v4840 = vpop.f32.mrb[0].mxu0
        %4841 = vmatprep.mubr.f32.mxu0 0.0
        %4842 = vmatmul.mubr.f32.gmra.mrb[0].mxu0 %v3538
        %v4843 = vpop.f32.mrb[0].mxu0
        %v4844 = vadd.f32 %v4539, %v4843
        %v4845 = vpop.f32.mrb[0].mxu0
        %4846 = vmatprep.mubr.f32.mxu0 0.0
        %4847 = vmatmul.mubr.f32.gmra.mrb[0].mxu0 %v3540
        %v4848 = vpop.f32.mrb[0].mxu0
        %v4849 = vadd.f32 %v4544, %v4848
        %v4850 = vpop.f32.mrb[0].mxu0
        %4851 = vmatprep.mubr.f32.mxu0 0.0
        %4852 = vmatmul.mubr.f32.gmra.mrb[0].mxu0 %v3542
        %v4853 = vpop.f32.mrb[0].mxu0
        %v4854 = vadd.f32 %v4549, %v4853
        %v4855 = vpop.f32.mrb[0].mxu0
        %4856 = vmatprep.mubr.f32.mxu0 0.0
        %4857 = vmatmul.mubr.f32.gmra.mrb[0].mxu0 %v3544
        %v4858 = vpop.f32.mrb[0].mxu0
        %v4859 = vadd.f32 %v4554, %v4858
        %v4860 = vpop.f32.mrb[0].mxu0
        %4861 = vmatprep.mubr.f32.mxu0 0.0
        %4862 = vmatmul.mubr.f32.gmra.mrb[0].mxu0 %v3546
        %v4863 = vpop.f32.mrb[0].mxu0
        %v4864 = vadd.f32 %v4559, %v4863
        %v4865 = vpop.f32.mrb[0].mxu0
        %4866 = vmatprep.mubr.f32.mxu0 0.0
        %4867 = vmatmul.mubr.f32.gmra.mrb[0].mxu0 %v3548
        %v4868 = vpop.f32.mrb[0].mxu0
        %v4869 = vadd.f32 %v4564, %v4868
        %v4870 = vpop.f32.mrb[0].mxu0
        %4871 = vmatprep.mubr.f32.mxu0 0.0
        %4872 = vmatmul.mubr.f32.gmra.mrb[0].mxu0 %v3550
        %v4873 = vpop.f32.mrb[0].mxu0
        %v4874 = vadd.f32 %v4569, %v4873
        %v4875 = vpop.f32.mrb[0].mxu0
        %4876 = vmatprep.mubr.f32.mxu0 0.0
        %4877 = vmatmul.mubr.f32.gmra.mrb[0].mxu0 %v3552
        %v4878 = vpop.f32.mrb[0].mxu0
        %v4879 = vadd.f32 %v4574, %v4878
        %v4880 = vpop.f32.mrb[0].mxu0
        %4881 = vmatprep.mubr.f32.mxu0 0.0
        %4882 = vmatmul.mubr.f32.gmra.mrb[0].mxu0 %v3554
        %v4883 = vpop.f32.mrb[0].mxu0
        %v4884 = vadd.f32 %v4579, %v4883
        %v4885 = vpop.f32.mrb[0].mxu0
        %4886 = vmatprep.mubr.f32.mxu0 0.0
        %4887 = vmatmul.mubr.f32.gmra.mrb[0].mxu0 %v3556
        %v4888 = vpop.f32.mrb[0].mxu0
        %v4889 = vadd.f32 %v4584, %v4888
        %v4890 = vpop.f32.mrb[0].mxu0
        %4891 = vmatprep.mubr.f32.mxu0 0.0
        %4892 = vmatmul.mubr.f32.gmra.mrb[0].mxu0 %v3558
        %v4893 = vpop.f32.mrb[0].mxu0
        %v4894 = vadd.f32 %v4589, %v4893
        %v4895 = vpop.f32.mrb[0].mxu0
        %4896 = vmatprep.mubr.f32.mxu0 0.0
        %4897 = vmatmul.mubr.f32.gmra.mrb[0].mxu0 %v3560
        %v4898 = vpop.f32.mrb[0].mxu0
        %v4899 = vadd.f32 %v4594, %v4898
        %v4900 = vpop.f32.mrb[0].mxu0
        %4901 = vmatprep.mubr.f32.mxu0 0.0
        %4902 = vmatmul.mubr.f32.gmra.mrb[0].mxu0 %v3562
        %v4903 = vpop.f32.mrb[0].mxu0
        %v4904 = vadd.f32 %v4599, %v4903
        %v4905 = vpop.f32.mrb[0].mxu0
        %4906 = vmatprep.mubr.f32.mxu0 0.0
        %4907 = vmatmul.mubr.f32.gmra.mrb[0].mxu0 %v3564
        %v4908 = vpop.f32.mrb[0].mxu0
        %v4909 = vadd.f32 %v4604, %v4908
        %v4910 = vpop.f32.mrb[0].mxu0
        %4911 = vmatprep.mubr.f32.mxu0 0.0
        %4912 = vmatmul.mubr.f32.gmra.mrb[0].mxu0 %v3566
        %v4913 = vpop.f32.mrb[0].mxu0
        %v4914 = vadd.f32 %v4609, %v4913
        %v4915 = vpop.f32.mrb[0].mxu0
        %4916 = vmatprep.mubr.f32.mxu0 0.0
        %4917 = vmatmul.mubr.f32.gmra.mrb[0].mxu0 %v3568
        %v4918 = vpop.f32.mrb[0].mxu0
        %v4919 = vadd.f32 %v4614, %v4918
        %v4920 = vpop.f32.mrb[0].mxu0
        %4921 = vmatprep.mubr.f32.mxu0 0.0
        %4922 = vmatmul.mubr.f32.gmra.mrb[0].mxu0 %v3570
        %v4923 = vpop.f32.mrb[0].mxu0
        %v4924 = vadd.f32 %v4619, %v4923
        %v4925 = vpop.f32.mrb[0].mxu0
        %4926 = vmatprep.mubr.f32.mxu0 0.0
        %4927 = vmatmul.mubr.f32.gmra.mrb[0].mxu0 %v3572
        %v4928 = vpop.f32.mrb[0].mxu0
        %v4929 = vadd.f32 %v4624, %v4928
        %v4930 = vpop.f32.mrb[0].mxu0
        %4931 = vmatprep.mubr.f32.mxu0 0.0
        %4932 = vmatmul.mubr.f32.gmra.mrb[0].mxu0 %v3574
        %v4933 = vpop.f32.mrb[0].mxu0
        %v4934 = vadd.f32 %v4629, %v4933
        %v4935 = vpop.f32.mrb[0].mxu0
        %4936 = vmatprep.mubr.f32.mxu0 0.0
        %4937 = vmatmul.mubr.f32.gmra.mrb[0].mxu0 %v3576
        %v4938 = vpop.f32.mrb[0].mxu0
        %v4939 = vadd.f32 %v4634, %v4938
        %v4940 = vpop.f32.mrb[0].mxu0
        %4941 = vmatprep.mubr.f32.mxu0 0.0
        %4942 = vmatmul.mubr.f32.gmra.mrb[0].mxu0 %v3578
        %v4943 = vpop.f32.mrb[0].mxu0
        %v4944 = vadd.f32 %v4639, %v4943
        %v4945 = vpop.f32.mrb[0].mxu0
        %4946 = vmatprep.mubr.f32.mxu0 0.0
        %4947 = vmatmul.mubr.f32.gmra.mrb[0].mxu0 %v3580
        %v4948 = vpop.f32.mrb[0].mxu0
        %v4949 = vadd.f32 %v4644, %v4948
        %v4950 = vpop.f32.mrb[0].mxu0
        %4951 = vmatprep.mubr.f32.mxu0 0.0
        %4952 = vmatmul.mubr.f32.gmra.mrb[0].mxu0 %v3582
        %v4953 = vpop.f32.mrb[0].mxu0
        %v4954 = vadd.f32 %v4649, %v4953
        %v4955 = vpop.f32.mrb[0].mxu0
        %4956 = vmatprep.mubr.f32.mxu0 0.0
        %4957 = vmatmul.mubr.f32.gmra.mrb[0].mxu0 %v3584
        %v4958 = vpop.f32.mrb[0].mxu0
        %v4959 = vadd.f32 %v4654, %v4958
        %v4960 = vpop.f32.mrb[0].mxu0
        %4961 = vmatprep.mubr.f32.mxu0 0.0
        %4962 = vmatmul.mubr.f32.gmra.mrb[0].mxu0 %v3586
        %v4963 = vpop.f32.mrb[0].mxu0
        %v4964 = vadd.f32 %v4659, %v4963
        %v4965 = vpop.f32.mrb[0].mxu0
        %4966 = vmatprep.mubr.f32.mxu0 0.0
        %4967 = vmatmul.mubr.f32.gmra.mrb[0].mxu0 %v3588
        %v4968 = vpop.f32.mrb[0].mxu0
        %v4969 = vadd.f32 %v4664, %v4968
        %v4970 = vpop.f32.mrb[0].mxu0
        %4971 = vdwg.mxu0
        %s4972 = scalar_lea.vmem [#allocation7], 768
        %v4973 = vld [vmem:[%s4972] sm:$0xff]
        %v4974 = vld [vmem:[%s4972 + $0x8] sm:$0xff]
        %v4975 = vld [vmem:[%s4972 + $0x10] sm:$0xff]
        %v4976 = vld [vmem:[%s4972 + $0x18] sm:$0xff]
        %v4977 = vld [vmem:[%s4972 + $0x20] sm:$0xff]
        %v4978 = vld [vmem:[%s4972 + $0x28] sm:$0xff]
        %v4979 = vld [vmem:[%s4972 + $0x30] sm:$0xff]
        %v4980 = vld [vmem:[%s4972 + $0x38] sm:$0xff]
        %v4981 = vld [vmem:[%s4972 + $0x40] sm:$0xff]
        %v4982 = vld [vmem:[%s4972 + $0x48] sm:$0xff]
        %v4983 = vld [vmem:[%s4972 + $0x50] sm:$0xff]
        %v4984 = vld [vmem:[%s4972 + $0x58] sm:$0xff]
        %v4985 = vld [vmem:[%s4972 + $0x60] sm:$0xff]
        %v4986 = vld [vmem:[%s4972 + $0x68] sm:$0xff]
        %v4987 = vld [vmem:[%s4972 + $0x70] sm:$0xff]
        %v4988 = vld [vmem:[%s4972 + $0x78] sm:$0xff]
        %v4989 = vld [vmem:[%s4972 + $0x80] sm:$0xff]
        %v4990 = vld [vmem:[%s4972 + $0x88] sm:$0xff]
        %v4991 = vld [vmem:[%s4972 + $0x90] sm:$0xff]
        %v4992 = vld [vmem:[%s4972 + $0x98] sm:$0xff]
        %v4993 = vld [vmem:[%s4972 + $0xa0] sm:$0xff]
        %v4994 = vld [vmem:[%s4972 + $0xa8] sm:$0xff]
        %v4995 = vld [vmem:[%s4972 + $0xb0] sm:$0xff]
        %v4996 = vld [vmem:[%s4972 + $0xb8] sm:$0xff]
        %v4997 = vld [vmem:[%s4972 + $0xc0] sm:$0xff]
        %v4998 = vld [vmem:[%s4972 + $0xc8] sm:$0xff]
        %v4999 = vld [vmem:[%s4972 + $0xd0] sm:$0xff]
        %v5000 = vld [vmem:[%s4972 + $0xd8] sm:$0xff]
        %v5001 = vld [vmem:[%s4972 + $0xe0] sm:$0xff]
        %v5002 = vld [vmem:[%s4972 + $0xe8] sm:$0xff]
        %v5003 = vld [vmem:[%s4972 + $0xf0] sm:$0xff]
        %v5004 = vld [vmem:[%s4972 + $0xf8] sm:$0xff]
        %v5005 = vld [vmem:[%s4972 + $0x100] sm:$0xff]
        %v5006 = vld [vmem:[%s4972 + $0x108] sm:$0xff]
        %v5007 = vld [vmem:[%s4972 + $0x110] sm:$0xff]
        %v5008 = vld [vmem:[%s4972 + $0x118] sm:$0xff]
        %v5009 = vld [vmem:[%s4972 + $0x120] sm:$0xff]
        %v5010 = vld [vmem:[%s4972 + $0x128] sm:$0xff]
        %v5011 = vld [vmem:[%s4972 + $0x130] sm:$0xff]
        %v5012 = vld [vmem:[%s4972 + $0x138] sm:$0xff]
        %v5013 = vld [vmem:[%s4972 + $0x140] sm:$0xff]
        %v5014 = vld [vmem:[%s4972 + $0x148] sm:$0xff]
        %v5015 = vld [vmem:[%s4972 + $0x150] sm:$0xff]
        %v5016 = vld [vmem:[%s4972 + $0x158] sm:$0xff]
        %v5017 = vld [vmem:[%s4972 + $0x160] sm:$0xff]
        %v5018 = vld [vmem:[%s4972 + $0x168] sm:$0xff]
        %v5019 = vld [vmem:[%s4972 + $0x170] sm:$0xff]
        %v5020 = vld [vmem:[%s4972 + $0x178] sm:$0xff]
        %5021 = vmatprep.subr.mxu0 0.0
        %5022 = vmatpush1.msra.mxu0 %v4973
        %5023 = vmatprep.subr.mxu0 0.0
        %5024 = vmatpush1.msra.mxu0 %v4974
        %5025 = vmatprep.subr.mxu0 0.0
        %5026 = vmatpush1.msra.mxu0 %v4975
        %5027 = vmatprep.subr.mxu0 0.0
        %5028 = vmatpush1.msra.mxu0 %v4976
        %5029 = vmatprep.subr.mxu0 0.0
        %5030 = vmatpush1.msra.mxu0 %v4977
        %5031 = vmatprep.subr.mxu0 0.0
        %5032 = vmatpush1.msra.mxu0 %v4978
        %5033 = vmatprep.subr.mxu0 0.0
        %5034 = vmatpush1.msra.mxu0 %v4979
        %5035 = vmatprep.subr.mxu0 0.0
        %5036 = vmatpush1.msra.mxu0 %v4980
        %5037 = vmatprep.subr.mxu0 0.0
        %5038 = vmatpush1.msra.mxu0 %v4981
        %5039 = vmatprep.subr.mxu0 0.0
        %5040 = vmatpush1.msra.mxu0 %v4982
        %5041 = vmatprep.subr.mxu0 0.0
        %5042 = vmatpush1.msra.mxu0 %v4983
        %5043 = vmatprep.subr.mxu0 0.0
        %5044 = vmatpush1.msra.mxu0 %v4984
        %5045 = vmatprep.subr.mxu0 0.0
        %5046 = vmatpush1.msra.mxu0 %v4985
        %5047 = vmatprep.subr.mxu0 0.0
        %5048 = vmatpush1.msra.mxu0 %v4986
        %5049 = vmatprep.subr.mxu0 0.0
        %5050 = vmatpush1.msra.mxu0 %v4987
        %5051 = vmatprep.subr.mxu0 0.0
        %5052 = vmatpush1.msra.mxu0 %v4988
        %5053 = vmatprep.subr.mxu0 0.0
        %5054 = vmatpush1.msra.mxu0 %v4989
        %5055 = vmatprep.subr.mxu0 0.0
        %5056 = vmatpush1.msra.mxu0 %v4990
        %5057 = vmatprep.subr.mxu0 0.0
        %5058 = vmatpush1.msra.mxu0 %v4991
        %5059 = vmatprep.subr.mxu0 0.0
        %5060 = vmatpush1.msra.mxu0 %v4992
        %5061 = vmatprep.subr.mxu0 0.0
        %5062 = vmatpush1.msra.mxu0 %v4993
        %5063 = vmatprep.subr.mxu0 0.0
        %5064 = vmatpush1.msra.mxu0 %v4994
        %5065 = vmatprep.subr.mxu0 0.0
        %5066 = vmatpush1.msra.mxu0 %v4995
        %5067 = vmatprep.subr.mxu0 0.0
        %5068 = vmatpush1.msra.mxu0 %v4996
        %5069 = vmatprep.subr.mxu0 0.0
        %5070 = vmatpush1.msra.mxu0 %v4997
        %5071 = vmatprep.subr.mxu0 0.0
        %5072 = vmatpush1.msra.mxu0 %v4998
        %5073 = vmatprep.subr.mxu0 0.0
        %5074 = vmatpush1.msra.mxu0 %v4999
        %5075 = vmatprep.subr.mxu0 0.0
        %5076 = vmatpush1.msra.mxu0 %v5000
        %5077 = vmatprep.subr.mxu0 0.0
        %5078 = vmatpush1.msra.mxu0 %v5001
        %5079 = vmatprep.subr.mxu0 0.0
        %5080 = vmatpush1.msra.mxu0 %v5002
        %5081 = vmatprep.subr.mxu0 0.0
        %5082 = vmatpush1.msra.mxu0 %v5003
        %5083 = vmatprep.subr.mxu0 0.0
        %5084 = vmatpush1.msra.mxu0 %v5004
        %5085 = vmatprep.mubr.f32.mxu0 %v3343
        %5086 = vmatmul.mubr.f32.gmra.mrb[0].mxu0 %v3226
        %v5087 = vpop.f32.mrb[0].mxu0
        %v5088 = vadd.f32 0.0, %v5087
        %v5089 = vpop.f32.mrb[0].mxu0
        %5090 = vmatprep.mubr.f32.mxu0 %v3345
        %5091 = vmatmul.mubr.f32.gmra.mrb[0].mxu0 %v3227
        %v5092 = vpop.f32.mrb[0].mxu0
        %v5093 = vadd.f32 0.0, %v5092
        %v5094 = vpop.f32.mrb[0].mxu0
        %5095 = vmatprep.mubr.f32.mxu0 %v3347
        %5096 = vmatmul.mubr.f32.gmra.mrb[0].mxu0 %v3228
        %v5097 = vpop.f32.mrb[0].mxu0
        %v5098 = vadd.f32 0.0, %v5097
        %v5099 = vpop.f32.mrb[0].mxu0
        %5100 = vmatprep.mubr.f32.mxu0 %v3349
        %5101 = vmatmul.mubr.f32.gmra.mrb[0].mxu0 %v3229
        %v5102 = vpop.f32.mrb[0].mxu0
        %v5103 = vadd.f32 0.0, %v5102
        %v5104 = vpop.f32.mrb[0].mxu0
        %5105 = vmatprep.mubr.f32.mxu0 %v3351
        %5106 = vmatmul.mubr.f32.gmra.mrb[0].mxu0 %v3230
        %v5107 = vpop.f32.mrb[0].mxu0
        %v5108 = vadd.f32 0.0, %v5107
        %v5109 = vpop.f32.mrb[0].mxu0
        %5110 = vmatprep.mubr.f32.mxu0 %v3353
        %5111 = vmatmul.mubr.f32.gmra.mrb[0].mxu0 %v3231
        %v5112 = vpop.f32.mrb[0].mxu0
        %v5113 = vadd.f32 0.0, %v5112
        %v5114 = vpop.f32.mrb[0].mxu0
        %5115 = vmatprep.mubr.f32.mxu0 %v3355
        %5116 = vmatmul.mubr.f32.gmra.mrb[0].mxu0 %v3232
        %v5117 = vpop.f32.mrb[0].mxu0
        %v5118 = vadd.f32 0.0, %v5117
        %v5119 = vpop.f32.mrb[0].mxu0
        %5120 = vmatprep.mubr.f32.mxu0 %v3357
        %5121 = vmatmul.mubr.f32.gmra.mrb[0].mxu0 %v3233
        %v5122 = vpop.f32.mrb[0].mxu0
        %v5123 = vadd.f32 0.0, %v5122
        %v5124 = vpop.f32.mrb[0].mxu0
        %5125 = vmatprep.mubr.f32.mxu0 %v3359
        %5126 = vmatmul.mubr.f32.gmra.mrb[0].mxu0 %v3234
        %v5127 = vpop.f32.mrb[0].mxu0
        %v5128 = vadd.f32 0.0, %v5127
        %v5129 = vpop.f32.mrb[0].mxu0
        %5130 = vmatprep.mubr.f32.mxu0 %v3361
        %5131 = vmatmul.mubr.f32.gmra.mrb[0].mxu0 %v3235
        %v5132 = vpop.f32.mrb[0].mxu0
        %v5133 = vadd.f32 0.0, %v5132
        %v5134 = vpop.f32.mrb[0].mxu0
        %5135 = vmatprep.mubr.f32.mxu0 %v3363
        %5136 = vmatmul.mubr.f32.gmra.mrb[0].mxu0 %v3236
        %v5137 = vpop.f32.mrb[0].mxu0
        %v5138 = vadd.f32 0.0, %v5137
        %v5139 = vpop.f32.mrb[0].mxu0
        %5140 = vmatprep.mubr.f32.mxu0 %v3365
        %5141 = vmatmul.mubr.f32.gmra.mrb[0].mxu0 %v3237
        %v5142 = vpop.f32.mrb[0].mxu0
        %v5143 = vadd.f32 0.0, %v5142
        %v5144 = vpop.f32.mrb[0].mxu0
        %5145 = vmatprep.mubr.f32.mxu0 %v3367
        %5146 = vmatmul.mubr.f32.gmra.mrb[0].mxu0 %v3238
        %v5147 = vpop.f32.mrb[0].mxu0
        %v5148 = vadd.f32 0.0, %v5147
        %v5149 = vpop.f32.mrb[0].mxu0
        %5150 = vmatprep.mubr.f32.mxu0 %v3369
        %5151 = vmatmul.mubr.f32.gmra.mrb[0].mxu0 %v3239
        %v5152 = vpop.f32.mrb[0].mxu0
        %v5153 = vadd.f32 0.0, %v5152
        %v5154 = vpop.f32.mrb[0].mxu0
        %5155 = vmatprep.mubr.f32.mxu0 %v3371
        %5156 = vmatmul.mubr.f32.gmra.mrb[0].mxu0 %v3240
        %v5157 = vpop.f32.mrb[0].mxu0
        %v5158 = vadd.f32 0.0, %v5157
        %v5159 = vpop.f32.mrb[0].mxu0
        %5160 = vmatprep.mubr.f32.mxu0 %v3373
        %5161 = vmatmul.mubr.f32.gmra.mrb[0].mxu0 %v3241
        %v5162 = vpop.f32.mrb[0].mxu0
        %v5163 = vadd.f32 0.0, %v5162
        %v5164 = vpop.f32.mrb[0].mxu0
        %5165 = vmatprep.mubr.f32.mxu0 %v3375
        %5166 = vmatmul.mubr.f32.gmra.mrb[0].mxu0 %v3242
        %v5167 = vpop.f32.mrb[0].mxu0
        %v5168 = vadd.f32 0.0, %v5167
        %v5169 = vpop.f32.mrb[0].mxu0
        %5170 = vmatprep.mubr.f32.mxu0 %v3377
        %5171 = vmatmul.mubr.f32.gmra.mrb[0].mxu0 %v3243
        %v5172 = vpop.f32.mrb[0].mxu0
        %v5173 = vadd.f32 0.0, %v5172
        %v5174 = vpop.f32.mrb[0].mxu0
        %5175 = vmatprep.mubr.f32.mxu0 %v3379
        %5176 = vmatmul.mubr.f32.gmra.mrb[0].mxu0 %v3244
        %v5177 = vpop.f32.mrb[0].mxu0
        %v5178 = vadd.f32 0.0, %v5177
        %v5179 = vpop.f32.mrb[0].mxu0
        %5180 = vmatprep.mubr.f32.mxu0 %v3381
        %5181 = vmatmul.mubr.f32.gmra.mrb[0].mxu0 %v3245
        %v5182 = vpop.f32.mrb[0].mxu0
        %v5183 = vadd.f32 0.0, %v5182
        %v5184 = vpop.f32.mrb[0].mxu0
        %5185 = vmatprep.mubr.f32.mxu0 %v3383
        %5186 = vmatmul.mubr.f32.gmra.mrb[0].mxu0 %v3246
        %v5187 = vpop.f32.mrb[0].mxu0
        %v5188 = vadd.f32 0.0, %v5187
        %v5189 = vpop.f32.mrb[0].mxu0
        %5190 = vmatprep.mubr.f32.mxu0 %v3385
        %5191 = vmatmul.mubr.f32.gmra.mrb[0].mxu0 %v3247
        %v5192 = vpop.f32.mrb[0].mxu0
        %v5193 = vadd.f32 0.0, %v5192
        %v5194 = vpop.f32.mrb[0].mxu0
        %5195 = vmatprep.mubr.f32.mxu0 %v3387
        %5196 = vmatmul.mubr.f32.gmra.mrb[0].mxu0 %v3248
        %v5197 = vpop.f32.mrb[0].mxu0
        %v5198 = vadd.f32 0.0, %v5197
        %v5199 = vpop.f32.mrb[0].mxu0
        %5200 = vmatprep.mubr.f32.mxu0 %v3389
        %5201 = vmatmul.mubr.f32.gmra.mrb[0].mxu0 %v3249
        %v5202 = vpop.f32.mrb[0].mxu0
        %v5203 = vadd.f32 0.0, %v5202
        %v5204 = vpop.f32.mrb[0].mxu0
        %5205 = vmatprep.mubr.f32.mxu0 %v3391
        %5206 = vmatmul.mubr.f32.gmra.mrb[0].mxu0 %v3250
        %v5207 = vpop.f32.mrb[0].mxu0
        %v5208 = vadd.f32 0.0, %v5207
        %v5209 = vpop.f32.mrb[0].mxu0
        %5210 = vmatprep.mubr.f32.mxu0 %v3393
        %5211 = vmatmul.mubr.f32.gmra.mrb[0].mxu0 %v3251
        %v5212 = vpop.f32.mrb[0].mxu0
        %v5213 = vadd.f32 0.0, %v5212
        %v5214 = vpop.f32.mrb[0].mxu0
        %5215 = vmatprep.mubr.f32.mxu0 %v3395
        %5216 = vmatmul.mubr.f32.gmra.mrb[0].mxu0 %v3252
        %v5217 = vpop.f32.mrb[0].mxu0
        %v5218 = vadd.f32 0.0, %v5217
        %v5219 = vpop.f32.mrb[0].mxu0
        %5220 = vmatprep.mubr.f32.mxu0 %v3397
        %5221 = vmatmul.mubr.f32.gmra.mrb[0].mxu0 %v3253
        %v5222 = vpop.f32.mrb[0].mxu0
        %v5223 = vadd.f32 0.0, %v5222
        %v5224 = vpop.f32.mrb[0].mxu0
        %5225 = vmatprep.mubr.f32.mxu0 %v3399
        %5226 = vmatmul.mubr.f32.gmra.mrb[0].mxu0 %v3254
        %v5227 = vpop.f32.mrb[0].mxu0
        %v5228 = vadd.f32 0.0, %v5227
        %v5229 = vpop.f32.mrb[0].mxu0
        %5230 = vmatprep.mubr.f32.mxu0 %v3401
        %5231 = vmatmul.mubr.f32.gmra.mrb[0].mxu0 %v3255
        %v5232 = vpop.f32.mrb[0].mxu0
        %v5233 = vadd.f32 0.0, %v5232
        %v5234 = vpop.f32.mrb[0].mxu0
        %5235 = vmatprep.mubr.f32.mxu0 %v3403
        %5236 = vmatmul.mubr.f32.gmra.mrb[0].mxu0 %v3256
        %v5237 = vpop.f32.mrb[0].mxu0
        %v5238 = vadd.f32 0.0, %v5237
        %v5239 = vpop.f32.mrb[0].mxu0
        %5240 = vmatprep.mubr.f32.mxu0 %v3405
        %5241 = vmatmul.mubr.f32.gmra.mrb[0].mxu0 %v3257
        %v5242 = vpop.f32.mrb[0].mxu0
        %v5243 = vadd.f32 0.0, %v5242
        %v5244 = vpop.f32.mrb[0].mxu0
        %5245 = vmatprep.mubr.f32.mxu0 %v3407
        %5246 = vmatmul.mubr.f32.gmra.mrb[0].mxu0 %v3258
        %v5247 = vpop.f32.mrb[0].mxu0
        %v5248 = vadd.f32 0.0, %v5247
        %v5249 = vpop.f32.mrb[0].mxu0
        %5250 = vmatprep.mubr.f32.mxu0 %v3409
        %5251 = vmatmul.mubr.f32.gmra.mrb[0].mxu0 %v3259
        %v5252 = vpop.f32.mrb[0].mxu0
        %v5253 = vadd.f32 0.0, %v5252
        %v5254 = vpop.f32.mrb[0].mxu0
        %5255 = vmatprep.mubr.f32.mxu0 %v3411
        %5256 = vmatmul.mubr.f32.gmra.mrb[0].mxu0 %v3260
        %v5257 = vpop.f32.mrb[0].mxu0
        %v5258 = vadd.f32 0.0, %v5257
        %v5259 = vpop.f32.mrb[0].mxu0
        %5260 = vmatprep.mubr.f32.mxu0 %v3413
        %5261 = vmatmul.mubr.f32.gmra.mrb[0].mxu0 %v3261
        %v5262 = vpop.f32.mrb[0].mxu0
        %v5263 = vadd.f32 0.0, %v5262
        %v5264 = vpop.f32.mrb[0].mxu0
        %5265 = vmatprep.mubr.f32.mxu0 %v3415
        %5266 = vmatmul.mubr.f32.gmra.mrb[0].mxu0 %v3262
        %v5267 = vpop.f32.mrb[0].mxu0
        %v5268 = vadd.f32 0.0, %v5267
        %v5269 = vpop.f32.mrb[0].mxu0
        %5270 = vmatprep.mubr.f32.mxu0 %v3417
        %5271 = vmatmul.mubr.f32.gmra.mrb[0].mxu0 %v3263
        %v5272 = vpop.f32.mrb[0].mxu0
        %v5273 = vadd.f32 0.0, %v5272
        %v5274 = vpop.f32.mrb[0].mxu0
        %5275 = vmatprep.mubr.f32.mxu0 %v3419
        %5276 = vmatmul.mubr.f32.gmra.mrb[0].mxu0 %v3264
        %v5277 = vpop.f32.mrb[0].mxu0
        %v5278 = vadd.f32 0.0, %v5277
        %v5279 = vpop.f32.mrb[0].mxu0
        %5280 = vmatprep.mubr.f32.mxu0 %v3421
        %5281 = vmatmul.mubr.f32.gmra.mrb[0].mxu0 %v3265
        %v5282 = vpop.f32.mrb[0].mxu0
        %v5283 = vadd.f32 0.0, %v5282
        %v5284 = vpop.f32.mrb[0].mxu0
        %5285 = vmatprep.mubr.f32.mxu0 %v3423
        %5286 = vmatmul.mubr.f32.gmra.mrb[0].mxu0 %v3266
        %v5287 = vpop.f32.mrb[0].mxu0
        %v5288 = vadd.f32 0.0, %v5287
        %v5289 = vpop.f32.mrb[0].mxu0
        %5290 = vmatprep.mubr.f32.mxu0 %v3425
        %5291 = vmatmul.mubr.f32.gmra.mrb[0].mxu0 %v3267
        %v5292 = vpop.f32.mrb[0].mxu0
        %v5293 = vadd.f32 0.0, %v5292
        %v5294 = vpop.f32.mrb[0].mxu0
        %5295 = vmatprep.mubr.f32.mxu0 %v3427
        %5296 = vmatmul.mubr.f32.gmra.mrb[0].mxu0 %v3268
        %v5297 = vpop.f32.mrb[0].mxu0
        %v5298 = vadd.f32 0.0, %v5297
        %v5299 = vpop.f32.mrb[0].mxu0
        %5300 = vmatprep.mubr.f32.mxu0 %v3429
        %5301 = vmatmul.mubr.f32.gmra.mrb[0].mxu0 %v3269
        %v5302 = vpop.f32.mrb[0].mxu0
        %v5303 = vadd.f32 0.0, %v5302
        %v5304 = vpop.f32.mrb[0].mxu0
        %5305 = vmatprep.mubr.f32.mxu0 %v3431
        %5306 = vmatmul.mubr.f32.gmra.mrb[0].mxu0 %v3270
        %v5307 = vpop.f32.mrb[0].mxu0
        %v5308 = vadd.f32 0.0, %v5307
        %v5309 = vpop.f32.mrb[0].mxu0
        %5310 = vmatprep.mubr.f32.mxu0 %v3433
        %5311 = vmatmul.mubr.f32.gmra.mrb[0].mxu0 %v3271
        %v5312 = vpop.f32.mrb[0].mxu0
        %v5313 = vadd.f32 0.0, %v5312
        %v5314 = vpop.f32.mrb[0].mxu0
        %5315 = vmatprep.mubr.f32.mxu0 %v3435
        %5316 = vmatmul.mubr.f32.gmra.mrb[0].mxu0 %v3272
        %v5317 = vpop.f32.mrb[0].mxu0
        %v5318 = vadd.f32 0.0, %v5317
        %v5319 = vpop.f32.mrb[0].mxu0
        %5320 = vmatprep.mubr.f32.mxu0 %v3437
        %5321 = vmatmul.mubr.f32.gmra.mrb[0].mxu0 %v3273
        %v5322 = vpop.f32.mrb[0].mxu0
        %v5323 = vadd.f32 0.0, %v5322
        %v5324 = vpop.f32.mrb[0].mxu0
        %5325 = vdwg.mxu0
        %5326 = vmatprep.subr.mxu0 0.0
        %5327 = vmatpush1.msra.mxu0 %v5005
        %5328 = vmatprep.subr.mxu0 0.0
        %5329 = vmatpush1.msra.mxu0 %v5006
        %5330 = vmatprep.subr.mxu0 0.0
        %5331 = vmatpush1.msra.mxu0 %v5007
        %5332 = vmatprep.subr.mxu0 0.0
        %5333 = vmatpush1.msra.mxu0 %v5008
        %5334 = vmatprep.subr.mxu0 0.0
        %5335 = vmatpush1.msra.mxu0 %v5009
        %5336 = vmatprep.subr.mxu0 0.0
        %5337 = vmatpush1.msra.mxu0 %v5010
        %5338 = vmatprep.subr.mxu0 0.0
        %5339 = vmatpush1.msra.mxu0 %v5011
        %5340 = vmatprep.subr.mxu0 0.0
        %5341 = vmatpush1.msra.mxu0 %v5012
        %5342 = vmatprep.subr.mxu0 0.0
        %5343 = vmatpush1.msra.mxu0 %v5013
        %5344 = vmatprep.subr.mxu0 0.0
        %5345 = vmatpush1.msra.mxu0 %v5014
        %5346 = vmatprep.subr.mxu0 0.0
        %5347 = vmatpush1.msra.mxu0 %v5015
        %5348 = vmatprep.subr.mxu0 0.0
        %5349 = vmatpush1.msra.mxu0 %v5016
        %5350 = vmatprep.subr.mxu0 0.0
        %5351 = vmatpush1.msra.mxu0 %v5017
        %5352 = vmatprep.subr.mxu0 0.0
        %5353 = vmatpush1.msra.mxu0 %v5018
        %5354 = vmatprep.subr.mxu0 0.0
        %5355 = vmatpush1.msra.mxu0 %v5019
        %5356 = vmatprep.subr.mxu0 0.0
        %5357 = vmatpush1.msra.mxu0 %v5020
        %5358 = vmatprep.subr.mxu0 0.0
        %5359 = vmatpush1.msra.mxu0 0.0
        %5360 = vmatprep.subr.mxu0 0.0
        %5361 = vmatpush1.msra.mxu0 0.0
        %5362 = vmatprep.subr.mxu0 0.0
        %5363 = vmatpush1.msra.mxu0 0.0
        %5364 = vmatprep.subr.mxu0 0.0
        %5365 = vmatpush1.msra.mxu0 0.0
        %5366 = vmatprep.subr.mxu0 0.0
        %5367 = vmatpush1.msra.mxu0 0.0
        %5368 = vmatprep.subr.mxu0 0.0
        %5369 = vmatpush1.msra.mxu0 0.0
        %5370 = vmatprep.subr.mxu0 0.0
        %5371 = vmatpush1.msra.mxu0 0.0
        %5372 = vmatprep.subr.mxu0 0.0
        %5373 = vmatpush1.msra.mxu0 0.0
        %5374 = vmatprep.subr.mxu0 0.0
        %5375 = vmatpush1.msra.mxu0 0.0
        %5376 = vmatprep.subr.mxu0 0.0
        %5377 = vmatpush1.msra.mxu0 0.0
        %5378 = vmatprep.subr.mxu0 0.0
        %5379 = vmatpush1.msra.mxu0 0.0
        %5380 = vmatprep.subr.mxu0 0.0
        %5381 = vmatpush1.msra.mxu0 0.0
        %5382 = vmatprep.subr.mxu0 0.0
        %5383 = vmatpush1.msra.mxu0 0.0
        %5384 = vmatprep.subr.mxu0 0.0
        %5385 = vmatpush1.msra.mxu0 0.0
        %5386 = vmatprep.subr.mxu0 0.0
        %5387 = vmatpush1.msra.mxu0 0.0
        %5388 = vmatprep.subr.mxu0 0.0
        %5389 = vmatpush1.msra.mxu0 0.0
        %5390 = vmatprep.mubr.f32.mxu0 0.0
        %5391 = vmatmul.mubr.f32.gmra.mrb[0].mxu0 %v3506
        %v5392 = vpop.f32.mrb[0].mxu0
        %v5393 = vadd.f32 %v5088, %v5392
        %v5394 = vpop.f32.mrb[0].mxu0
        %5395 = vmatprep.mubr.f32.mxu0 0.0
        %5396 = vmatmul.mubr.f32.gmra.mrb[0].mxu0 %v3508
        %v5397 = vpop.f32.mrb[0].mxu0
        %v5398 = vadd.f32 %v5093, %v5397
        %v5399 = vpop.f32.mrb[0].mxu0
        %5400 = vmatprep.mubr.f32.mxu0 0.0
        %5401 = vmatmul.mubr.f32.gmra.mrb[0].mxu0 %v3510
        %v5402 = vpop.f32.mrb[0].mxu0
        %v5403 = vadd.f32 %v5098, %v5402
        %v5404 = vpop.f32.mrb[0].mxu0
        %5405 = vmatprep.mubr.f32.mxu0 0.0
        %5406 = vmatmul.mubr.f32.gmra.mrb[0].mxu0 %v3512
        %v5407 = vpop.f32.mrb[0].mxu0
        %v5408 = vadd.f32 %v5103, %v5407
        %v5409 = vpop.f32.mrb[0].mxu0
        %5410 = vmatprep.mubr.f32.mxu0 0.0
        %5411 = vmatmul.mubr.f32.gmra.mrb[0].mxu0 %v3514
        %v5412 = vpop.f32.mrb[0].mxu0
        %v5413 = vadd.f32 %v5108, %v5412
        %v5414 = vpop.f32.mrb[0].mxu0
        %5415 = vmatprep.mubr.f32.mxu0 0.0
        %5416 = vmatmul.mubr.f32.gmra.mrb[0].mxu0 %v3516
        %v5417 = vpop.f32.mrb[0].mxu0
        %v5418 = vadd.f32 %v5113, %v5417
        %v5419 = vpop.f32.mrb[0].mxu0
        %5420 = vmatprep.mubr.f32.mxu0 0.0
        %5421 = vmatmul.mubr.f32.gmra.mrb[0].mxu0 %v3518
        %v5422 = vpop.f32.mrb[0].mxu0
        %v5423 = vadd.f32 %v5118, %v5422
        %v5424 = vpop.f32.mrb[0].mxu0
        %5425 = vmatprep.mubr.f32.mxu0 0.0
        %5426 = vmatmul.mubr.f32.gmra.mrb[0].mxu0 %v3520
        %v5427 = vpop.f32.mrb[0].mxu0
        %v5428 = vadd.f32 %v5123, %v5427
        %v5429 = vpop.f32.mrb[0].mxu0
        %5430 = vmatprep.mubr.f32.mxu0 0.0
        %5431 = vmatmul.mubr.f32.gmra.mrb[0].mxu0 %v3522
        %v5432 = vpop.f32.mrb[0].mxu0
        %v5433 = vadd.f32 %v5128, %v5432
        %v5434 = vpop.f32.mrb[0].mxu0
        %5435 = vmatprep.mubr.f32.mxu0 0.0
        %5436 = vmatmul.mubr.f32.gmra.mrb[0].mxu0 %v3524
        %v5437 = vpop.f32.mrb[0].mxu0
        %v5438 = vadd.f32 %v5133, %v5437
        %v5439 = vpop.f32.mrb[0].mxu0
        %5440 = vmatprep.mubr.f32.mxu0 0.0
        %5441 = vmatmul.mubr.f32.gmra.mrb[0].mxu0 %v3526
        %v5442 = vpop.f32.mrb[0].mxu0
        %v5443 = vadd.f32 %v5138, %v5442
        %v5444 = vpop.f32.mrb[0].mxu0
        %5445 = vmatprep.mubr.f32.mxu0 0.0
        %5446 = vmatmul.mubr.f32.gmra.mrb[0].mxu0 %v3528
        %v5447 = vpop.f32.mrb[0].mxu0
        %v5448 = vadd.f32 %v5143, %v5447
        %v5449 = vpop.f32.mrb[0].mxu0
        %5450 = vmatprep.mubr.f32.mxu0 0.0
        %5451 = vmatmul.mubr.f32.gmra.mrb[0].mxu0 %v3530
        %v5452 = vpop.f32.mrb[0].mxu0
        %v5453 = vadd.f32 %v5148, %v5452
        %v5454 = vpop.f32.mrb[0].mxu0
        %5455 = vmatprep.mubr.f32.mxu0 0.0
        %5456 = vmatmul.mubr.f32.gmra.mrb[0].mxu0 %v3532
        %v5457 = vpop.f32.mrb[0].mxu0
        %v5458 = vadd.f32 %v5153, %v5457
        %v5459 = vpop.f32.mrb[0].mxu0
        %5460 = vmatprep.mubr.f32.mxu0 0.0
        %5461 = vmatmul.mubr.f32.gmra.mrb[0].mxu0 %v3534
        %v5462 = vpop.f32.mrb[0].mxu0
        %v5463 = vadd.f32 %v5158, %v5462
        %v5464 = vpop.f32.mrb[0].mxu0
        %5465 = vmatprep.mubr.f32.mxu0 0.0
        %5466 = vmatmul.mubr.f32.gmra.mrb[0].mxu0 %v3536
        %v5467 = vpop.f32.mrb[0].mxu0
        %v5468 = vadd.f32 %v5163, %v5467
        %v5469 = vpop.f32.mrb[0].mxu0
        %5470 = vmatprep.mubr.f32.mxu0 0.0
        %5471 = vmatmul.mubr.f32.gmra.mrb[0].mxu0 %v3538
        %v5472 = vpop.f32.mrb[0].mxu0
        %v5473 = vadd.f32 %v5168, %v5472
        %v5474 = vpop.f32.mrb[0].mxu0
        %5475 = vmatprep.mubr.f32.mxu0 0.0
        %5476 = vmatmul.mubr.f32.gmra.mrb[0].mxu0 %v3540
        %v5477 = vpop.f32.mrb[0].mxu0
        %v5478 = vadd.f32 %v5173, %v5477
        %v5479 = vpop.f32.mrb[0].mxu0
        %5480 = vmatprep.mubr.f32.mxu0 0.0
        %5481 = vmatmul.mubr.f32.gmra.mrb[0].mxu0 %v3542
        %v5482 = vpop.f32.mrb[0].mxu0
        %v5483 = vadd.f32 %v5178, %v5482
        %v5484 = vpop.f32.mrb[0].mxu0
        %5485 = vmatprep.mubr.f32.mxu0 0.0
        %5486 = vmatmul.mubr.f32.gmra.mrb[0].mxu0 %v3544
        %v5487 = vpop.f32.mrb[0].mxu0
        %v5488 = vadd.f32 %v5183, %v5487
        %v5489 = vpop.f32.mrb[0].mxu0
        %5490 = vmatprep.mubr.f32.mxu0 0.0
        %5491 = vmatmul.mubr.f32.gmra.mrb[0].mxu0 %v3546
        %v5492 = vpop.f32.mrb[0].mxu0
        %v5493 = vadd.f32 %v5188, %v5492
        %v5494 = vpop.f32.mrb[0].mxu0
        %5495 = vmatprep.mubr.f32.mxu0 0.0
        %5496 = vmatmul.mubr.f32.gmra.mrb[0].mxu0 %v3548
        %v5497 = vpop.f32.mrb[0].mxu0
        %v5498 = vadd.f32 %v5193, %v5497
        %v5499 = vpop.f32.mrb[0].mxu0
        %5500 = vmatprep.mubr.f32.mxu0 0.0
        %5501 = vmatmul.mubr.f32.gmra.mrb[0].mxu0 %v3550
        %v5502 = vpop.f32.mrb[0].mxu0
        %v5503 = vadd.f32 %v5198, %v5502
        %v5504 = vpop.f32.mrb[0].mxu0
        %5505 = vmatprep.mubr.f32.mxu0 0.0
        %5506 = vmatmul.mubr.f32.gmra.mrb[0].mxu0 %v3552
        %v5507 = vpop.f32.mrb[0].mxu0
        %v5508 = vadd.f32 %v5203, %v5507
        %v5509 = vpop.f32.mrb[0].mxu0
        %5510 = vmatprep.mubr.f32.mxu0 0.0
        %5511 = vmatmul.mubr.f32.gmra.mrb[0].mxu0 %v3554
        %v5512 = vpop.f32.mrb[0].mxu0
        %v5513 = vadd.f32 %v5208, %v5512
        %v5514 = vpop.f32.mrb[0].mxu0
        %5515 = vmatprep.mubr.f32.mxu0 0.0
        %5516 = vmatmul.mubr.f32.gmra.mrb[0].mxu0 %v3556
        %v5517 = vpop.f32.mrb[0].mxu0
        %v5518 = vadd.f32 %v5213, %v5517
        %v5519 = vpop.f32.mrb[0].mxu0
        %5520 = vmatprep.mubr.f32.mxu0 0.0
        %5521 = vmatmul.mubr.f32.gmra.mrb[0].mxu0 %v3558
        %v5522 = vpop.f32.mrb[0].mxu0
        %v5523 = vadd.f32 %v5218, %v5522
        %v5524 = vpop.f32.mrb[0].mxu0
        %5525 = vmatprep.mubr.f32.mxu0 0.0
        %5526 = vmatmul.mubr.f32.gmra.mrb[0].mxu0 %v3560
        %v5527 = vpop.f32.mrb[0].mxu0
        %v5528 = vadd.f32 %v5223, %v5527
        %v5529 = vpop.f32.mrb[0].mxu0
        %5530 = vmatprep.mubr.f32.mxu0 0.0
        %5531 = vmatmul.mubr.f32.gmra.mrb[0].mxu0 %v3562
        %v5532 = vpop.f32.mrb[0].mxu0
        %v5533 = vadd.f32 %v5228, %v5532
        %v5534 = vpop.f32.mrb[0].mxu0
        %5535 = vmatprep.mubr.f32.mxu0 0.0
        %5536 = vmatmul.mubr.f32.gmra.mrb[0].mxu0 %v3564
        %v5537 = vpop.f32.mrb[0].mxu0
        %v5538 = vadd.f32 %v5233, %v5537
        %v5539 = vpop.f32.mrb[0].mxu0
        %5540 = vmatprep.mubr.f32.mxu0 0.0
        %5541 = vmatmul.mubr.f32.gmra.mrb[0].mxu0 %v3566
        %v5542 = vpop.f32.mrb[0].mxu0
        %v5543 = vadd.f32 %v5238, %v5542
        %v5544 = vpop.f32.mrb[0].mxu0
        %5545 = vmatprep.mubr.f32.mxu0 0.0
        %5546 = vmatmul.mubr.f32.gmra.mrb[0].mxu0 %v3568
        %v5547 = vpop.f32.mrb[0].mxu0
        %v5548 = vadd.f32 %v5243, %v5547
        %v5549 = vpop.f32.mrb[0].mxu0
        %5550 = vmatprep.mubr.f32.mxu0 0.0
        %5551 = vmatmul.mubr.f32.gmra.mrb[0].mxu0 %v3570
        %v5552 = vpop.f32.mrb[0].mxu0
        %v5553 = vadd.f32 %v5248, %v5552
        %v5554 = vpop.f32.mrb[0].mxu0
        %5555 = vmatprep.mubr.f32.mxu0 0.0
        %5556 = vmatmul.mubr.f32.gmra.mrb[0].mxu0 %v3572
        %v5557 = vpop.f32.mrb[0].mxu0
        %v5558 = vadd.f32 %v5253, %v5557
        %v5559 = vpop.f32.mrb[0].mxu0
        %5560 = vmatprep.mubr.f32.mxu0 0.0
        %5561 = vmatmul.mubr.f32.gmra.mrb[0].mxu0 %v3574
        %v5562 = vpop.f32.mrb[0].mxu0
        %v5563 = vadd.f32 %v5258, %v5562
        %v5564 = vpop.f32.mrb[0].mxu0
        %5565 = vmatprep.mubr.f32.mxu0 0.0
        %5566 = vmatmul.mubr.f32.gmra.mrb[0].mxu0 %v3576
        %v5567 = vpop.f32.mrb[0].mxu0
        %v5568 = vadd.f32 %v5263, %v5567
        %v5569 = vpop.f32.mrb[0].mxu0
        %5570 = vmatprep.mubr.f32.mxu0 0.0
        %5571 = vmatmul.mubr.f32.gmra.mrb[0].mxu0 %v3578
        %v5572 = vpop.f32.mrb[0].mxu0
        %v5573 = vadd.f32 %v5268, %v5572
        %v5574 = vpop.f32.mrb[0].mxu0
        %5575 = vmatprep.mubr.f32.mxu0 0.0
        %5576 = vmatmul.mubr.f32.gmra.mrb[0].mxu0 %v3580
        %v5577 = vpop.f32.mrb[0].mxu0
        %v5578 = vadd.f32 %v5273, %v5577
        %v5579 = vpop.f32.mrb[0].mxu0
        %5580 = vmatprep.mubr.f32.mxu0 0.0
        %5581 = vmatmul.mubr.f32.gmra.mrb[0].mxu0 %v3582
        %v5582 = vpop.f32.mrb[0].mxu0
        %v5583 = vadd.f32 %v5278, %v5582
        %v5584 = vpop.f32.mrb[0].mxu0
        %5585 = vmatprep.mubr.f32.mxu0 0.0
        %5586 = vmatmul.mubr.f32.gmra.mrb[0].mxu0 %v3584
        %v5587 = vpop.f32.mrb[0].mxu0
        %v5588 = vadd.f32 %v5283, %v5587
        %v5589 = vpop.f32.mrb[0].mxu0
        %5590 = vmatprep.mubr.f32.mxu0 0.0
        %5591 = vmatmul.mubr.f32.gmra.mrb[0].mxu0 %v3586
        %v5592 = vpop.f32.mrb[0].mxu0
        %v5593 = vadd.f32 %v5288, %v5592
        %v5594 = vpop.f32.mrb[0].mxu0
        %5595 = vmatprep.mubr.f32.mxu0 0.0
        %5596 = vmatmul.mubr.f32.gmra.mrb[0].mxu0 %v3588
        %v5597 = vpop.f32.mrb[0].mxu0
        %v5598 = vadd.f32 %v5293, %v5597
        %v5599 = vpop.f32.mrb[0].mxu0
        %5600 = vmatprep.mubr.f32.mxu0 0.0
        %5601 = vmatmul.mubr.f32.gmra.mrb[0].mxu0 %v3590
        %v5602 = vpop.f32.mrb[0].mxu0
        %v5603 = vadd.f32 %v5298, %v5602
        %v5604 = vpop.f32.mrb[0].mxu0
        %5605 = vmatprep.mubr.f32.mxu0 0.0
        %5606 = vmatmul.mubr.f32.gmra.mrb[0].mxu0 %v3592
        %v5607 = vpop.f32.mrb[0].mxu0
        %v5608 = vadd.f32 %v5303, %v5607
        %v5609 = vpop.f32.mrb[0].mxu0
        %5610 = vmatprep.mubr.f32.mxu0 0.0
        %5611 = vmatmul.mubr.f32.gmra.mrb[0].mxu0 %v3594
        %v5612 = vpop.f32.mrb[0].mxu0
        %v5613 = vadd.f32 %v5308, %v5612
        %v5614 = vpop.f32.mrb[0].mxu0
        %5615 = vmatprep.mubr.f32.mxu0 0.0
        %5616 = vmatmul.mubr.f32.gmra.mrb[0].mxu0 %v3596
        %v5617 = vpop.f32.mrb[0].mxu0
        %v5618 = vadd.f32 %v5313, %v5617
        %v5619 = vpop.f32.mrb[0].mxu0
        %5620 = vmatprep.mubr.f32.mxu0 0.0
        %5621 = vmatmul.mubr.f32.gmra.mrb[0].mxu0 %v3598
        %v5622 = vpop.f32.mrb[0].mxu0
        %v5623 = vadd.f32 %v5318, %v5622
        %v5624 = vpop.f32.mrb[0].mxu0
        %5625 = vmatprep.mubr.f32.mxu0 0.0
        %5626 = vmatmul.mubr.f32.gmra.mrb[0].mxu0 %v3600
        %v5627 = vpop.f32.mrb[0].mxu0
        %v5628 = vadd.f32 %v5323, %v5627
        %v5629 = vpop.f32.mrb[0].mxu0
        %5630 = vdwg.mxu0
        %v5631 = vadd.f32 %v4734, %v5393
        %v5632 = vadd.f32 %v4739, %v5398
        %v5633 = vadd.f32 %v4744, %v5403
        %v5634 = vadd.f32 %v4749, %v5408
        %v5635 = vadd.f32 %v4754, %v5413
        %v5636 = vadd.f32 %v4759, %v5418
        %v5637 = vadd.f32 %v4764, %v5423
        %v5638 = vadd.f32 %v4769, %v5428
        %v5639 = vadd.f32 %v4774, %v5433
        %v5640 = vadd.f32 %v4779, %v5438
        %v5641 = vadd.f32 %v4784, %v5443
        %v5642 = vadd.f32 %v4789, %v5448
        %v5643 = vadd.f32 %v4794, %v5453
        %v5644 = vadd.f32 %v4799, %v5458
        %v5645 = vadd.f32 %v4804, %v5463
        %v5646 = vadd.f32 %v4809, %v5468
        %v5647 = vadd.f32 %v4814, %v5473
        %v5648 = vadd.f32 %v4819, %v5478
        %v5649 = vadd.f32 %v4824, %v5483
        %v5650 = vadd.f32 %v4829, %v5488
        %v5651 = vadd.f32 %v4834, %v5493
        %v5652 = vadd.f32 %v4839, %v5498
        %v5653 = vadd.f32 %v4844, %v5503
        %v5654 = vadd.f32 %v4849, %v5508
        %v5655 = vadd.f32 %v4854, %v5513
        %v5656 = vadd.f32 %v4859, %v5518
        %v5657 = vadd.f32 %v4864, %v5523
        %v5658 = vadd.f32 %v4869, %v5528
        %v5659 = vadd.f32 %v4874, %v5533
        %v5660 = vadd.f32 %v4879, %v5538
        %v5661 = vadd.f32 %v4884, %v5543
        %v5662 = vadd.f32 %v4889, %v5548
        %v5663 = vadd.f32 %v4894, %v5553
        %v5664 = vadd.f32 %v4899, %v5558
        %v5665 = vadd.f32 %v4904, %v5563
        %v5666 = vadd.f32 %v4909, %v5568
        %v5667 = vadd.f32 %v4914, %v5573
        %v5668 = vadd.f32 %v4919, %v5578
        %v5669 = vadd.f32 %v4924, %v5583
        %v5670 = vadd.f32 %v4929, %v5588
        %v5671 = vadd.f32 %v4934, %v5593
        %v5672 = vadd.f32 %v4939, %v5598
        %v5673 = vadd.f32 %v4944, %v5603
        %v5674 = vadd.f32 %v4949, %v5608
        %v5675 = vadd.f32 %v4954, %v5613
        %v5676 = vadd.f32 %v4959, %v5618
        %v5677 = vadd.f32 %v4964, %v5623
        %v5678 = vadd.f32 %v4969, %v5628
        %v5679 = vld [vmem:[%s5] sm:$0x1]
        %v5681 = vlaneseq
        %v5682 = vshrl.u32 %v5681, 7
        %v5683 = vsub.s32 0, %v5682
        %v5684 = vrot.slane %v5679, %v5683
        %v5686 = vmul.f32 %v5631, %v5684
        %v5687 = vmul.f32 %v5632, %v5684
        %v5688 = vmul.f32 %v5633, %v5684
        %v5689 = vmul.f32 %v5634, %v5684
        %v5690 = vmul.f32 %v5635, %v5684
        %v5691 = vmul.f32 %v5636, %v5684
        %v5692 = vmul.f32 %v5637, %v5684
        %v5693 = vmul.f32 %v5638, %v5684
        %v5694 = vmul.f32 %v5639, %v5684
        %v5695 = vmul.f32 %v5640, %v5684
        %v5696 = vmul.f32 %v5641, %v5684
        %v5697 = vmul.f32 %v5642, %v5684
        %v5698 = vmul.f32 %v5643, %v5684
        %v5699 = vmul.f32 %v5644, %v5684
        %v5700 = vmul.f32 %v5645, %v5684
        %v5701 = vmul.f32 %v5646, %v5684
        %v5702 = vmul.f32 %v5647, %v5684
        %v5703 = vmul.f32 %v5648, %v5684
        %v5704 = vmul.f32 %v5649, %v5684
        %v5705 = vmul.f32 %v5650, %v5684
        %v5706 = vmul.f32 %v5651, %v5684
        %v5707 = vmul.f32 %v5652, %v5684
        %v5708 = vmul.f32 %v5653, %v5684
        %v5709 = vmul.f32 %v5654, %v5684
        %v5710 = vmul.f32 %v5655, %v5684
        %v5711 = vmul.f32 %v5656, %v5684
        %v5712 = vmul.f32 %v5657, %v5684
        %v5713 = vmul.f32 %v5658, %v5684
        %v5714 = vmul.f32 %v5659, %v5684
        %v5715 = vmul.f32 %v5660, %v5684
        %v5716 = vmul.f32 %v5661, %v5684
        %v5717 = vmul.f32 %v5662, %v5684
        %v5718 = vmul.f32 %v5663, %v5684
        %v5719 = vmul.f32 %v5664, %v5684
        %v5720 = vmul.f32 %v5665, %v5684
        %v5721 = vmul.f32 %v5666, %v5684
        %v5722 = vmul.f32 %v5667, %v5684
        %v5723 = vmul.f32 %v5668, %v5684
        %v5724 = vmul.f32 %v5669, %v5684
        %v5725 = vmul.f32 %v5670, %v5684
        %v5726 = vmul.f32 %v5671, %v5684
        %v5727 = vmul.f32 %v5672, %v5684
        %v5728 = vmul.f32 %v5673, %v5684
        %v5729 = vmul.f32 %v5674, %v5684
        %v5730 = vmul.f32 %v5675, %v5684
        %v5731 = vmul.f32 %v5676, %v5684
        %v5732 = vmul.f32 %v5677, %v5684
        %v5733 = vmul.f32 %v5678, %v5684
        %v5734 = vld [vmem:[%s6] sm:$0x1]
        %v5736 = vlaneseq
        %v5737 = vshrl.u32 %v5736, 7
        %v5738 = vsub.s32 0, %v5737
        %v5739 = vrot.slane %v5734, %v5738
        %v5741 = vadd.f32 %v5686, %v5739
        %v5742 = vadd.f32 %v5687, %v5739
        %v5743 = vadd.f32 %v5688, %v5739
        %v5744 = vadd.f32 %v5689, %v5739
        %v5745 = vadd.f32 %v5690, %v5739
        %v5746 = vadd.f32 %v5691, %v5739
        %v5747 = vadd.f32 %v5692, %v5739
        %v5748 = vadd.f32 %v5693, %v5739
        %v5749 = vadd.f32 %v5694, %v5739
        %v5750 = vadd.f32 %v5695, %v5739
        %v5751 = vadd.f32 %v5696, %v5739
        %v5752 = vadd.f32 %v5697, %v5739
        %v5753 = vadd.f32 %v5698, %v5739
        %v5754 = vadd.f32 %v5699, %v5739
        %v5755 = vadd.f32 %v5700, %v5739
        %v5756 = vadd.f32 %v5701, %v5739
        %v5757 = vadd.f32 %v5702, %v5739
        %v5758 = vadd.f32 %v5703, %v5739
        %v5759 = vadd.f32 %v5704, %v5739
        %v5760 = vadd.f32 %v5705, %v5739
        %v5761 = vadd.f32 %v5706, %v5739
        %v5762 = vadd.f32 %v5707, %v5739
        %v5763 = vadd.f32 %v5708, %v5739
        %v5764 = vadd.f32 %v5709, %v5739
        %v5765 = vadd.f32 %v5710, %v5739
        %v5766 = vadd.f32 %v5711, %v5739
        %v5767 = vadd.f32 %v5712, %v5739
        %v5768 = vadd.f32 %v5713, %v5739
        %v5769 = vadd.f32 %v5714, %v5739
        %v5770 = vadd.f32 %v5715, %v5739
        %v5771 = vadd.f32 %v5716, %v5739
        %v5772 = vadd.f32 %v5717, %v5739
        %v5773 = vadd.f32 %v5718, %v5739
        %v5774 = vadd.f32 %v5719, %v5739
        %v5775 = vadd.f32 %v5720, %v5739
        %v5776 = vadd.f32 %v5721, %v5739
        %v5777 = vadd.f32 %v5722, %v5739
        %v5778 = vadd.f32 %v5723, %v5739
        %v5779 = vadd.f32 %v5724, %v5739
        %v5780 = vadd.f32 %v5725, %v5739
        %v5781 = vadd.f32 %v5726, %v5739
        %v5782 = vadd.f32 %v5727, %v5739
        %v5783 = vadd.f32 %v5728, %v5739
        %v5784 = vadd.f32 %v5729, %v5739
        %v5785 = vadd.f32 %v5730, %v5739
        %v5786 = vadd.f32 %v5731, %v5739
        %v5787 = vadd.f32 %v5732, %v5739
        %v5788 = vadd.f32 %v5733, %v5739
        %v5789 = vmax.f32 %v5741, 0.0
        %v5790 = vmax.f32 %v5742, 0.0
        %v5791 = vmax.f32 %v5743, 0.0
        %v5792 = vmax.f32 %v5744, 0.0
        %v5793 = vmax.f32 %v5745, 0.0
        %v5794 = vmax.f32 %v5746, 0.0
        %v5795 = vmax.f32 %v5747, 0.0
        %v5796 = vmax.f32 %v5748, 0.0
        %v5797 = vmax.f32 %v5749, 0.0
        %v5798 = vmax.f32 %v5750, 0.0
        %v5799 = vmax.f32 %v5751, 0.0
        %v5800 = vmax.f32 %v5752, 0.0
        %v5801 = vmax.f32 %v5753, 0.0
        %v5802 = vmax.f32 %v5754, 0.0
        %v5803 = vmax.f32 %v5755, 0.0
        %v5804 = vmax.f32 %v5756, 0.0
        %v5805 = vmax.f32 %v5757, 0.0
        %v5806 = vmax.f32 %v5758, 0.0
        %v5807 = vmax.f32 %v5759, 0.0
        %v5808 = vmax.f32 %v5760, 0.0
        %v5809 = vmax.f32 %v5761, 0.0
        %v5810 = vmax.f32 %v5762, 0.0
        %v5811 = vmax.f32 %v5763, 0.0
        %v5812 = vmax.f32 %v5764, 0.0
        %v5813 = vmax.f32 %v5765, 0.0
        %v5814 = vmax.f32 %v5766, 0.0
        %v5815 = vmax.f32 %v5767, 0.0
        %v5816 = vmax.f32 %v5768, 0.0
        %v5817 = vmax.f32 %v5769, 0.0
        %v5818 = vmax.f32 %v5770, 0.0
        %v5819 = vmax.f32 %v5771, 0.0
        %v5820 = vmax.f32 %v5772, 0.0
        %v5821 = vmax.f32 %v5773, 0.0
        %v5822 = vmax.f32 %v5774, 0.0
        %v5823 = vmax.f32 %v5775, 0.0
        %v5824 = vmax.f32 %v5776, 0.0
        %v5825 = vmax.f32 %v5777, 0.0
        %v5826 = vmax.f32 %v5778, 0.0
        %v5827 = vmax.f32 %v5779, 0.0
        %v5828 = vmax.f32 %v5780, 0.0
        %v5829 = vmax.f32 %v5781, 0.0
        %v5830 = vmax.f32 %v5782, 0.0
        %v5831 = vmax.f32 %v5783, 0.0
        %v5832 = vmax.f32 %v5784, 0.0
        %v5833 = vmax.f32 %v5785, 0.0
        %v5834 = vmax.f32 %v5786, 0.0
        %v5835 = vmax.f32 %v5787, 0.0
        %v5836 = vmax.f32 %v5788, 0.0
        %5837 = vst [vmem:[%s325] sm:$0xff] %v5789
        %5838 = vst [vmem:[%s325 + $0x8] sm:$0xff] %v5790
        %5839 = vst [vmem:[%s325 + $0x10] sm:$0xff] %v5791
        %5840 = vst [vmem:[%s325 + $0x18] sm:$0xff] %v5792
        %5841 = vst [vmem:[%s325 + $0x20] sm:$0xff] %v5793
        %5842 = vst [vmem:[%s325 + $0x28] sm:$0xff] %v5794
        %5843 = vst [vmem:[%s325 + $0x30] sm:$0xff] %v5795
        %5844 = vst [vmem:[%s325 + $0x38] sm:$0xff] %v5796
        %5845 = vst [vmem:[%s325 + $0x40] sm:$0xff] %v5797
        %5846 = vst [vmem:[%s325 + $0x48] sm:$0xff] %v5798
        %5847 = vst [vmem:[%s325 + $0x50] sm:$0xff] %v5799
        %5848 = vst [vmem:[%s325 + $0x58] sm:$0xff] %v5800
        %5849 = vst [vmem:[%s325 + $0x60] sm:$0xff] %v5801
        %5850 = vst [vmem:[%s325 + $0x68] sm:$0xff] %v5802
        %5851 = vst [vmem:[%s325 + $0x70] sm:$0xff] %v5803
        %5852 = vst [vmem:[%s325 + $0x78] sm:$0xff] %v5804
        %5853 = vst [vmem:[%s325 + $0x80] sm:$0xff] %v5805
        %5854 = vst [vmem:[%s325 + $0x88] sm:$0xff] %v5806
        %5855 = vst [vmem:[%s325 + $0x90] sm:$0xff] %v5807
        %5856 = vst [vmem:[%s325 + $0x98] sm:$0xff] %v5808
        %5857 = vst [vmem:[%s325 + $0xa0] sm:$0xff] %v5809
        %5858 = vst [vmem:[%s325 + $0xa8] sm:$0xff] %v5810
        %5859 = vst [vmem:[%s325 + $0xb0] sm:$0xff] %v5811
        %5860 = vst [vmem:[%s325 + $0xb8] sm:$0xff] %v5812
        %5861 = vst [vmem:[%s325 + $0xc0] sm:$0xff] %v5813
        %5862 = vst [vmem:[%s325 + $0xc8] sm:$0xff] %v5814
        %5863 = vst [vmem:[%s325 + $0xd0] sm:$0xff] %v5815
        %5864 = vst [vmem:[%s325 + $0xd8] sm:$0xff] %v5816
        %5865 = vst [vmem:[%s325 + $0xe0] sm:$0xff] %v5817
        %5866 = vst [vmem:[%s325 + $0xe8] sm:$0xff] %v5818
        %5867 = vst [vmem:[%s325 + $0xf0] sm:$0xff] %v5819
        %5868 = vst [vmem:[%s325 + $0xf8] sm:$0xff] %v5820
        %5869 = vst [vmem:[%s325 + $0x100] sm:$0xff] %v5821
        %5870 = vst [vmem:[%s325 + $0x108] sm:$0xff] %v5822
        %5871 = vst [vmem:[%s325 + $0x110] sm:$0xff] %v5823
        %5872 = vst [vmem:[%s325 + $0x118] sm:$0xff] %v5824
        %5873 = vst [vmem:[%s325 + $0x120] sm:$0xff] %v5825
        %5874 = vst [vmem:[%s325 + $0x128] sm:$0xff] %v5826
        %5875 = vst [vmem:[%s325 + $0x130] sm:$0xff] %v5827
        %5876 = vst [vmem:[%s325 + $0x138] sm:$0xff] %v5828
        %5877 = vst [vmem:[%s325 + $0x140] sm:$0xff] %v5829
        %5878 = vst [vmem:[%s325 + $0x148] sm:$0xff] %v5830
        %5879 = vst [vmem:[%s325 + $0x150] sm:$0xff] %v5831
        %5880 = vst [vmem:[%s325 + $0x158] sm:$0xff] %v5832
        %5881 = vst [vmem:[%s325 + $0x160] sm:$0xff] %v5833
        %5882 = vst [vmem:[%s325 + $0x168] sm:$0xff] %v5834
        %5883 = vst [vmem:[%s325 + $0x170] sm:$0xff] %v5835
        %5884 = vst [vmem:[%s325 + $0x178] sm:$0xff] %v5836
        %s5885 = sand.u32 %s185, 1
        %s5886 = scalar_lea.sflag [#allocation4], %s5885
        %s5887 = sand.u32 %s185, 1
        %s5888 = smul.addr %s5887, 384
        %s5889 = scalar_lea.vmem [#allocation8], %s5888
        // Predicated region
        $region61: #{tpu_custom_call.1} parent=47 // pred_check
          %p5890 = pneg %p195
        $region62: #{tpu_custom_call.1} parent=47 // pred_check_branch
          %5892 = sbr.rel (%p5890) target = $region64
        $region63: #{tpu_custom_call.1} parent=47 // pred_region
          %s5894 = ssub.s32 6144, 6144
          %5895 = vsyncadd %s5886, %s5894
          %s5896 = smul.addr %s25, 48
          %s5897 = smul.addr %s5896, 128
          %s5898 = scalar_lea.hbm %s7, %s5897
          %s5899 = sshll.u32 %s5889, 4
          %s5900 = int_to_ptr.vmem [resolvable:$true] %s5899
          %5905 = dma.vmem_to_hbm [thread:$0]  %s5900, 6144, %s5898, %s5886, 128, 128, 8
        $region64: #{tpu_custom_call.1} parent=47 // pred_fallthru
          _
      $region48: #{tpu_custom_call.1} parent=5 // pred_fallthru
        _
      %p5906 = scmp.le.s32.totalorder 2, %s20
      // Predicated region
      $region65: #{tpu_custom_call.1} parent=5 // pred_check
        %p5907 = pneg %p5906
      $region66: #{tpu_custom_call.1} parent=5 // pred_check_branch
        %5909 = sbr.rel (%p5907) target = $region68
      $region67: #{tpu_custom_call.1} parent=5 // pred_region
        %s5910 = ssub.s32 %s20, 2
        // Predicated region
        $region69: #{tpu_custom_call.1} parent=67 // pred_check
          %p5911 = pneg %p201
        $region70: #{tpu_custom_call.1} parent=67 // pred_check_branch
          %5913 = sbr.rel (%p5911) target = $region72
        $region71: #{tpu_custom_call.1} parent=67 // pred_region
          %s5914 = sand.u32 %s186, 1
          %s5915 = scalar_lea.sflag [#allocation4], %s5914
          %s5916 = sand.u32 %s186, 1
          %s5917 = smul.addr %s5916, 384
          %s5918 = scalar_lea.vmem [#allocation8], %s5917
          %5919 = dma.done %s5915, 6144
        $region72: #{tpu_custom_call.1} parent=67 // pred_fallthru
          _
      $region68: #{tpu_custom_call.1} parent=5 // pred_fallthru
        _
    $region6: #{tpu_custom_call.1} parent=1 // loop_footer
      %s24 = sadd.s32 1, %s20
    $region7: #{tpu_custom_call.1} parent=1 // loop_footer_branch
      %19 = sbr.rel target = $region3
    $region8: #{tpu_custom_call.1} parent=1 // loop_exit
      _
    %5920 = vsyncpa [#allocation3], 1
    %s5921 = scalar_lea.sflag [#allocation3], 1
    %5922 = vsyncpa %s5921, 1
    %5923 = vsyncpa [#allocation6], 1
    %5924 = vsyncpa [#allocation4], 1
    %s5925 = scalar_lea.sflag [#allocation4], 1
    %5926 = vsyncpa %s5925, 1

</llo_original>
